<compile_context>
chip_gen: v5e
topology: v5e:2x2
jax: 0.10.0
libtpu: 0.0.40
codegen_flags: <defaults>
</compile_context>

<pallas_src>
import jax
import jax.numpy as jnp
from jax.experimental import pallas as pl
from jax.experimental.pallas import tpu as pltpu

# ---------------- model hyper-parameters (small, consistent with the module) ----------
B = 2            # batch
S = 8            # sequence length
E = 32           # bert hidden_size (embedding_dim)
H = 32           # GRU hidden_dim
OUT_DIM = 2      # output_dim
N_LAYERS = 2
BIDIRECTIONAL = True
VOCAB = 64

VMEM_SPEC = pl.BlockSpec(memory_space=pltpu.MemorySpace.VMEM)


# ---------------- fused Pallas kernel ---------------------------------------------------
def sentiment_kernel(xpair_ref,                      # [S*B, 2E]  row-block t = [x_t | x_{S-1-t}]
                     wih0_ref, whh0_ref, bx0_ref, bhn0_ref,   # layer-0 weights
                     wih1_ref, whh1_ref, bx1_ref, bhn1_ref,   # layer-1 weights
                     wout_ref, bout_ref,                       # classifier head
                     out_ref):                                 # [B, OUT_DIM]
    H2 = 2 * H

    def run_layer(xpair, wih_ref, whh_ref, bx_ref, bhn_ref, collect_seq):
        # Hoisted input-gate projections: ONE matmul per gate over all S*B rows.
        # GX[g][:, 0:H]  = fwd-dir projection of x at this row's time t
        # GX[g][:, H:2H] = bwd-dir projection of x at time S-1-t
        GX = [jnp.dot(xpair, wih_ref[g], preferred_element_type=jnp.float32)
              + bx_ref[g:g + 1, :]                     # biases folded, hoisted
              for g in range(3)]                       # each [S*B, 2H]
        Whr, Whz, Whn = whh_ref[0], whh_ref[1], whh_ref[2]   # block-diag [2H, 2H]
        bhn = bhn_ref[...]                             # [1, 2H]  (n-gate hidden bias)

        h = jnp.zeros((B, H2), jnp.float32)            # [fwd hidden | bwd hidden]
        hf = [None] * S                                # fwd hidden at time t
        hb = [None] * S                                # bwd hidden at time t
        for i in range(S):                             # fully unrolled (S is static)
            gxr = GX[0][i * B:(i + 1) * B, :]
            gxz = GX[1][i * B:(i + 1) * B, :]
            gxn = GX[2][i * B:(i + 1) * B, :]
            r = jax.nn.sigmoid(gxr + jnp.dot(h, Whr, preferred_element_type=jnp.float32))
            z = jax.nn.sigmoid(gxz + jnp.dot(h, Whz, preferred_element_type=jnp.float32))
            n = jnp.tanh(gxn + r * (jnp.dot(h, Whn, preferred_element_type=jnp.float32) + bhn))
            h = (1.0 - z) * n + z * h
            if collect_seq:
                hf[i] = h[:, 0:H]                      # fwd output at time i
                hb[S - 1 - i] = h[:, H:H2]             # bwd output at time S-1-i
        return h, hf, hb

    # ---- layer 0 (both directions batched) ----
    _, hf0, hb0 = run_layer(xpair_ref[...], wih0_ref, whh0_ref, bx0_ref, bhn0_ref, True)

    # layer-1 paired input: row-block t = [x1_t | x1_{S-1-t}], x1_t = [hf0[t] | hb0[t]]
    x1pair = jnp.concatenate(
        [jnp.concatenate([hf0[t], hb0[t], hf0[S - 1 - t], hb0[S - 1 - t]], axis=-1)
         for t in range(S)],
        axis=0)                                        # [S*B, 4H]

    # ---- layer 1 ----
    h1, _, _ = run_layer(x1pair, wih1_ref, whh1_ref, bx1_ref, bhn1_ref, False)
    # h1 = [fwd final | bwd final] == torch.cat((hidden[-2], hidden[-1]), dim=1)
    # dropout is identity in eval mode.

    # ---- classifier head ----
    out_ref[...] = (jnp.dot(h1, wout_ref[...], preferred_element_type=jnp.float32)
                    + bout_ref[...])


# ---------------- weight preparation (plain-JAX glue, PyTorch layout -> kernel layout) --
def _prep_layer(params_f, params_b, in_dim):
    """Build per-gate block-diagonal weights for a direction-batched GRU layer.

    params_*: (w_ih [3H, in_dim], w_hh [3H, H], b_ih [3H], b_hh [3H]) in PyTorch
    layout, gate order (r, z, n).
    """
    w_ih_f, w_hh_f, b_ih_f, b_hh_f = params_f
    w_ih_b, w_hh_b, b_ih_b, b_hh_b = params_b
    wih_g, whh_g, bx_g = [], [], []
    for g in range(3):
        sl = slice(g * H, (g + 1) * H)
        # block-diag input weight [2*in_dim, 2H]: fwd block top-left, bwd block bottom-right
        wbd = jnp.zeros((2 * in_dim, 2 * H), jnp.float32)
        wbd = wbd.at[0:in_dim, 0:H].set(w_ih_f[sl].T)
        wbd = wbd.at[in_dim:2 * in_dim, H:2 * H].set(w_ih_b[sl].T)
        wih_g.append(wbd)
        # block-diag hidden weight [2H, 2H]
        hbd = jnp.zeros((2 * H, 2 * H), jnp.float32)
        hbd = hbd.at[0:H, 0:H].set(w_hh_f[sl].T)
        hbd = hbd.at[H:2 * H, H:2 * H].set(w_hh_b[sl].T)
        whh_g.append(hbd)
        # folded biases: r/z gates get b_ih + b_hh; n gate gets only b_ih (b_hn stays inside r*(.))
        if g < 2:
            bf = b_ih_f[sl] + b_hh_f[sl]
            bb = b_ih_b[sl] + b_hh_b[sl]
        else:
            bf = b_ih_f[sl]
            bb = b_ih_b[sl]
        bx_g.append(jnp.concatenate([bf, bb]))
    wih = jnp.stack(wih_g).astype(jnp.float32)          # [3, 2*in_dim, 2H]
    whh = jnp.stack(whh_g).astype(jnp.float32)          # [3, 2H, 2H]
    bx = jnp.stack(bx_g).astype(jnp.float32)            # [3, 2H]
    bhn = jnp.concatenate([b_hh_f[2 * H:3 * H],
                           b_hh_b[2 * H:3 * H]]).reshape(1, 2 * H).astype(jnp.float32)
    return wih, whh, bx, bhn


# ---------------- full forward pass ------------------------------------------------------
@jax.jit
def sentiment_forward(text, params):
    # "bert(text)[0]" stand-in (frozen feature extractor -> embedding lookup, plain-JAX glue)
    embedded = params["emb_table"][text]                 # [B, S, E]
    x = jnp.transpose(embedded, (1, 0, 2))               # [S, B, E] time-major
    x_rev = x[::-1]                                      # time-reversed view for bwd direction
    xpair = jnp.concatenate([x, x_rev], axis=-1).reshape(S * B, 2 * E).astype(jnp.float32)

    wih0, whh0, bx0, bhn0 = _prep_layer(params["l0_f"], params["l0_b"], E)
    wih1, whh1, bx1, bhn1 = _prep_layer(params["l1_f"], params["l1_b"], 2 * H)
    wout = params["w_out"].T.astype(jnp.float32)         # [2H, OUT]
    bout = params["b_out"].reshape(1, -1).astype(jnp.float32)

    return pl.pallas_call(
        sentiment_kernel,
        out_shape=jax.ShapeDtypeStruct((B, OUT_DIM), jnp.float32),
        in_specs=[VMEM_SPEC] * 11,
        out_specs=VMEM_SPEC,
    )(xpair, wih0, whh0, bx0, bhn0, wih1, whh1, bx1, bhn1, wout, bout)


# ---------------- pure-JAX reference (for correctness check) ---------------------------
def _gru_dir_ref(x_sbe, w_ih, w_hh, b_ih, b_hh, reverse):
    seq_len, batch, _ = x_sbe.shape
    h = jnp.zeros((batch, H), jnp.float32)
    outs = [None] * seq_len
    order = range(seq_len - 1, -1, -1) if reverse else range(seq_len)
    for t in order:
        gx = x_sbe[t] @ w_ih.T + b_ih
        gh = h @ w_hh.T + b_hh
        r = jax.nn.sigmoid(gx[:, :H] + gh[:, :H])
        z = jax.nn.sigmoid(gx[:, H:2 * H] + gh[:, H:2 * H])
        n = jnp.tanh(gx[:, 2 * H:] + r * gh[:, 2 * H:])
        h = (1.0 - z) * n + z * h
        outs[t] = h
    return jnp.stack(outs, axis=0), h


def sentiment_forward_ref(text, params):
    embedded = params["emb_table"][text]
    x = jnp.transpose(embedded, (1, 0, 2))
    sf, _ = _gru_dir_ref(x, *params["l0_f"], False)
    sb, _ = _gru_dir_ref(x, *params["l0_b"], True)
    x1 = jnp.concatenate([sf, sb], axis=-1)
    _, hf = _gru_dir_ref(x1, *params["l1_f"], False)
    _, hb = _gru_dir_ref(x1, *params["l1_b"], True)
    hidden = jnp.concatenate([hf, hb], axis=-1)
    return hidden @ params["w_out"].T + params["b_out"]


# ---------------- deterministic parameter init ------------------------------------------
def init_params(key):
    ks = jax.random.split(key, 32)
    k = iter(ks)

    def gru_params(in_dim):
        return (
            0.1 * jax.random.normal(next(k), (3 * H, in_dim), jnp.float32),  # w_ih
            0.1 * jax.random.normal(next(k), (3 * H, H), jnp.float32),       # w_hh
            0.1 * jax.random.normal(next(k), (3 * H,), jnp.float32),         # b_ih
            0.1 * jax.random.normal(next(k), (3 * H,), jnp.float32),         # b_hh
        )

    return {
        "emb_table": 0.5 * jax.random.normal(next(k), (VOCAB, E), jnp.float32),
        "l0_f": gru_params(E),
        "l0_b": gru_params(E),
        "l1_f": gru_params(2 * H),
        "l1_b": gru_params(2 * H),
        "w_out": 0.1 * jax.random.normal(next(k), (OUT_DIM, 2 * H), jnp.float32),
        "b_out": 0.1 * jax.random.normal(next(k), (OUT_DIM,), jnp.float32),
    }


if __name__ == "__main__":
    key = jax.random.PRNGKey(0)
    pkey, tkey = jax.random.split(key)
    params = init_params(pkey)
    text = jax.random.randint(tkey, (B, S), 0, VOCAB, dtype=jnp.int32)

    out = jax.block_until_ready(sentiment_forward(text, params))
    ref = jax.block_until_ready(sentiment_forward_ref(text, params))

    assert out.shape == (B, OUT_DIM), out.shape
    assert jnp.allclose(out, ref, rtol=2e-3, atol=2e-3), (out, ref)
    print("KERNEL_OK")
</pallas_src>

<mosaic_0001>
module attributes {stable_mosaic.version = 11 : i64} {
  func.func @sentiment_kernel(%arg0: memref<16x64xf32, #tpu.memory_space<vmem>>, %arg1: memref<3x64x64xf32, #tpu.memory_space<vmem>>, %arg2: memref<3x64x64xf32, #tpu.memory_space<vmem>>, %arg3: memref<3x64xf32, #tpu.memory_space<vmem>>, %arg4: memref<1x64xf32, #tpu.memory_space<vmem>>, %arg5: memref<3x128x64xf32, #tpu.memory_space<vmem>>, %arg6: memref<3x64x64xf32, #tpu.memory_space<vmem>>, %arg7: memref<3x64xf32, #tpu.memory_space<vmem>>, %arg8: memref<1x64xf32, #tpu.memory_space<vmem>>, %arg9: memref<64x2xf32, #tpu.memory_space<vmem>>, %arg10: memref<1x2xf32, #tpu.memory_space<vmem>>, %arg11: memref<2x2xf32, #tpu.memory_space<vmem>>) attributes {dimension_semantics = [], scalar_prefetch = 0 : i64, scratch_operands = 0 : i64, tpu.core_type = #tpu.core_type<tc>} {
    %c0 = arith.constant 0 : index
    %c0_0 = arith.constant 0 : index
    %0 = vector.load %arg0[%c0, %c0_0] : memref<16x64xf32, #tpu.memory_space<vmem>>, vector<16x64xf32>
    %c0_1 = arith.constant 0 : index
    %c0_2 = arith.constant 0 : index
    %c0_3 = arith.constant 0 : index
    %1 = vector.load %arg1[%c0_1, %c0_2, %c0_3] : memref<3x64x64xf32, #tpu.memory_space<vmem>>, vector<1x64x64xf32>
    %2 = vector.shape_cast %1 : vector<1x64x64xf32> to vector<64x64xf32>
    %cst = arith.constant dense<0.000000e+00> : vector<16x64xf32>
    %3 = tpu.matmul %0, %2, %cst {dimension_numbers = #tpu.dot_dimension_numbers<[1], [0], [0], [1], [0, 0, 1, 1], [], []>} : vector<16x64xf32>, vector<64x64xf32>, vector<16x64xf32> -> vector<16x64xf32>
    %c0_4 = arith.constant 0 : index
    %c0_5 = arith.constant 0 : index
    %4 = vector.load %arg3[%c0_4, %c0_5] : memref<3x64xf32, #tpu.memory_space<vmem>>, vector<1x64xf32>
    %5 = vector.broadcast %4 : vector<1x64xf32> to vector<16x64xf32>
    %6 = arith.addf %3, %5 : vector<16x64xf32>
    %c1 = arith.constant 1 : index
    %c0_6 = arith.constant 0 : index
    %c0_7 = arith.constant 0 : index
    %7 = vector.load %arg1[%c1, %c0_6, %c0_7] : memref<3x64x64xf32, #tpu.memory_space<vmem>>, vector<1x64x64xf32>
    %8 = vector.shape_cast %7 : vector<1x64x64xf32> to vector<64x64xf32>
    %cst_8 = arith.constant dense<0.000000e+00> : vector<16x64xf32>
    %9 = tpu.matmul %0, %8, %cst_8 {dimension_numbers = #tpu.dot_dimension_numbers<[1], [0], [0], [1], [0, 0, 1, 1], [], []>} : vector<16x64xf32>, vector<64x64xf32>, vector<16x64xf32> -> vector<16x64xf32>
    %c1_9 = arith.constant 1 : index
    %c0_10 = arith.constant 0 : index
    %10 = vector.load %arg3[%c1_9, %c0_10] : memref<3x64xf32, #tpu.memory_space<vmem>>, vector<1x64xf32>
    %11 = vector.broadcast %10 : vector<1x64xf32> to vector<16x64xf32>
    %12 = arith.addf %9, %11 : vector<16x64xf32>
    %c2 = arith.constant 2 : index
    %c0_11 = arith.constant 0 : index
    %c0_12 = arith.constant 0 : index
    %13 = vector.load %arg1[%c2, %c0_11, %c0_12] : memref<3x64x64xf32, #tpu.memory_space<vmem>>, vector<1x64x64xf32>
    %14 = vector.shape_cast %13 : vector<1x64x64xf32> to vector<64x64xf32>
    %cst_13 = arith.constant dense<0.000000e+00> : vector<16x64xf32>
    %15 = tpu.matmul %0, %14, %cst_13 {dimension_numbers = #tpu.dot_dimension_numbers<[1], [0], [0], [1], [0, 0, 1, 1], [], []>} : vector<16x64xf32>, vector<64x64xf32>, vector<16x64xf32> -> vector<16x64xf32>
    %c2_14 = arith.constant 2 : index
    %c0_15 = arith.constant 0 : index
    %16 = vector.load %arg3[%c2_14, %c0_15] : memref<3x64xf32, #tpu.memory_space<vmem>>, vector<1x64xf32>
    %17 = vector.broadcast %16 : vector<1x64xf32> to vector<16x64xf32>
    %18 = arith.addf %15, %17 : vector<16x64xf32>
    %c0_16 = arith.constant 0 : index
    %c0_17 = arith.constant 0 : index
    %c0_18 = arith.constant 0 : index
    %19 = vector.load %arg2[%c0_16, %c0_17, %c0_18] : memref<3x64x64xf32, #tpu.memory_space<vmem>>, vector<1x64x64xf32>
    %20 = vector.shape_cast %19 : vector<1x64x64xf32> to vector<64x64xf32>
    %c1_19 = arith.constant 1 : index
    %c0_20 = arith.constant 0 : index
    %c0_21 = arith.constant 0 : index
    %21 = vector.load %arg2[%c1_19, %c0_20, %c0_21] : memref<3x64x64xf32, #tpu.memory_space<vmem>>, vector<1x64x64xf32>
    %22 = vector.shape_cast %21 : vector<1x64x64xf32> to vector<64x64xf32>
    %c2_22 = arith.constant 2 : index
    %c0_23 = arith.constant 0 : index
    %c0_24 = arith.constant 0 : index
    %23 = vector.load %arg2[%c2_22, %c0_23, %c0_24] : memref<3x64x64xf32, #tpu.memory_space<vmem>>, vector<1x64x64xf32>
    %24 = vector.shape_cast %23 : vector<1x64x64xf32> to vector<64x64xf32>
    %c0_25 = arith.constant 0 : index
    %c0_26 = arith.constant 0 : index
    %25 = vector.load %arg4[%c0_25, %c0_26] : memref<1x64xf32, #tpu.memory_space<vmem>>, vector<1x64xf32>
    %cst_27 = arith.constant 0.000000e+00 : f32
    %26 = vector.broadcast %cst_27 : f32 to vector<2x64xf32>
    %27 = vector.extract_strided_slice %6 {offsets = [0, 0], sizes = [2, 64], strides = [1, 1]} : vector<16x64xf32> to vector<2x64xf32>
    %28 = vector.extract_strided_slice %12 {offsets = [0, 0], sizes = [2, 64], strides = [1, 1]} : vector<16x64xf32> to vector<2x64xf32>
    %29 = vector.extract_strided_slice %18 {offsets = [0, 0], sizes = [2, 64], strides = [1, 1]} : vector<16x64xf32> to vector<2x64xf32>
    %cst_28 = arith.constant dense<0.000000e+00> : vector<2x64xf32>
    %30 = tpu.matmul %26, %20, %cst_28 {dimension_numbers = #tpu.dot_dimension_numbers<[1], [0], [0], [1], [0, 0, 1, 1], [], []>} : vector<2x64xf32>, vector<64x64xf32>, vector<2x64xf32> -> vector<2x64xf32>
    %31 = arith.addf %27, %30 : vector<2x64xf32>
    %32 = arith.negf %31 : vector<2x64xf32>
    %33 = math.exp %32 : vector<2x64xf32>
    %cst_29 = arith.constant 1.000000e+00 : f32
    %34 = vector.broadcast %cst_29 : f32 to vector<2x64xf32>
    %35 = arith.addf %34, %33 : vector<2x64xf32>
    %36 = arith.divf %34, %35 : vector<2x64xf32>
    %cst_30 = arith.constant dense<0.000000e+00> : vector<2x64xf32>
    %37 = tpu.matmul %26, %22, %cst_30 {dimension_numbers = #tpu.dot_dimension_numbers<[1], [0], [0], [1], [0, 0, 1, 1], [], []>} : vector<2x64xf32>, vector<64x64xf32>, vector<2x64xf32> -> vector<2x64xf32>
    %38 = arith.addf %28, %37 : vector<2x64xf32>
    %39 = arith.negf %38 : vector<2x64xf32>
    %40 = math.exp %39 : vector<2x64xf32>
    %cst_31 = arith.constant 1.000000e+00 : f32
    %41 = vector.broadcast %cst_31 : f32 to vector<2x64xf32>
    %42 = arith.addf %41, %40 : vector<2x64xf32>
    %43 = arith.divf %41, %42 : vector<2x64xf32>
    %cst_32 = arith.constant dense<0.000000e+00> : vector<2x64xf32>
    %44 = tpu.matmul %26, %24, %cst_32 {dimension_numbers = #tpu.dot_dimension_numbers<[1], [0], [0], [1], [0, 0, 1, 1], [], []>} : vector<2x64xf32>, vector<64x64xf32>, vector<2x64xf32> -> vector<2x64xf32>
    %45 = vector.broadcast %25 : vector<1x64xf32> to vector<2x64xf32>
    %46 = arith.addf %44, %45 : vector<2x64xf32>
    %47 = arith.mulf %36, %46 : vector<2x64xf32>
    %48 = arith.addf %29, %47 : vector<2x64xf32>
    %49 = math.tanh %48 : vector<2x64xf32>
    %cst_33 = arith.constant 1.000000e+00 : f32
    %50 = vector.broadcast %cst_33 : f32 to vector<2x64xf32>
    %51 = arith.subf %50, %43 : vector<2x64xf32>
    %52 = arith.mulf %51, %49 : vector<2x64xf32>
    %53 = arith.mulf %43, %26 : vector<2x64xf32>
    %54 = arith.addf %52, %53 : vector<2x64xf32>
    %55 = vector.extract_strided_slice %54 {offsets = [0, 0], sizes = [2, 32], strides = [1, 1]} : vector<2x64xf32> to vector<2x32xf32>
    %56 = vector.extract_strided_slice %54 {offsets = [0, 32], sizes = [2, 32], strides = [1, 1]} : vector<2x64xf32> to vector<2x32xf32>
    %57 = vector.extract_strided_slice %6 {offsets = [2, 0], sizes = [2, 64], strides = [1, 1]} : vector<16x64xf32> to vector<2x64xf32>
    %58 = vector.extract_strided_slice %12 {offsets = [2, 0], sizes = [2, 64], strides = [1, 1]} : vector<16x64xf32> to vector<2x64xf32>
    %59 = vector.extract_strided_slice %18 {offsets = [2, 0], sizes = [2, 64], strides = [1, 1]} : vector<16x64xf32> to vector<2x64xf32>
    %cst_34 = arith.constant dense<0.000000e+00> : vector<2x64xf32>
    %60 = tpu.matmul %54, %20, %cst_34 {dimension_numbers = #tpu.dot_dimension_numbers<[1], [0], [0], [1], [0, 0, 1, 1], [], []>} : vector<2x64xf32>, vector<64x64xf32>, vector<2x64xf32> -> vector<2x64xf32>
    %61 = arith.addf %57, %60 : vector<2x64xf32>
    %62 = arith.negf %61 : vector<2x64xf32>
    %63 = math.exp %62 : vector<2x64xf32>
    %cst_35 = arith.constant 1.000000e+00 : f32
    %64 = vector.broadcast %cst_35 : f32 to vector<2x64xf32>
    %65 = arith.addf %64, %63 : vector<2x64xf32>
    %66 = arith.divf %64, %65 : vector<2x64xf32>
    %cst_36 = arith.constant dense<0.000000e+00> : vector<2x64xf32>
    %67 = tpu.matmul %54, %22, %cst_36 {dimension_numbers = #tpu.dot_dimension_numbers<[1], [0], [0], [1], [0, 0, 1, 1], [], []>} : vector<2x64xf32>, vector<64x64xf32>, vector<2x64xf32> -> vector<2x64xf32>
    %68 = arith.addf %58, %67 : vector<2x64xf32>
    %69 = arith.negf %68 : vector<2x64xf32>
    %70 = math.exp %69 : vector<2x64xf32>
    %cst_37 = arith.constant 1.000000e+00 : f32
    %71 = vector.broadcast %cst_37 : f32 to vector<2x64xf32>
    %72 = arith.addf %71, %70 : vector<2x64xf32>
    %73 = arith.divf %71, %72 : vector<2x64xf32>
    %cst_38 = arith.constant dense<0.000000e+00> : vector<2x64xf32>
    %74 = tpu.matmul %54, %24, %cst_38 {dimension_numbers = #tpu.dot_dimension_numbers<[1], [0], [0], [1], [0, 0, 1, 1], [], []>} : vector<2x64xf32>, vector<64x64xf32>, vector<2x64xf32> -> vector<2x64xf32>
    %75 = vector.broadcast %25 : vector<1x64xf32> to vector<2x64xf32>
    %76 = arith.addf %74, %75 : vector<2x64xf32>
    %77 = arith.mulf %66, %76 : vector<2x64xf32>
    %78 = arith.addf %59, %77 : vector<2x64xf32>
    %79 = math.tanh %78 : vector<2x64xf32>
    %cst_39 = arith.constant 1.000000e+00 : f32
    %80 = vector.broadcast %cst_39 : f32 to vector<2x64xf32>
    %81 = arith.subf %80, %73 : vector<2x64xf32>
    %82 = arith.mulf %81, %79 : vector<2x64xf32>
    %83 = arith.mulf %73, %54 : vector<2x64xf32>
    %84 = arith.addf %82, %83 : vector<2x64xf32>
    %85 = vector.extract_strided_slice %84 {offsets = [0, 0], sizes = [2, 32], strides = [1, 1]} : vector<2x64xf32> to vector<2x32xf32>
    %86 = vector.extract_strided_slice %84 {offsets = [0, 32], sizes = [2, 32], strides = [1, 1]} : vector<2x64xf32> to vector<2x32xf32>
    %87 = vector.extract_strided_slice %6 {offsets = [4, 0], sizes = [2, 64], strides = [1, 1]} : vector<16x64xf32> to vector<2x64xf32>
    %88 = vector.extract_strided_slice %12 {offsets = [4, 0], sizes = [2, 64], strides = [1, 1]} : vector<16x64xf32> to vector<2x64xf32>
    %89 = vector.extract_strided_slice %18 {offsets = [4, 0], sizes = [2, 64], strides = [1, 1]} : vector<16x64xf32> to vector<2x64xf32>
    %cst_40 = arith.constant dense<0.000000e+00> : vector<2x64xf32>
    %90 = tpu.matmul %84, %20, %cst_40 {dimension_numbers = #tpu.dot_dimension_numbers<[1], [0], [0], [1], [0, 0, 1, 1], [], []>} : vector<2x64xf32>, vector<64x64xf32>, vector<2x64xf32> -> vector<2x64xf32>
    %91 = arith.addf %87, %90 : vector<2x64xf32>
    %92 = arith.negf %91 : vector<2x64xf32>
    %93 = math.exp %92 : vector<2x64xf32>
    %cst_41 = arith.constant 1.000000e+00 : f32
    %94 = vector.broadcast %cst_41 : f32 to vector<2x64xf32>
    %95 = arith.addf %94, %93 : vector<2x64xf32>
    %96 = arith.divf %94, %95 : vector<2x64xf32>
    %cst_42 = arith.constant dense<0.000000e+00> : vector<2x64xf32>
    %97 = tpu.matmul %84, %22, %cst_42 {dimension_numbers = #tpu.dot_dimension_numbers<[1], [0], [0], [1], [0, 0, 1, 1], [], []>} : vector<2x64xf32>, vector<64x64xf32>, vector<2x64xf32> -> vector<2x64xf32>
    %98 = arith.addf %88, %97 : vector<2x64xf32>
    %99 = arith.negf %98 : vector<2x64xf32>
    %100 = math.exp %99 : vector<2x64xf32>
    %cst_43 = arith.constant 1.000000e+00 : f32
    %101 = vector.broadcast %cst_43 : f32 to vector<2x64xf32>
    %102 = arith.addf %101, %100 : vector<2x64xf32>
    %103 = arith.divf %101, %102 : vector<2x64xf32>
    %cst_44 = arith.constant dense<0.000000e+00> : vector<2x64xf32>
    %104 = tpu.matmul %84, %24, %cst_44 {dimension_numbers = #tpu.dot_dimension_numbers<[1], [0], [0], [1], [0, 0, 1, 1], [], []>} : vector<2x64xf32>, vector<64x64xf32>, vector<2x64xf32> -> vector<2x64xf32>
    %105 = vector.broadcast %25 : vector<1x64xf32> to vector<2x64xf32>
    %106 = arith.addf %104, %105 : vector<2x64xf32>
    %107 = arith.mulf %96, %106 : vector<2x64xf32>
    %108 = arith.addf %89, %107 : vector<2x64xf32>
    %109 = math.tanh %108 : vector<2x64xf32>
    %cst_45 = arith.constant 1.000000e+00 : f32
    %110 = vector.broadcast %cst_45 : f32 to vector<2x64xf32>
    %111 = arith.subf %110, %103 : vector<2x64xf32>
    %112 = arith.mulf %111, %109 : vector<2x64xf32>
    %113 = arith.mulf %103, %84 : vector<2x64xf32>
    %114 = arith.addf %112, %113 : vector<2x64xf32>
    %115 = vector.extract_strided_slice %114 {offsets = [0, 0], sizes = [2, 32], strides = [1, 1]} : vector<2x64xf32> to vector<2x32xf32>
    %116 = vector.extract_strided_slice %114 {offsets = [0, 32], sizes = [2, 32], strides = [1, 1]} : vector<2x64xf32> to vector<2x32xf32>
    %117 = vector.extract_strided_slice %6 {offsets = [6, 0], sizes = [2, 64], strides = [1, 1]} : vector<16x64xf32> to vector<2x64xf32>
    %118 = vector.extract_strided_slice %12 {offsets = [6, 0], sizes = [2, 64], strides = [1, 1]} : vector<16x64xf32> to vector<2x64xf32>
    %119 = vector.extract_strided_slice %18 {offsets = [6, 0], sizes = [2, 64], strides = [1, 1]} : vector<16x64xf32> to vector<2x64xf32>
    %cst_46 = arith.constant dense<0.000000e+00> : vector<2x64xf32>
    %120 = tpu.matmul %114, %20, %cst_46 {dimension_numbers = #tpu.dot_dimension_numbers<[1], [0], [0], [1], [0, 0, 1, 1], [], []>} : vector<2x64xf32>, vector<64x64xf32>, vector<2x64xf32> -> vector<2x64xf32>
    %121 = arith.addf %117, %120 : vector<2x64xf32>
    %122 = arith.negf %121 : vector<2x64xf32>
    %123 = math.exp %122 : vector<2x64xf32>
    %cst_47 = arith.constant 1.000000e+00 : f32
    %124 = vector.broadcast %cst_47 : f32 to vector<2x64xf32>
    %125 = arith.addf %124, %123 : vector<2x64xf32>
    %126 = arith.divf %124, %125 : vector<2x64xf32>
    %cst_48 = arith.constant dense<0.000000e+00> : vector<2x64xf32>
    %127 = tpu.matmul %114, %22, %cst_48 {dimension_numbers = #tpu.dot_dimension_numbers<[1], [0], [0], [1], [0, 0, 1, 1], [], []>} : vector<2x64xf32>, vector<64x64xf32>, vector<2x64xf32> -> vector<2x64xf32>
    %128 = arith.addf %118, %127 : vector<2x64xf32>
    %129 = arith.negf %128 : vector<2x64xf32>
    %130 = math.exp %129 : vector<2x64xf32>
    %cst_49 = arith.constant 1.000000e+00 : f32
    %131 = vector.broadcast %cst_49 : f32 to vector<2x64xf32>
    %132 = arith.addf %131, %130 : vector<2x64xf32>
    %133 = arith.divf %131, %132 : vector<2x64xf32>
    %cst_50 = arith.constant dense<0.000000e+00> : vector<2x64xf32>
    %134 = tpu.matmul %114, %24, %cst_50 {dimension_numbers = #tpu.dot_dimension_numbers<[1], [0], [0], [1], [0, 0, 1, 1], [], []>} : vector<2x64xf32>, vector<64x64xf32>, vector<2x64xf32> -> vector<2x64xf32>
    %135 = vector.broadcast %25 : vector<1x64xf32> to vector<2x64xf32>
    %136 = arith.addf %134, %135 : vector<2x64xf32>
    %137 = arith.mulf %126, %136 : vector<2x64xf32>
    %138 = arith.addf %119, %137 : vector<2x64xf32>
    %139 = math.tanh %138 : vector<2x64xf32>
    %cst_51 = arith.constant 1.000000e+00 : f32
    %140 = vector.broadcast %cst_51 : f32 to vector<2x64xf32>
    %141 = arith.subf %140, %133 : vector<2x64xf32>
    %142 = arith.mulf %141, %139 : vector<2x64xf32>
    %143 = arith.mulf %133, %114 : vector<2x64xf32>
    %144 = arith.addf %142, %143 : vector<2x64xf32>
    %145 = vector.extract_strided_slice %144 {offsets = [0, 0], sizes = [2, 32], strides = [1, 1]} : vector<2x64xf32> to vector<2x32xf32>
    %146 = vector.extract_strided_slice %144 {offsets = [0, 32], sizes = [2, 32], strides = [1, 1]} : vector<2x64xf32> to vector<2x32xf32>
    %147 = vector.extract_strided_slice %6 {offsets = [8, 0], sizes = [2, 64], strides = [1, 1]} : vector<16x64xf32> to vector<2x64xf32>
    %148 = vector.extract_strided_slice %12 {offsets = [8, 0], sizes = [2, 64], strides = [1, 1]} : vector<16x64xf32> to vector<2x64xf32>
    %149 = vector.extract_strided_slice %18 {offsets = [8, 0], sizes = [2, 64], strides = [1, 1]} : vector<16x64xf32> to vector<2x64xf32>
    %cst_52 = arith.constant dense<0.000000e+00> : vector<2x64xf32>
    %150 = tpu.matmul %144, %20, %cst_52 {dimension_numbers = #tpu.dot_dimension_numbers<[1], [0], [0], [1], [0, 0, 1, 1], [], []>} : vector<2x64xf32>, vector<64x64xf32>, vector<2x64xf32> -> vector<2x64xf32>
    %151 = arith.addf %147, %150 : vector<2x64xf32>
    %152 = arith.negf %151 : vector<2x64xf32>
    %153 = math.exp %152 : vector<2x64xf32>
    %cst_53 = arith.constant 1.000000e+00 : f32
    %154 = vector.broadcast %cst_53 : f32 to vector<2x64xf32>
    %155 = arith.addf %154, %153 : vector<2x64xf32>
    %156 = arith.divf %154, %155 : vector<2x64xf32>
    %cst_54 = arith.constant dense<0.000000e+00> : vector<2x64xf32>
    %157 = tpu.matmul %144, %22, %cst_54 {dimension_numbers = #tpu.dot_dimension_numbers<[1], [0], [0], [1], [0, 0, 1, 1], [], []>} : vector<2x64xf32>, vector<64x64xf32>, vector<2x64xf32> -> vector<2x64xf32>
    %158 = arith.addf %148, %157 : vector<2x64xf32>
    %159 = arith.negf %158 : vector<2x64xf32>
    %160 = math.exp %159 : vector<2x64xf32>
    %cst_55 = arith.constant 1.000000e+00 : f32
    %161 = vector.broadcast %cst_55 : f32 to vector<2x64xf32>
    %162 = arith.addf %161, %160 : vector<2x64xf32>
    %163 = arith.divf %161, %162 : vector<2x64xf32>
    %cst_56 = arith.constant dense<0.000000e+00> : vector<2x64xf32>
    %164 = tpu.matmul %144, %24, %cst_56 {dimension_numbers = #tpu.dot_dimension_numbers<[1], [0], [0], [1], [0, 0, 1, 1], [], []>} : vector<2x64xf32>, vector<64x64xf32>, vector<2x64xf32> -> vector<2x64xf32>
    %165 = vector.broadcast %25 : vector<1x64xf32> to vector<2x64xf32>
    %166 = arith.addf %164, %165 : vector<2x64xf32>
    %167 = arith.mulf %156, %166 : vector<2x64xf32>
    %168 = arith.addf %149, %167 : vector<2x64xf32>
    %169 = math.tanh %168 : vector<2x64xf32>
    %cst_57 = arith.constant 1.000000e+00 : f32
    %170 = vector.broadcast %cst_57 : f32 to vector<2x64xf32>
    %171 = arith.subf %170, %163 : vector<2x64xf32>
    %172 = arith.mulf %171, %169 : vector<2x64xf32>
    %173 = arith.mulf %163, %144 : vector<2x64xf32>
    %174 = arith.addf %172, %173 : vector<2x64xf32>
    %175 = vector.extract_strided_slice %174 {offsets = [0, 0], sizes = [2, 32], strides = [1, 1]} : vector<2x64xf32> to vector<2x32xf32>
    %176 = vector.extract_strided_slice %174 {offsets = [0, 32], sizes = [2, 32], strides = [1, 1]} : vector<2x64xf32> to vector<2x32xf32>
    %177 = vector.extract_strided_slice %6 {offsets = [10, 0], sizes = [2, 64], strides = [1, 1]} : vector<16x64xf32> to vector<2x64xf32>
    %178 = vector.extract_strided_slice %12 {offsets = [10, 0], sizes = [2, 64], strides = [1, 1]} : vector<16x64xf32> to vector<2x64xf32>
    %179 = vector.extract_strided_slice %18 {offsets = [10, 0], sizes = [2, 64], strides = [1, 1]} : vector<16x64xf32> to vector<2x64xf32>
    %cst_58 = arith.constant dense<0.000000e+00> : vector<2x64xf32>
    %180 = tpu.matmul %174, %20, %cst_58 {dimension_numbers = #tpu.dot_dimension_numbers<[1], [0], [0], [1], [0, 0, 1, 1], [], []>} : vector<2x64xf32>, vector<64x64xf32>, vector<2x64xf32> -> vector<2x64xf32>
    %181 = arith.addf %177, %180 : vector<2x64xf32>
    %182 = arith.negf %181 : vector<2x64xf32>
    %183 = math.exp %182 : vector<2x64xf32>
    %cst_59 = arith.constant 1.000000e+00 : f32
    %184 = vector.broadcast %cst_59 : f32 to vector<2x64xf32>
    %185 = arith.addf %184, %183 : vector<2x64xf32>
    %186 = arith.divf %184, %185 : vector<2x64xf32>
    %cst_60 = arith.constant dense<0.000000e+00> : vector<2x64xf32>
    %187 = tpu.matmul %174, %22, %cst_60 {dimension_numbers = #tpu.dot_dimension_numbers<[1], [0], [0], [1], [0, 0, 1, 1], [], []>} : vector<2x64xf32>, vector<64x64xf32>, vector<2x64xf32> -> vector<2x64xf32>
    %188 = arith.addf %178, %187 : vector<2x64xf32>
    %189 = arith.negf %188 : vector<2x64xf32>
    %190 = math.exp %189 : vector<2x64xf32>
    %cst_61 = arith.constant 1.000000e+00 : f32
    %191 = vector.broadcast %cst_61 : f32 to vector<2x64xf32>
    %192 = arith.addf %191, %190 : vector<2x64xf32>
    %193 = arith.divf %191, %192 : vector<2x64xf32>
    %cst_62 = arith.constant dense<0.000000e+00> : vector<2x64xf32>
    %194 = tpu.matmul %174, %24, %cst_62 {dimension_numbers = #tpu.dot_dimension_numbers<[1], [0], [0], [1], [0, 0, 1, 1], [], []>} : vector<2x64xf32>, vector<64x64xf32>, vector<2x64xf32> -> vector<2x64xf32>
    %195 = vector.broadcast %25 : vector<1x64xf32> to vector<2x64xf32>
    %196 = arith.addf %194, %195 : vector<2x64xf32>
    %197 = arith.mulf %186, %196 : vector<2x64xf32>
    %198 = arith.addf %179, %197 : vector<2x64xf32>
    %199 = math.tanh %198 : vector<2x64xf32>
    %cst_63 = arith.constant 1.000000e+00 : f32
    %200 = vector.broadcast %cst_63 : f32 to vector<2x64xf32>
    %201 = arith.subf %200, %193 : vector<2x64xf32>
    %202 = arith.mulf %201, %199 : vector<2x64xf32>
    %203 = arith.mulf %193, %174 : vector<2x64xf32>
    %204 = arith.addf %202, %203 : vector<2x64xf32>
    %205 = vector.extract_strided_slice %204 {offsets = [0, 0], sizes = [2, 32], strides = [1, 1]} : vector<2x64xf32> to vector<2x32xf32>
    %206 = vector.extract_strided_slice %204 {offsets = [0, 32], sizes = [2, 32], strides = [1, 1]} : vector<2x64xf32> to vector<2x32xf32>
    %207 = vector.extract_strided_slice %6 {offsets = [12, 0], sizes = [2, 64], strides = [1, 1]} : vector<16x64xf32> to vector<2x64xf32>
    %208 = vector.extract_strided_slice %12 {offsets = [12, 0], sizes = [2, 64], strides = [1, 1]} : vector<16x64xf32> to vector<2x64xf32>
    %209 = vector.extract_strided_slice %18 {offsets = [12, 0], sizes = [2, 64], strides = [1, 1]} : vector<16x64xf32> to vector<2x64xf32>
    %cst_64 = arith.constant dense<0.000000e+00> : vector<2x64xf32>
    %210 = tpu.matmul %204, %20, %cst_64 {dimension_numbers = #tpu.dot_dimension_numbers<[1], [0], [0], [1], [0, 0, 1, 1], [], []>} : vector<2x64xf32>, vector<64x64xf32>, vector<2x64xf32> -> vector<2x64xf32>
    %211 = arith.addf %207, %210 : vector<2x64xf32>
    %212 = arith.negf %211 : vector<2x64xf32>
    %213 = math.exp %212 : vector<2x64xf32>
    %cst_65 = arith.constant 1.000000e+00 : f32
    %214 = vector.broadcast %cst_65 : f32 to vector<2x64xf32>
    %215 = arith.addf %214, %213 : vector<2x64xf32>
    %216 = arith.divf %214, %215 : vector<2x64xf32>
    %cst_66 = arith.constant dense<0.000000e+00> : vector<2x64xf32>
    %217 = tpu.matmul %204, %22, %cst_66 {dimension_numbers = #tpu.dot_dimension_numbers<[1], [0], [0], [1], [0, 0, 1, 1], [], []>} : vector<2x64xf32>, vector<64x64xf32>, vector<2x64xf32> -> vector<2x64xf32>
    %218 = arith.addf %208, %217 : vector<2x64xf32>
    %219 = arith.negf %218 : vector<2x64xf32>
    %220 = math.exp %219 : vector<2x64xf32>
    %cst_67 = arith.constant 1.000000e+00 : f32
    %221 = vector.broadcast %cst_67 : f32 to vector<2x64xf32>
    %222 = arith.addf %221, %220 : vector<2x64xf32>
    %223 = arith.divf %221, %222 : vector<2x64xf32>
    %cst_68 = arith.constant dense<0.000000e+00> : vector<2x64xf32>
    %224 = tpu.matmul %204, %24, %cst_68 {dimension_numbers = #tpu.dot_dimension_numbers<[1], [0], [0], [1], [0, 0, 1, 1], [], []>} : vector<2x64xf32>, vector<64x64xf32>, vector<2x64xf32> -> vector<2x64xf32>
    %225 = vector.broadcast %25 : vector<1x64xf32> to vector<2x64xf32>
    %226 = arith.addf %224, %225 : vector<2x64xf32>
    %227 = arith.mulf %216, %226 : vector<2x64xf32>
    %228 = arith.addf %209, %227 : vector<2x64xf32>
    %229 = math.tanh %228 : vector<2x64xf32>
    %cst_69 = arith.constant 1.000000e+00 : f32
    %230 = vector.broadcast %cst_69 : f32 to vector<2x64xf32>
    %231 = arith.subf %230, %223 : vector<2x64xf32>
    %232 = arith.mulf %231, %229 : vector<2x64xf32>
    %233 = arith.mulf %223, %204 : vector<2x64xf32>
    %234 = arith.addf %232, %233 : vector<2x64xf32>
    %235 = vector.extract_strided_slice %234 {offsets = [0, 0], sizes = [2, 32], strides = [1, 1]} : vector<2x64xf32> to vector<2x32xf32>
    %236 = vector.extract_strided_slice %234 {offsets = [0, 32], sizes = [2, 32], strides = [1, 1]} : vector<2x64xf32> to vector<2x32xf32>
    %237 = vector.extract_strided_slice %6 {offsets = [14, 0], sizes = [2, 64], strides = [1, 1]} : vector<16x64xf32> to vector<2x64xf32>
    %238 = vector.extract_strided_slice %12 {offsets = [14, 0], sizes = [2, 64], strides = [1, 1]} : vector<16x64xf32> to vector<2x64xf32>
    %239 = vector.extract_strided_slice %18 {offsets = [14, 0], sizes = [2, 64], strides = [1, 1]} : vector<16x64xf32> to vector<2x64xf32>
    %cst_70 = arith.constant dense<0.000000e+00> : vector<2x64xf32>
    %240 = tpu.matmul %234, %20, %cst_70 {dimension_numbers = #tpu.dot_dimension_numbers<[1], [0], [0], [1], [0, 0, 1, 1], [], []>} : vector<2x64xf32>, vector<64x64xf32>, vector<2x64xf32> -> vector<2x64xf32>
    %241 = arith.addf %237, %240 : vector<2x64xf32>
    %242 = arith.negf %241 : vector<2x64xf32>
    %243 = math.exp %242 : vector<2x64xf32>
    %cst_71 = arith.constant 1.000000e+00 : f32
    %244 = vector.broadcast %cst_71 : f32 to vector<2x64xf32>
    %245 = arith.addf %244, %243 : vector<2x64xf32>
    %246 = arith.divf %244, %245 : vector<2x64xf32>
    %cst_72 = arith.constant dense<0.000000e+00> : vector<2x64xf32>
    %247 = tpu.matmul %234, %22, %cst_72 {dimension_numbers = #tpu.dot_dimension_numbers<[1], [0], [0], [1], [0, 0, 1, 1], [], []>} : vector<2x64xf32>, vector<64x64xf32>, vector<2x64xf32> -> vector<2x64xf32>
    %248 = arith.addf %238, %247 : vector<2x64xf32>
    %249 = arith.negf %248 : vector<2x64xf32>
    %250 = math.exp %249 : vector<2x64xf32>
    %cst_73 = arith.constant 1.000000e+00 : f32
    %251 = vector.broadcast %cst_73 : f32 to vector<2x64xf32>
    %252 = arith.addf %251, %250 : vector<2x64xf32>
    %253 = arith.divf %251, %252 : vector<2x64xf32>
    %cst_74 = arith.constant dense<0.000000e+00> : vector<2x64xf32>
    %254 = tpu.matmul %234, %24, %cst_74 {dimension_numbers = #tpu.dot_dimension_numbers<[1], [0], [0], [1], [0, 0, 1, 1], [], []>} : vector<2x64xf32>, vector<64x64xf32>, vector<2x64xf32> -> vector<2x64xf32>
    %255 = vector.broadcast %25 : vector<1x64xf32> to vector<2x64xf32>
    %256 = arith.addf %254, %255 : vector<2x64xf32>
    %257 = arith.mulf %246, %256 : vector<2x64xf32>
    %258 = arith.addf %239, %257 : vector<2x64xf32>
    %259 = math.tanh %258 : vector<2x64xf32>
    %cst_75 = arith.constant 1.000000e+00 : f32
    %260 = vector.broadcast %cst_75 : f32 to vector<2x64xf32>
    %261 = arith.subf %260, %253 : vector<2x64xf32>
    %262 = arith.mulf %261, %259 : vector<2x64xf32>
    %263 = arith.mulf %253, %234 : vector<2x64xf32>
    %264 = arith.addf %262, %263 : vector<2x64xf32>
    %265 = vector.extract_strided_slice %264 {offsets = [0, 0], sizes = [2, 32], strides = [1, 1]} : vector<2x64xf32> to vector<2x32xf32>
    %266 = vector.extract_strided_slice %264 {offsets = [0, 32], sizes = [2, 32], strides = [1, 1]} : vector<2x64xf32> to vector<2x32xf32>
    %267 = tpu.concatenate %55, %266, %265, %56 in 1 : vector<2x32xf32>, vector<2x32xf32>, vector<2x32xf32>, vector<2x32xf32> -> vector<2x128xf32>
    %268 = tpu.concatenate %85, %236, %235, %86 in 1 : vector<2x32xf32>, vector<2x32xf32>, vector<2x32xf32>, vector<2x32xf32> -> vector<2x128xf32>
    %269 = tpu.concatenate %115, %206, %205, %116 in 1 : vector<2x32xf32>, vector<2x32xf32>, vector<2x32xf32>, vector<2x32xf32> -> vector<2x128xf32>
    %270 = tpu.concatenate %145, %176, %175, %146 in 1 : vector<2x32xf32>, vector<2x32xf32>, vector<2x32xf32>, vector<2x32xf32> -> vector<2x128xf32>
    %271 = tpu.concatenate %175, %146, %145, %176 in 1 : vector<2x32xf32>, vector<2x32xf32>, vector<2x32xf32>, vector<2x32xf32> -> vector<2x128xf32>
    %272 = tpu.concatenate %205, %116, %115, %206 in 1 : vector<2x32xf32>, vector<2x32xf32>, vector<2x32xf32>, vector<2x32xf32> -> vector<2x128xf32>
    %273 = tpu.concatenate %235, %86, %85, %236 in 1 : vector<2x32xf32>, vector<2x32xf32>, vector<2x32xf32>, vector<2x32xf32> -> vector<2x128xf32>
    %274 = tpu.concatenate %265, %56, %55, %266 in 1 : vector<2x32xf32>, vector<2x32xf32>, vector<2x32xf32>, vector<2x32xf32> -> vector<2x128xf32>
    %275 = tpu.concatenate %267, %268, %269, %270, %271, %272, %273, %274 in 0 : vector<2x128xf32>, vector<2x128xf32>, vector<2x128xf32>, vector<2x128xf32>, vector<2x128xf32>, vector<2x128xf32>, vector<2x128xf32>, vector<2x128xf32> -> vector<16x128xf32>
    %c0_76 = arith.constant 0 : index
    %c0_77 = arith.constant 0 : index
    %c0_78 = arith.constant 0 : index
    %276 = vector.load %arg5[%c0_76, %c0_77, %c0_78] : memref<3x128x64xf32, #tpu.memory_space<vmem>>, vector<1x128x64xf32>
    %277 = vector.shape_cast %276 : vector<1x128x64xf32> to vector<128x64xf32>
    %cst_79 = arith.constant dense<0.000000e+00> : vector<16x64xf32>
    %278 = tpu.matmul %275, %277, %cst_79 {dimension_numbers = #tpu.dot_dimension_numbers<[1], [0], [0], [1], [0, 0, 1, 1], [], []>} : vector<16x128xf32>, vector<128x64xf32>, vector<16x64xf32> -> vector<16x64xf32>
    %c0_80 = arith.constant 0 : index
    %c0_81 = arith.constant 0 : index
    %279 = vector.load %arg7[%c0_80, %c0_81] : memref<3x64xf32, #tpu.memory_space<vmem>>, vector<1x64xf32>
    %280 = vector.broadcast %279 : vector<1x64xf32> to vector<16x64xf32>
    %281 = arith.addf %278, %280 : vector<16x64xf32>
    %c1_82 = arith.constant 1 : index
    %c0_83 = arith.constant 0 : index
    %c0_84 = arith.constant 0 : index
    %282 = vector.load %arg5[%c1_82, %c0_83, %c0_84] : memref<3x128x64xf32, #tpu.memory_space<vmem>>, vector<1x128x64xf32>
    %283 = vector.shape_cast %282 : vector<1x128x64xf32> to vector<128x64xf32>
    %cst_85 = arith.constant dense<0.000000e+00> : vector<16x64xf32>
    %284 = tpu.matmul %275, %283, %cst_85 {dimension_numbers = #tpu.dot_dimension_numbers<[1], [0], [0], [1], [0, 0, 1, 1], [], []>} : vector<16x128xf32>, vector<128x64xf32>, vector<16x64xf32> -> vector<16x64xf32>
    %c1_86 = arith.constant 1 : index
    %c0_87 = arith.constant 0 : index
    %285 = vector.load %arg7[%c1_86, %c0_87] : memref<3x64xf32, #tpu.memory_space<vmem>>, vector<1x64xf32>
    %286 = vector.broadcast %285 : vector<1x64xf32> to vector<16x64xf32>
    %287 = arith.addf %284, %286 : vector<16x64xf32>
    %c2_88 = arith.constant 2 : index
    %c0_89 = arith.constant 0 : index
    %c0_90 = arith.constant 0 : index
    %288 = vector.load %arg5[%c2_88, %c0_89, %c0_90] : memref<3x128x64xf32, #tpu.memory_space<vmem>>, vector<1x128x64xf32>
    %289 = vector.shape_cast %288 : vector<1x128x64xf32> to vector<128x64xf32>
    %cst_91 = arith.constant dense<0.000000e+00> : vector<16x64xf32>
    %290 = tpu.matmul %275, %289, %cst_91 {dimension_numbers = #tpu.dot_dimension_numbers<[1], [0], [0], [1], [0, 0, 1, 1], [], []>} : vector<16x128xf32>, vector<128x64xf32>, vector<16x64xf32> -> vector<16x64xf32>
    %c2_92 = arith.constant 2 : index
    %c0_93 = arith.constant 0 : index
    %291 = vector.load %arg7[%c2_92, %c0_93] : memref<3x64xf32, #tpu.memory_space<vmem>>, vector<1x64xf32>
    %292 = vector.broadcast %291 : vector<1x64xf32> to vector<16x64xf32>
    %293 = arith.addf %290, %292 : vector<16x64xf32>
    %c0_94 = arith.constant 0 : index
    %c0_95 = arith.constant 0 : index
    %c0_96 = arith.constant 0 : index
    %294 = vector.load %arg6[%c0_94, %c0_95, %c0_96] : memref<3x64x64xf32, #tpu.memory_space<vmem>>, vector<1x64x64xf32>
    %295 = vector.shape_cast %294 : vector<1x64x64xf32> to vector<64x64xf32>
    %c1_97 = arith.constant 1 : index
    %c0_98 = arith.constant 0 : index
    %c0_99 = arith.constant 0 : index
    %296 = vector.load %arg6[%c1_97, %c0_98, %c0_99] : memref<3x64x64xf32, #tpu.memory_space<vmem>>, vector<1x64x64xf32>
    %297 = vector.shape_cast %296 : vector<1x64x64xf32> to vector<64x64xf32>
    %c2_100 = arith.constant 2 : index
    %c0_101 = arith.constant 0 : index
    %c0_102 = arith.constant 0 : index
    %298 = vector.load %arg6[%c2_100, %c0_101, %c0_102] : memref<3x64x64xf32, #tpu.memory_space<vmem>>, vector<1x64x64xf32>
    %299 = vector.shape_cast %298 : vector<1x64x64xf32> to vector<64x64xf32>
    %c0_103 = arith.constant 0 : index
    %c0_104 = arith.constant 0 : index
    %300 = vector.load %arg8[%c0_103, %c0_104] : memref<1x64xf32, #tpu.memory_space<vmem>>, vector<1x64xf32>
    %cst_105 = arith.constant 0.000000e+00 : f32
    %301 = vector.broadcast %cst_105 : f32 to vector<2x64xf32>
    %302 = vector.extract_strided_slice %281 {offsets = [0, 0], sizes = [2, 64], strides = [1, 1]} : vector<16x64xf32> to vector<2x64xf32>
    %303 = vector.extract_strided_slice %287 {offsets = [0, 0], sizes = [2, 64], strides = [1, 1]} : vector<16x64xf32> to vector<2x64xf32>
    %304 = vector.extract_strided_slice %293 {offsets = [0, 0], sizes = [2, 64], strides = [1, 1]} : vector<16x64xf32> to vector<2x64xf32>
    %cst_106 = arith.constant dense<0.000000e+00> : vector<2x64xf32>
    %305 = tpu.matmul %301, %295, %cst_106 {dimension_numbers = #tpu.dot_dimension_numbers<[1], [0], [0], [1], [0, 0, 1, 1], [], []>} : vector<2x64xf32>, vector<64x64xf32>, vector<2x64xf32> -> vector<2x64xf32>
    %306 = arith.addf %302, %305 : vector<2x64xf32>
    %307 = arith.negf %306 : vector<2x64xf32>
    %308 = math.exp %307 : vector<2x64xf32>
    %cst_107 = arith.constant 1.000000e+00 : f32
    %309 = vector.broadcast %cst_107 : f32 to vector<2x64xf32>
    %310 = arith.addf %309, %308 : vector<2x64xf32>
    %311 = arith.divf %309, %310 : vector<2x64xf32>
    %cst_108 = arith.constant dense<0.000000e+00> : vector<2x64xf32>
    %312 = tpu.matmul %301, %297, %cst_108 {dimension_numbers = #tpu.dot_dimension_numbers<[1], [0], [0], [1], [0, 0, 1, 1], [], []>} : vector<2x64xf32>, vector<64x64xf32>, vector<2x64xf32> -> vector<2x64xf32>
    %313 = arith.addf %303, %312 : vector<2x64xf32>
    %314 = arith.negf %313 : vector<2x64xf32>
    %315 = math.exp %314 : vector<2x64xf32>
    %cst_109 = arith.constant 1.000000e+00 : f32
    %316 = vector.broadcast %cst_109 : f32 to vector<2x64xf32>
    %317 = arith.addf %316, %315 : vector<2x64xf32>
    %318 = arith.divf %316, %317 : vector<2x64xf32>
    %cst_110 = arith.constant dense<0.000000e+00> : vector<2x64xf32>
    %319 = tpu.matmul %301, %299, %cst_110 {dimension_numbers = #tpu.dot_dimension_numbers<[1], [0], [0], [1], [0, 0, 1, 1], [], []>} : vector<2x64xf32>, vector<64x64xf32>, vector<2x64xf32> -> vector<2x64xf32>
    %320 = vector.broadcast %300 : vector<1x64xf32> to vector<2x64xf32>
    %321 = arith.addf %319, %320 : vector<2x64xf32>
    %322 = arith.mulf %311, %321 : vector<2x64xf32>
    %323 = arith.addf %304, %322 : vector<2x64xf32>
    %324 = math.tanh %323 : vector<2x64xf32>
    %cst_111 = arith.constant 1.000000e+00 : f32
    %325 = vector.broadcast %cst_111 : f32 to vector<2x64xf32>
    %326 = arith.subf %325, %318 : vector<2x64xf32>
    %327 = arith.mulf %326, %324 : vector<2x64xf32>
    %328 = arith.mulf %318, %301 : vector<2x64xf32>
    %329 = arith.addf %327, %328 : vector<2x64xf32>
    %330 = vector.extract_strided_slice %281 {offsets = [2, 0], sizes = [2, 64], strides = [1, 1]} : vector<16x64xf32> to vector<2x64xf32>
    %331 = vector.extract_strided_slice %287 {offsets = [2, 0], sizes = [2, 64], strides = [1, 1]} : vector<16x64xf32> to vector<2x64xf32>
    %332 = vector.extract_strided_slice %293 {offsets = [2, 0], sizes = [2, 64], strides = [1, 1]} : vector<16x64xf32> to vector<2x64xf32>
    %cst_112 = arith.constant dense<0.000000e+00> : vector<2x64xf32>
    %333 = tpu.matmul %329, %295, %cst_112 {dimension_numbers = #tpu.dot_dimension_numbers<[1], [0], [0], [1], [0, 0, 1, 1], [], []>} : vector<2x64xf32>, vector<64x64xf32>, vector<2x64xf32> -> vector<2x64xf32>
    %334 = arith.addf %330, %333 : vector<2x64xf32>
    %335 = arith.negf %334 : vector<2x64xf32>
    %336 = math.exp %335 : vector<2x64xf32>
    %cst_113 = arith.constant 1.000000e+00 : f32
    %337 = vector.broadcast %cst_113 : f32 to vector<2x64xf32>
    %338 = arith.addf %337, %336 : vector<2x64xf32>
    %339 = arith.divf %337, %338 : vector<2x64xf32>
    %cst_114 = arith.constant dense<0.000000e+00> : vector<2x64xf32>
    %340 = tpu.matmul %329, %297, %cst_114 {dimension_numbers = #tpu.dot_dimension_numbers<[1], [0], [0], [1], [0, 0, 1, 1], [], []>} : vector<2x64xf32>, vector<64x64xf32>, vector<2x64xf32> -> vector<2x64xf32>
    %341 = arith.addf %331, %340 : vector<2x64xf32>
    %342 = arith.negf %341 : vector<2x64xf32>
    %343 = math.exp %342 : vector<2x64xf32>
    %cst_115 = arith.constant 1.000000e+00 : f32
    %344 = vector.broadcast %cst_115 : f32 to vector<2x64xf32>
    %345 = arith.addf %344, %343 : vector<2x64xf32>
    %346 = arith.divf %344, %345 : vector<2x64xf32>
    %cst_116 = arith.constant dense<0.000000e+00> : vector<2x64xf32>
    %347 = tpu.matmul %329, %299, %cst_116 {dimension_numbers = #tpu.dot_dimension_numbers<[1], [0], [0], [1], [0, 0, 1, 1], [], []>} : vector<2x64xf32>, vector<64x64xf32>, vector<2x64xf32> -> vector<2x64xf32>
    %348 = vector.broadcast %300 : vector<1x64xf32> to vector<2x64xf32>
    %349 = arith.addf %347, %348 : vector<2x64xf32>
    %350 = arith.mulf %339, %349 : vector<2x64xf32>
    %351 = arith.addf %332, %350 : vector<2x64xf32>
    %352 = math.tanh %351 : vector<2x64xf32>
    %cst_117 = arith.constant 1.000000e+00 : f32
    %353 = vector.broadcast %cst_117 : f32 to vector<2x64xf32>
    %354 = arith.subf %353, %346 : vector<2x64xf32>
    %355 = arith.mulf %354, %352 : vector<2x64xf32>
    %356 = arith.mulf %346, %329 : vector<2x64xf32>
    %357 = arith.addf %355, %356 : vector<2x64xf32>
    %358 = vector.extract_strided_slice %281 {offsets = [4, 0], sizes = [2, 64], strides = [1, 1]} : vector<16x64xf32> to vector<2x64xf32>
    %359 = vector.extract_strided_slice %287 {offsets = [4, 0], sizes = [2, 64], strides = [1, 1]} : vector<16x64xf32> to vector<2x64xf32>
    %360 = vector.extract_strided_slice %293 {offsets = [4, 0], sizes = [2, 64], strides = [1, 1]} : vector<16x64xf32> to vector<2x64xf32>
    %cst_118 = arith.constant dense<0.000000e+00> : vector<2x64xf32>
    %361 = tpu.matmul %357, %295, %cst_118 {dimension_numbers = #tpu.dot_dimension_numbers<[1], [0], [0], [1], [0, 0, 1, 1], [], []>} : vector<2x64xf32>, vector<64x64xf32>, vector<2x64xf32> -> vector<2x64xf32>
    %362 = arith.addf %358, %361 : vector<2x64xf32>
    %363 = arith.negf %362 : vector<2x64xf32>
    %364 = math.exp %363 : vector<2x64xf32>
    %cst_119 = arith.constant 1.000000e+00 : f32
    %365 = vector.broadcast %cst_119 : f32 to vector<2x64xf32>
    %366 = arith.addf %365, %364 : vector<2x64xf32>
    %367 = arith.divf %365, %366 : vector<2x64xf32>
    %cst_120 = arith.constant dense<0.000000e+00> : vector<2x64xf32>
    %368 = tpu.matmul %357, %297, %cst_120 {dimension_numbers = #tpu.dot_dimension_numbers<[1], [0], [0], [1], [0, 0, 1, 1], [], []>} : vector<2x64xf32>, vector<64x64xf32>, vector<2x64xf32> -> vector<2x64xf32>
    %369 = arith.addf %359, %368 : vector<2x64xf32>
    %370 = arith.negf %369 : vector<2x64xf32>
    %371 = math.exp %370 : vector<2x64xf32>
    %cst_121 = arith.constant 1.000000e+00 : f32
    %372 = vector.broadcast %cst_121 : f32 to vector<2x64xf32>
    %373 = arith.addf %372, %371 : vector<2x64xf32>
    %374 = arith.divf %372, %373 : vector<2x64xf32>
    %cst_122 = arith.constant dense<0.000000e+00> : vector<2x64xf32>
    %375 = tpu.matmul %357, %299, %cst_122 {dimension_numbers = #tpu.dot_dimension_numbers<[1], [0], [0], [1], [0, 0, 1, 1], [], []>} : vector<2x64xf32>, vector<64x64xf32>, vector<2x64xf32> -> vector<2x64xf32>
    %376 = vector.broadcast %300 : vector<1x64xf32> to vector<2x64xf32>
    %377 = arith.addf %375, %376 : vector<2x64xf32>
    %378 = arith.mulf %367, %377 : vector<2x64xf32>
    %379 = arith.addf %360, %378 : vector<2x64xf32>
    %380 = math.tanh %379 : vector<2x64xf32>
    %cst_123 = arith.constant 1.000000e+00 : f32
    %381 = vector.broadcast %cst_123 : f32 to vector<2x64xf32>
    %382 = arith.subf %381, %374 : vector<2x64xf32>
    %383 = arith.mulf %382, %380 : vector<2x64xf32>
    %384 = arith.mulf %374, %357 : vector<2x64xf32>
    %385 = arith.addf %383, %384 : vector<2x64xf32>
    %386 = vector.extract_strided_slice %281 {offsets = [6, 0], sizes = [2, 64], strides = [1, 1]} : vector<16x64xf32> to vector<2x64xf32>
    %387 = vector.extract_strided_slice %287 {offsets = [6, 0], sizes = [2, 64], strides = [1, 1]} : vector<16x64xf32> to vector<2x64xf32>
    %388 = vector.extract_strided_slice %293 {offsets = [6, 0], sizes = [2, 64], strides = [1, 1]} : vector<16x64xf32> to vector<2x64xf32>
    %cst_124 = arith.constant dense<0.000000e+00> : vector<2x64xf32>
    %389 = tpu.matmul %385, %295, %cst_124 {dimension_numbers = #tpu.dot_dimension_numbers<[1], [0], [0], [1], [0, 0, 1, 1], [], []>} : vector<2x64xf32>, vector<64x64xf32>, vector<2x64xf32> -> vector<2x64xf32>
    %390 = arith.addf %386, %389 : vector<2x64xf32>
    %391 = arith.negf %390 : vector<2x64xf32>
    %392 = math.exp %391 : vector<2x64xf32>
    %cst_125 = arith.constant 1.000000e+00 : f32
    %393 = vector.broadcast %cst_125 : f32 to vector<2x64xf32>
    %394 = arith.addf %393, %392 : vector<2x64xf32>
    %395 = arith.divf %393, %394 : vector<2x64xf32>
    %cst_126 = arith.constant dense<0.000000e+00> : vector<2x64xf32>
    %396 = tpu.matmul %385, %297, %cst_126 {dimension_numbers = #tpu.dot_dimension_numbers<[1], [0], [0], [1], [0, 0, 1, 1], [], []>} : vector<2x64xf32>, vector<64x64xf32>, vector<2x64xf32> -> vector<2x64xf32>
    %397 = arith.addf %387, %396 : vector<2x64xf32>
    %398 = arith.negf %397 : vector<2x64xf32>
    %399 = math.exp %398 : vector<2x64xf32>
    %cst_127 = arith.constant 1.000000e+00 : f32
    %400 = vector.broadcast %cst_127 : f32 to vector<2x64xf32>
    %401 = arith.addf %400, %399 : vector<2x64xf32>
    %402 = arith.divf %400, %401 : vector<2x64xf32>
    %cst_128 = arith.constant dense<0.000000e+00> : vector<2x64xf32>
    %403 = tpu.matmul %385, %299, %cst_128 {dimension_numbers = #tpu.dot_dimension_numbers<[1], [0], [0], [1], [0, 0, 1, 1], [], []>} : vector<2x64xf32>, vector<64x64xf32>, vector<2x64xf32> -> vector<2x64xf32>
    %404 = vector.broadcast %300 : vector<1x64xf32> to vector<2x64xf32>
    %405 = arith.addf %403, %404 : vector<2x64xf32>
    %406 = arith.mulf %395, %405 : vector<2x64xf32>
    %407 = arith.addf %388, %406 : vector<2x64xf32>
    %408 = math.tanh %407 : vector<2x64xf32>
    %cst_129 = arith.constant 1.000000e+00 : f32
    %409 = vector.broadcast %cst_129 : f32 to vector<2x64xf32>
    %410 = arith.subf %409, %402 : vector<2x64xf32>
    %411 = arith.mulf %410, %408 : vector<2x64xf32>
    %412 = arith.mulf %402, %385 : vector<2x64xf32>
    %413 = arith.addf %411, %412 : vector<2x64xf32>
    %414 = vector.extract_strided_slice %281 {offsets = [8, 0], sizes = [2, 64], strides = [1, 1]} : vector<16x64xf32> to vector<2x64xf32>
    %415 = vector.extract_strided_slice %287 {offsets = [8, 0], sizes = [2, 64], strides = [1, 1]} : vector<16x64xf32> to vector<2x64xf32>
    %416 = vector.extract_strided_slice %293 {offsets = [8, 0], sizes = [2, 64], strides = [1, 1]} : vector<16x64xf32> to vector<2x64xf32>
    %cst_130 = arith.constant dense<0.000000e+00> : vector<2x64xf32>
    %417 = tpu.matmul %413, %295, %cst_130 {dimension_numbers = #tpu.dot_dimension_numbers<[1], [0], [0], [1], [0, 0, 1, 1], [], []>} : vector<2x64xf32>, vector<64x64xf32>, vector<2x64xf32> -> vector<2x64xf32>
    %418 = arith.addf %414, %417 : vector<2x64xf32>
    %419 = arith.negf %418 : vector<2x64xf32>
    %420 = math.exp %419 : vector<2x64xf32>
    %cst_131 = arith.constant 1.000000e+00 : f32
    %421 = vector.broadcast %cst_131 : f32 to vector<2x64xf32>
    %422 = arith.addf %421, %420 : vector<2x64xf32>
    %423 = arith.divf %421, %422 : vector<2x64xf32>
    %cst_132 = arith.constant dense<0.000000e+00> : vector<2x64xf32>
    %424 = tpu.matmul %413, %297, %cst_132 {dimension_numbers = #tpu.dot_dimension_numbers<[1], [0], [0], [1], [0, 0, 1, 1], [], []>} : vector<2x64xf32>, vector<64x64xf32>, vector<2x64xf32> -> vector<2x64xf32>
    %425 = arith.addf %415, %424 : vector<2x64xf32>
    %426 = arith.negf %425 : vector<2x64xf32>
    %427 = math.exp %426 : vector<2x64xf32>
    %cst_133 = arith.constant 1.000000e+00 : f32
    %428 = vector.broadcast %cst_133 : f32 to vector<2x64xf32>
    %429 = arith.addf %428, %427 : vector<2x64xf32>
    %430 = arith.divf %428, %429 : vector<2x64xf32>
    %cst_134 = arith.constant dense<0.000000e+00> : vector<2x64xf32>
    %431 = tpu.matmul %413, %299, %cst_134 {dimension_numbers = #tpu.dot_dimension_numbers<[1], [0], [0], [1], [0, 0, 1, 1], [], []>} : vector<2x64xf32>, vector<64x64xf32>, vector<2x64xf32> -> vector<2x64xf32>
    %432 = vector.broadcast %300 : vector<1x64xf32> to vector<2x64xf32>
    %433 = arith.addf %431, %432 : vector<2x64xf32>
    %434 = arith.mulf %423, %433 : vector<2x64xf32>
    %435 = arith.addf %416, %434 : vector<2x64xf32>
    %436 = math.tanh %435 : vector<2x64xf32>
    %cst_135 = arith.constant 1.000000e+00 : f32
    %437 = vector.broadcast %cst_135 : f32 to vector<2x64xf32>
    %438 = arith.subf %437, %430 : vector<2x64xf32>
    %439 = arith.mulf %438, %436 : vector<2x64xf32>
    %440 = arith.mulf %430, %413 : vector<2x64xf32>
    %441 = arith.addf %439, %440 : vector<2x64xf32>
    %442 = vector.extract_strided_slice %281 {offsets = [10, 0], sizes = [2, 64], strides = [1, 1]} : vector<16x64xf32> to vector<2x64xf32>
    %443 = vector.extract_strided_slice %287 {offsets = [10, 0], sizes = [2, 64], strides = [1, 1]} : vector<16x64xf32> to vector<2x64xf32>
    %444 = vector.extract_strided_slice %293 {offsets = [10, 0], sizes = [2, 64], strides = [1, 1]} : vector<16x64xf32> to vector<2x64xf32>
    %cst_136 = arith.constant dense<0.000000e+00> : vector<2x64xf32>
    %445 = tpu.matmul %441, %295, %cst_136 {dimension_numbers = #tpu.dot_dimension_numbers<[1], [0], [0], [1], [0, 0, 1, 1], [], []>} : vector<2x64xf32>, vector<64x64xf32>, vector<2x64xf32> -> vector<2x64xf32>
    %446 = arith.addf %442, %445 : vector<2x64xf32>
    %447 = arith.negf %446 : vector<2x64xf32>
    %448 = math.exp %447 : vector<2x64xf32>
    %cst_137 = arith.constant 1.000000e+00 : f32
    %449 = vector.broadcast %cst_137 : f32 to vector<2x64xf32>
    %450 = arith.addf %449, %448 : vector<2x64xf32>
    %451 = arith.divf %449, %450 : vector<2x64xf32>
    %cst_138 = arith.constant dense<0.000000e+00> : vector<2x64xf32>
    %452 = tpu.matmul %441, %297, %cst_138 {dimension_numbers = #tpu.dot_dimension_numbers<[1], [0], [0], [1], [0, 0, 1, 1], [], []>} : vector<2x64xf32>, vector<64x64xf32>, vector<2x64xf32> -> vector<2x64xf32>
    %453 = arith.addf %443, %452 : vector<2x64xf32>
    %454 = arith.negf %453 : vector<2x64xf32>
    %455 = math.exp %454 : vector<2x64xf32>
    %cst_139 = arith.constant 1.000000e+00 : f32
    %456 = vector.broadcast %cst_139 : f32 to vector<2x64xf32>
    %457 = arith.addf %456, %455 : vector<2x64xf32>
    %458 = arith.divf %456, %457 : vector<2x64xf32>
    %cst_140 = arith.constant dense<0.000000e+00> : vector<2x64xf32>
    %459 = tpu.matmul %441, %299, %cst_140 {dimension_numbers = #tpu.dot_dimension_numbers<[1], [0], [0], [1], [0, 0, 1, 1], [], []>} : vector<2x64xf32>, vector<64x64xf32>, vector<2x64xf32> -> vector<2x64xf32>
    %460 = vector.broadcast %300 : vector<1x64xf32> to vector<2x64xf32>
    %461 = arith.addf %459, %460 : vector<2x64xf32>
    %462 = arith.mulf %451, %461 : vector<2x64xf32>
    %463 = arith.addf %444, %462 : vector<2x64xf32>
    %464 = math.tanh %463 : vector<2x64xf32>
    %cst_141 = arith.constant 1.000000e+00 : f32
    %465 = vector.broadcast %cst_141 : f32 to vector<2x64xf32>
    %466 = arith.subf %465, %458 : vector<2x64xf32>
    %467 = arith.mulf %466, %464 : vector<2x64xf32>
    %468 = arith.mulf %458, %441 : vector<2x64xf32>
    %469 = arith.addf %467, %468 : vector<2x64xf32>
    %470 = vector.extract_strided_slice %281 {offsets = [12, 0], sizes = [2, 64], strides = [1, 1]} : vector<16x64xf32> to vector<2x64xf32>
    %471 = vector.extract_strided_slice %287 {offsets = [12, 0], sizes = [2, 64], strides = [1, 1]} : vector<16x64xf32> to vector<2x64xf32>
    %472 = vector.extract_strided_slice %293 {offsets = [12, 0], sizes = [2, 64], strides = [1, 1]} : vector<16x64xf32> to vector<2x64xf32>
    %cst_142 = arith.constant dense<0.000000e+00> : vector<2x64xf32>
    %473 = tpu.matmul %469, %295, %cst_142 {dimension_numbers = #tpu.dot_dimension_numbers<[1], [0], [0], [1], [0, 0, 1, 1], [], []>} : vector<2x64xf32>, vector<64x64xf32>, vector<2x64xf32> -> vector<2x64xf32>
    %474 = arith.addf %470, %473 : vector<2x64xf32>
    %475 = arith.negf %474 : vector<2x64xf32>
    %476 = math.exp %475 : vector<2x64xf32>
    %cst_143 = arith.constant 1.000000e+00 : f32
    %477 = vector.broadcast %cst_143 : f32 to vector<2x64xf32>
    %478 = arith.addf %477, %476 : vector<2x64xf32>
    %479 = arith.divf %477, %478 : vector<2x64xf32>
    %cst_144 = arith.constant dense<0.000000e+00> : vector<2x64xf32>
    %480 = tpu.matmul %469, %297, %cst_144 {dimension_numbers = #tpu.dot_dimension_numbers<[1], [0], [0], [1], [0, 0, 1, 1], [], []>} : vector<2x64xf32>, vector<64x64xf32>, vector<2x64xf32> -> vector<2x64xf32>
    %481 = arith.addf %471, %480 : vector<2x64xf32>
    %482 = arith.negf %481 : vector<2x64xf32>
    %483 = math.exp %482 : vector<2x64xf32>
    %cst_145 = arith.constant 1.000000e+00 : f32
    %484 = vector.broadcast %cst_145 : f32 to vector<2x64xf32>
    %485 = arith.addf %484, %483 : vector<2x64xf32>
    %486 = arith.divf %484, %485 : vector<2x64xf32>
    %cst_146 = arith.constant dense<0.000000e+00> : vector<2x64xf32>
    %487 = tpu.matmul %469, %299, %cst_146 {dimension_numbers = #tpu.dot_dimension_numbers<[1], [0], [0], [1], [0, 0, 1, 1], [], []>} : vector<2x64xf32>, vector<64x64xf32>, vector<2x64xf32> -> vector<2x64xf32>
    %488 = vector.broadcast %300 : vector<1x64xf32> to vector<2x64xf32>
    %489 = arith.addf %487, %488 : vector<2x64xf32>
    %490 = arith.mulf %479, %489 : vector<2x64xf32>
    %491 = arith.addf %472, %490 : vector<2x64xf32>
    %492 = math.tanh %491 : vector<2x64xf32>
    %cst_147 = arith.constant 1.000000e+00 : f32
    %493 = vector.broadcast %cst_147 : f32 to vector<2x64xf32>
    %494 = arith.subf %493, %486 : vector<2x64xf32>
    %495 = arith.mulf %494, %492 : vector<2x64xf32>
    %496 = arith.mulf %486, %469 : vector<2x64xf32>
    %497 = arith.addf %495, %496 : vector<2x64xf32>
    %498 = vector.extract_strided_slice %281 {offsets = [14, 0], sizes = [2, 64], strides = [1, 1]} : vector<16x64xf32> to vector<2x64xf32>
    %499 = vector.extract_strided_slice %287 {offsets = [14, 0], sizes = [2, 64], strides = [1, 1]} : vector<16x64xf32> to vector<2x64xf32>
    %500 = vector.extract_strided_slice %293 {offsets = [14, 0], sizes = [2, 64], strides = [1, 1]} : vector<16x64xf32> to vector<2x64xf32>
    %cst_148 = arith.constant dense<0.000000e+00> : vector<2x64xf32>
    %501 = tpu.matmul %497, %295, %cst_148 {dimension_numbers = #tpu.dot_dimension_numbers<[1], [0], [0], [1], [0, 0, 1, 1], [], []>} : vector<2x64xf32>, vector<64x64xf32>, vector<2x64xf32> -> vector<2x64xf32>
    %502 = arith.addf %498, %501 : vector<2x64xf32>
    %503 = arith.negf %502 : vector<2x64xf32>
    %504 = math.exp %503 : vector<2x64xf32>
    %cst_149 = arith.constant 1.000000e+00 : f32
    %505 = vector.broadcast %cst_149 : f32 to vector<2x64xf32>
    %506 = arith.addf %505, %504 : vector<2x64xf32>
    %507 = arith.divf %505, %506 : vector<2x64xf32>
    %cst_150 = arith.constant dense<0.000000e+00> : vector<2x64xf32>
    %508 = tpu.matmul %497, %297, %cst_150 {dimension_numbers = #tpu.dot_dimension_numbers<[1], [0], [0], [1], [0, 0, 1, 1], [], []>} : vector<2x64xf32>, vector<64x64xf32>, vector<2x64xf32> -> vector<2x64xf32>
    %509 = arith.addf %499, %508 : vector<2x64xf32>
    %510 = arith.negf %509 : vector<2x64xf32>
    %511 = math.exp %510 : vector<2x64xf32>
    %cst_151 = arith.constant 1.000000e+00 : f32
    %512 = vector.broadcast %cst_151 : f32 to vector<2x64xf32>
    %513 = arith.addf %512, %511 : vector<2x64xf32>
    %514 = arith.divf %512, %513 : vector<2x64xf32>
    %cst_152 = arith.constant dense<0.000000e+00> : vector<2x64xf32>
    %515 = tpu.matmul %497, %299, %cst_152 {dimension_numbers = #tpu.dot_dimension_numbers<[1], [0], [0], [1], [0, 0, 1, 1], [], []>} : vector<2x64xf32>, vector<64x64xf32>, vector<2x64xf32> -> vector<2x64xf32>
    %516 = vector.broadcast %300 : vector<1x64xf32> to vector<2x64xf32>
    %517 = arith.addf %515, %516 : vector<2x64xf32>
    %518 = arith.mulf %507, %517 : vector<2x64xf32>
    %519 = arith.addf %500, %518 : vector<2x64xf32>
    %520 = math.tanh %519 : vector<2x64xf32>
    %cst_153 = arith.constant 1.000000e+00 : f32
    %521 = vector.broadcast %cst_153 : f32 to vector<2x64xf32>
    %522 = arith.subf %521, %514 : vector<2x64xf32>
    %523 = arith.mulf %522, %520 : vector<2x64xf32>
    %524 = arith.mulf %514, %497 : vector<2x64xf32>
    %525 = arith.addf %523, %524 : vector<2x64xf32>
    %c0_154 = arith.constant 0 : index
    %c0_155 = arith.constant 0 : index
    %526 = vector.load %arg9[%c0_154, %c0_155] : memref<64x2xf32, #tpu.memory_space<vmem>>, vector<64x2xf32>
    %cst_156 = arith.constant dense<0.000000e+00> : vector<2x2xf32>
    %527 = tpu.matmul %525, %526, %cst_156 {dimension_numbers = #tpu.dot_dimension_numbers<[1], [0], [0], [1], [0, 0, 1, 1], [], []>} : vector<2x64xf32>, vector<64x2xf32>, vector<2x2xf32> -> vector<2x2xf32>
    %c0_157 = arith.constant 0 : index
    %c0_158 = arith.constant 0 : index
    %528 = vector.load %arg10[%c0_157, %c0_158] : memref<1x2xf32, #tpu.memory_space<vmem>>, vector<1x2xf32>
    %529 = vector.broadcast %528 : vector<1x2xf32> to vector<2x2xf32>
    %530 = arith.addf %527, %529 : vector<2x2xf32>
    %c0_159 = arith.constant 0 : index
    %c0_160 = arith.constant 0 : index
    %531 = vector.load %arg11[%c0_159, %c0_160] : memref<2x2xf32, #tpu.memory_space<vmem>>, vector<2x2xf32>
    tpu.vector_store %arg11[%c0_159, %c0_160], %530 {strides = array<i32>} : memref<2x2xf32, #tpu.memory_space<vmem>>, vector<2x2xf32>,
    return
  }
}

</mosaic_0001>

<llo_original>
// kernel: sentiment_forward.1
$region0: #{sentiment_forward.1}
  #allocation0 [shape = 'u32[]', space=smem, size = 0x4, offset = 0x4, fixed_abs, tag = 'smem constant byte address 0x4 - core index']
  #allocation1 [shape = 'u32[72,128]{1,0:T(1,128)}', space=vmem, size = 0x9000, scoped, tag = 'internal scratch']
  %s0 = inlined_call_operand.vmem [shape: f32[16,64], index: 0, kind: input, shape index: {}]
  %s1 = inlined_call_operand.vmem [shape: f32[3,64,64], index: 1, kind: input, shape index: {}]
  %s2 = inlined_call_operand.vmem [shape: f32[3,64,64], index: 2, kind: input, shape index: {}]
  %s3 = inlined_call_operand.vmem [shape: f32[3,64], index: 3, kind: input, shape index: {}]
  %s4 = inlined_call_operand.vmem [shape: f32[1,64], index: 4, kind: input, shape index: {}]
  %s5 = inlined_call_operand.vmem [shape: f32[3,128,64], index: 5, kind: input, shape index: {}]
  %s6 = inlined_call_operand.vmem [shape: f32[3,64,64], index: 6, kind: input, shape index: {}]
  %s7 = inlined_call_operand.vmem [shape: f32[3,64], index: 7, kind: input, shape index: {}]
  %s8 = inlined_call_operand.vmem [shape: f32[1,64], index: 8, kind: input, shape index: {}]
  %s9 = inlined_call_operand.vmem [shape: f32[64,2], index: 9, kind: input, shape index: {}]
  %s10 = inlined_call_operand.vmem [shape: f32[1,2], index: 10, kind: input, shape index: {}]
  %s11 = inlined_call_operand.hbm [shape: f32[2,2], index: 11, kind: output, shape index: {}]
  %s12 = sld [smem:[#allocation0]]
  $region54: #{sentiment_forward.1} parent=0
    _
  %s14 = ssub.s32 1, %s12
  %s15 = scalar_select 0, %s14, %s12
  $region1: #{sentiment_forward.1} parent=0
    #allocation2 [shape = 'u8[1024]{0}', space=vmem, size = 0x400, scoped, tag = 'output window, operand 0, single buffered']
    #allocation3 [shape = 's32[1]{0}', space=sflag, size = 0x4, scoped, tag = 'scoped memory for sentiment_forward.1']
    %16 = vsyncpa [#allocation3], 0
    // Predicated region
    $region2: #{sentiment_forward.1} parent=1 // pred_check
      _
    $region3: #{sentiment_forward.1} parent=1 // pred_check_branch
      %18 = sbr.rel (0) target = $region5
    $region4: #{sentiment_forward.1} parent=1 // pred_region
      _
    $region5: #{sentiment_forward.1} parent=1 // pred_fallthru
      _
    // Predicated region
    $region6: #{sentiment_forward.1} parent=1 // pred_check
      _
    $region7: #{sentiment_forward.1} parent=1 // pred_check_branch
      %20 = sbr.rel (0) target = $region9
    $region8: #{sentiment_forward.1} parent=1 // pred_region
      _
    $region9: #{sentiment_forward.1} parent=1 // pred_fallthru
      _
    // Predicated region
    $region10: #{sentiment_forward.1} parent=1 // pred_check
      _
    $region11: #{sentiment_forward.1} parent=1 // pred_check_branch
      %22 = sbr.rel (0) target = $region13
    $region12: #{sentiment_forward.1} parent=1 // pred_region
      _
    $region13: #{sentiment_forward.1} parent=1 // pred_fallthru
      _
    // Predicated region
    $region14: #{sentiment_forward.1} parent=1 // pred_check
      _
    $region15: #{sentiment_forward.1} parent=1 // pred_check_branch
      %24 = sbr.rel (0) target = $region17
    $region16: #{sentiment_forward.1} parent=1 // pred_region
      _
    $region17: #{sentiment_forward.1} parent=1 // pred_fallthru
      _
    // Predicated region
    $region18: #{sentiment_forward.1} parent=1 // pred_check
      _
    $region19: #{sentiment_forward.1} parent=1 // pred_check_branch
      %26 = sbr.rel (0) target = $region21
    $region20: #{sentiment_forward.1} parent=1 // pred_region
      _
    $region21: #{sentiment_forward.1} parent=1 // pred_fallthru
      _
    // Predicated region
    $region22: #{sentiment_forward.1} parent=1 // pred_check
      _
    $region23: #{sentiment_forward.1} parent=1 // pred_check_branch
      %28 = sbr.rel (0) target = $region25
    $region24: #{sentiment_forward.1} parent=1 // pred_region
      _
    $region25: #{sentiment_forward.1} parent=1 // pred_fallthru
      _
    // Predicated region
    $region26: #{sentiment_forward.1} parent=1 // pred_check
      _
    $region27: #{sentiment_forward.1} parent=1 // pred_check_branch
      %30 = sbr.rel (0) target = $region29
    $region28: #{sentiment_forward.1} parent=1 // pred_region
      _
    $region29: #{sentiment_forward.1} parent=1 // pred_fallthru
      _
    // Predicated region
    $region30: #{sentiment_forward.1} parent=1 // pred_check
      _
    $region31: #{sentiment_forward.1} parent=1 // pred_check_branch
      %32 = sbr.rel (0) target = $region33
    $region32: #{sentiment_forward.1} parent=1 // pred_region
      _
    $region33: #{sentiment_forward.1} parent=1 // pred_fallthru
      _
    // Predicated region
    $region34: #{sentiment_forward.1} parent=1 // pred_check
      _
    $region35: #{sentiment_forward.1} parent=1 // pred_check_branch
      %34 = sbr.rel (0) target = $region37
    $region36: #{sentiment_forward.1} parent=1 // pred_region
      _
    $region37: #{sentiment_forward.1} parent=1 // pred_fallthru
      _
    // Predicated region
    $region38: #{sentiment_forward.1} parent=1 // pred_check
      _
    $region39: #{sentiment_forward.1} parent=1 // pred_check_branch
      %36 = sbr.rel (0) target = $region41
    $region40: #{sentiment_forward.1} parent=1 // pred_region
      _
    $region41: #{sentiment_forward.1} parent=1 // pred_fallthru
      _
    // Predicated region
    $region42: #{sentiment_forward.1} parent=1 // pred_check
      _
    $region43: #{sentiment_forward.1} parent=1 // pred_check_branch
      %38 = sbr.rel (0) target = $region45
    $region44: #{sentiment_forward.1} parent=1 // pred_region
      _
    $region45: #{sentiment_forward.1} parent=1 // pred_fallthru
      _
    %v39 = vld [vmem:[%s0] sm:$0xff]
    %v40 = vld [vmem:[%s0 + $0x8] sm:$0xff]
    %v41 = vld [vmem:[%s1] sm:$0xff]
    %v42 = vld [vmem:[%s1 + $0x8] sm:$0xff]
    %v43 = vld [vmem:[%s1 + $0x10] sm:$0xff]
    %v44 = vld [vmem:[%s1 + $0x18] sm:$0xff]
    %v45 = vld [vmem:[%s1 + $0x20] sm:$0xff]
    %v46 = vld [vmem:[%s1 + $0x28] sm:$0xff]
    %v47 = vld [vmem:[%s1 + $0x30] sm:$0xff]
    %v48 = vld [vmem:[%s1 + $0x38] sm:$0xff]
    %v49 = vld [vmem:[%s3] sm:$0x1]
    %v50 = vperm.slane %v49, 0
    %vm51 = vcmask 523264
    %v53 = vsel %vm51, %v39, 0
    %v56 = vsel %vm51, %v40, 0
    %58 = vmatpush.msra.mxu0 0.0
    %59 = vmatpush.msra.mxu0 0.0
    %60 = vmatpush.msra.mxu0 0.0
    %61 = vmatpush.msra.mxu0 0.0
    %62 = vmatpush.msra.mxu0 0.0
    %63 = vmatpush.msra.mxu0 0.0
    %64 = vmatpush.msra.mxu0 0.0
    %65 = vmatpush.msra.mxu0 0.0
    %66 = vmatpush.msra.mxu0 %v48
    %67 = vmatpush.msra.mxu0 %v47
    %68 = vmatpush.msra.mxu0 %v46
    %69 = vmatpush.msra.mxu0 %v45
    %70 = vmatpush.msra.mxu0 %v44
    %71 = vmatpush.msra.mxu0 %v43
    %72 = vmatpush.msra.mxu0 %v42
    %73 = vmatpush.msra.mxu0 %v41
    %74 = vmatmul.f32.gmra.mxu0 %v53
    %v75 = vpop.f32.mrf.mxu0
    %v76 = vadd.f32 %v50, %v75
    %77 = vmatmul.f32.gmra.mxu0 %v56
    %v78 = vpop.f32.mrf.mxu0
    %v79 = vadd.f32 %v50, %v78
    %80 = vdwg.mxu0
    %s81 = scalar_lea.vmem %s1, 64
    %v82 = vld [vmem:[%s81] sm:$0xff]
    %v83 = vld [vmem:[%s81 + $0x8] sm:$0xff]
    %v84 = vld [vmem:[%s81 + $0x10] sm:$0xff]
    %v85 = vld [vmem:[%s81 + $0x18] sm:$0xff]
    %v86 = vld [vmem:[%s81 + $0x20] sm:$0xff]
    %v87 = vld [vmem:[%s81 + $0x28] sm:$0xff]
    %v88 = vld [vmem:[%s81 + $0x30] sm:$0xff]
    %v89 = vld [vmem:[%s81 + $0x38] sm:$0xff]
    %v90 = vld [vmem:[%s3 + $0x1] sm:$0x1]
    %v91 = vperm.slane %v90, 0
    %92 = vmatpush.msra.mxu0 0.0
    %93 = vmatpush.msra.mxu0 0.0
    %94 = vmatpush.msra.mxu0 0.0
    %95 = vmatpush.msra.mxu0 0.0
    %96 = vmatpush.msra.mxu0 0.0
    %97 = vmatpush.msra.mxu0 0.0
    %98 = vmatpush.msra.mxu0 0.0
    %99 = vmatpush.msra.mxu0 0.0
    %100 = vmatpush.msra.mxu0 %v89
    %101 = vmatpush.msra.mxu0 %v88
    %102 = vmatpush.msra.mxu0 %v87
    %103 = vmatpush.msra.mxu0 %v86
    %104 = vmatpush.msra.mxu0 %v85
    %105 = vmatpush.msra.mxu0 %v84
    %106 = vmatpush.msra.mxu0 %v83
    %107 = vmatpush.msra.mxu0 %v82
    %108 = vmatmul.f32.gmra.mxu0 %v53
    %v109 = vpop.f32.mrf.mxu0
    %v110 = vadd.f32 %v91, %v109
    %111 = vmatmul.f32.gmra.mxu0 %v56
    %v112 = vpop.f32.mrf.mxu0
    %v113 = vadd.f32 %v91, %v112
    %114 = vdwg.mxu0
    %s115 = scalar_lea.vmem %s1, 128
    %v116 = vld [vmem:[%s115] sm:$0xff]
    %v117 = vld [vmem:[%s115 + $0x8] sm:$0xff]
    %v118 = vld [vmem:[%s115 + $0x10] sm:$0xff]
    %v119 = vld [vmem:[%s115 + $0x18] sm:$0xff]
    %v120 = vld [vmem:[%s115 + $0x20] sm:$0xff]
    %v121 = vld [vmem:[%s115 + $0x28] sm:$0xff]
    %v122 = vld [vmem:[%s115 + $0x30] sm:$0xff]
    %v123 = vld [vmem:[%s115 + $0x38] sm:$0xff]
    %v124 = vld [vmem:[%s3 + $0x2] sm:$0x1]
    %v125 = vperm.slane %v124, 0
    %126 = vmatpush.msra.mxu0 0.0
    %127 = vmatpush.msra.mxu0 0.0
    %128 = vmatpush.msra.mxu0 0.0
    %129 = vmatpush.msra.mxu0 0.0
    %130 = vmatpush.msra.mxu0 0.0
    %131 = vmatpush.msra.mxu0 0.0
    %132 = vmatpush.msra.mxu0 0.0
    %133 = vmatpush.msra.mxu0 0.0
    %134 = vmatpush.msra.mxu0 %v123
    %135 = vmatpush.msra.mxu0 %v122
    %136 = vmatpush.msra.mxu0 %v121
    %137 = vmatpush.msra.mxu0 %v120
    %138 = vmatpush.msra.mxu0 %v119
    %139 = vmatpush.msra.mxu0 %v118
    %140 = vmatpush.msra.mxu0 %v117
    %141 = vmatpush.msra.mxu0 %v116
    %142 = vmatmul.f32.gmra.mxu0 %v53
    %v143 = vpop.f32.mrf.mxu0
    %v144 = vadd.f32 %v125, %v143
    %145 = vmatmul.f32.gmra.mxu0 %v56
    %v146 = vpop.f32.mrf.mxu0
    %v147 = vadd.f32 %v125, %v146
    %148 = vdwg.mxu0
    %v149 = vld [vmem:[%s2] sm:$0xff]
    %v150 = vld [vmem:[%s2 + $0x8] sm:$0xff]
    %v151 = vld [vmem:[%s2 + $0x10] sm:$0xff]
    %v152 = vld [vmem:[%s2 + $0x18] sm:$0xff]
    %v153 = vld [vmem:[%s2 + $0x20] sm:$0xff]
    %v154 = vld [vmem:[%s2 + $0x28] sm:$0xff]
    %v155 = vld [vmem:[%s2 + $0x30] sm:$0xff]
    %v156 = vld [vmem:[%s2 + $0x38] sm:$0xff]
    %s157 = scalar_lea.vmem %s2, 64
    %v158 = vld [vmem:[%s157] sm:$0xff]
    %v159 = vld [vmem:[%s157 + $0x8] sm:$0xff]
    %v160 = vld [vmem:[%s157 + $0x10] sm:$0xff]
    %v161 = vld [vmem:[%s157 + $0x18] sm:$0xff]
    %v162 = vld [vmem:[%s157 + $0x20] sm:$0xff]
    %v163 = vld [vmem:[%s157 + $0x28] sm:$0xff]
    %v164 = vld [vmem:[%s157 + $0x30] sm:$0xff]
    %v165 = vld [vmem:[%s157 + $0x38] sm:$0xff]
    %s166 = scalar_lea.vmem %s2, 128
    %v167 = vld [vmem:[%s166] sm:$0xff]
    %v168 = vld [vmem:[%s166 + $0x8] sm:$0xff]
    %v169 = vld [vmem:[%s166 + $0x10] sm:$0xff]
    %v170 = vld [vmem:[%s166 + $0x18] sm:$0xff]
    %v171 = vld [vmem:[%s166 + $0x20] sm:$0xff]
    %v172 = vld [vmem:[%s166 + $0x28] sm:$0xff]
    %v173 = vld [vmem:[%s166 + $0x30] sm:$0xff]
    %v174 = vld [vmem:[%s166 + $0x38] sm:$0xff]
    %v175 = vld [vmem:[%s4] sm:$0x1]
    %v177 = vsel %vm51, 0.0, 0
    %179 = vmatpush.msra.mxu0 0.0
    %180 = vmatpush.msra.mxu0 0.0
    %181 = vmatpush.msra.mxu0 0.0
    %182 = vmatpush.msra.mxu0 0.0
    %183 = vmatpush.msra.mxu0 0.0
    %184 = vmatpush.msra.mxu0 0.0
    %185 = vmatpush.msra.mxu0 0.0
    %186 = vmatpush.msra.mxu0 0.0
    %187 = vmatpush.msra.mxu0 %v156
    %188 = vmatpush.msra.mxu0 %v155
    %189 = vmatpush.msra.mxu0 %v154
    %190 = vmatpush.msra.mxu0 %v153
    %191 = vmatpush.msra.mxu0 %v152
    %192 = vmatpush.msra.mxu0 %v151
    %193 = vmatpush.msra.mxu0 %v150
    %194 = vmatpush.msra.mxu0 %v149
    %195 = vmatmul.f32.gmra.mxu0 %v177
    %v196 = vpop.f32.mrf.mxu0
    %v197 = vadd.f32 0.0, %v196
    %198 = vdwg.mxu0
    %v199 = vadd.f32 %v76, %v197
    %v200 = vxor.u32 %v199, 2147483648
    %v201 = vmul.f32 %v200, 1.442695
    %v202 = vpow.pop %v201
    %v203 = vadd.f32 %v202, 1.0
    %v204 = vrcp.pop %v203
    %v205 = vmul.f32 %v203, %v204
    %v206 = vsub.f32 1.0, %v205
    %v207 = vmul.f32 %v204, %v206
    %v208 = vadd.f32 %v204, %v207
    %vm209 = vweird.f32 %v203
    %vm210 = vweird.f32 %v204
    %vm211 = vmor %vm209, %vm210
    %v212 = vsel %vm211, %v204, %v208
    %v213 = vand.u32 2147483647, %v203
    %vm214 = vcmp.eq.f32.partialorder %v213, 8.507059e+37
    %v215 = vand.u32 %v203, 2147483648
    %v216 = vor.u32 1.1754944e-38, %v215
    %v217 = vsel %vm214, %v216, %v212
    %v218 = vmul.f32 1.0, %v217
    %219 = vmatpush.msra.mxu0 0.0
    %220 = vmatpush.msra.mxu0 0.0
    %221 = vmatpush.msra.mxu0 0.0
    %222 = vmatpush.msra.mxu0 0.0
    %223 = vmatpush.msra.mxu0 0.0
    %224 = vmatpush.msra.mxu0 0.0
    %225 = vmatpush.msra.mxu0 0.0
    %226 = vmatpush.msra.mxu0 0.0
    %227 = vmatpush.msra.mxu0 %v165
    %228 = vmatpush.msra.mxu0 %v164
    %229 = vmatpush.msra.mxu0 %v163
    %230 = vmatpush.msra.mxu0 %v162
    %231 = vmatpush.msra.mxu0 %v161
    %232 = vmatpush.msra.mxu0 %v160
    %233 = vmatpush.msra.mxu0 %v159
    %234 = vmatpush.msra.mxu0 %v158
    %235 = vmatmul.f32.gmra.mxu0 %v177
    %v236 = vpop.f32.mrf.mxu0
    %v237 = vadd.f32 0.0, %v236
    %238 = vdwg.mxu0
    %v239 = vadd.f32 %v110, %v237
    %v240 = vxor.u32 %v239, 2147483648
    %v241 = vmul.f32 %v240, 1.442695
    %v242 = vpow.pop %v241
    %v243 = vadd.f32 %v242, 1.0
    %v244 = vrcp.pop %v243
    %v245 = vmul.f32 %v243, %v244
    %v246 = vsub.f32 1.0, %v245
    %v247 = vmul.f32 %v244, %v246
    %v248 = vadd.f32 %v244, %v247
    %vm249 = vweird.f32 %v243
    %vm250 = vweird.f32 %v244
    %vm251 = vmor %vm249, %vm250
    %v252 = vsel %vm251, %v244, %v248
    %v253 = vand.u32 2147483647, %v243
    %vm254 = vcmp.eq.f32.partialorder %v253, 8.507059e+37
    %v255 = vand.u32 %v243, 2147483648
    %v256 = vor.u32 1.1754944e-38, %v255
    %v257 = vsel %vm254, %v256, %v252
    %v258 = vmul.f32 1.0, %v257
    %v260 = vperm.slane %v175, 0
    %262 = vmatpush.msra.mxu0 0.0
    %263 = vmatpush.msra.mxu0 0.0
    %264 = vmatpush.msra.mxu0 0.0
    %265 = vmatpush.msra.mxu0 0.0
    %266 = vmatpush.msra.mxu0 0.0
    %267 = vmatpush.msra.mxu0 0.0
    %268 = vmatpush.msra.mxu0 0.0
    %269 = vmatpush.msra.mxu0 0.0
    %270 = vmatpush.msra.mxu0 %v174
    %271 = vmatpush.msra.mxu0 %v173
    %272 = vmatpush.msra.mxu0 %v172
    %273 = vmatpush.msra.mxu0 %v171
    %274 = vmatpush.msra.mxu0 %v170
    %275 = vmatpush.msra.mxu0 %v169
    %276 = vmatpush.msra.mxu0 %v168
    %277 = vmatpush.msra.mxu0 %v167
    %278 = vmatmul.f32.gmra.mxu0 %v177
    %v279 = vpop.f32.mrf.mxu0
    %v280 = vadd.f32 %v260, %v279
    %281 = vdwg.mxu0
    %v282 = vmul.f32 %v218, %v280
    %v283 = vadd.f32 %v144, %v282
    %v284 = vtanh.pop %v283
    %v285 = vsub.f32 1.0, %v258
    %v286 = vmul.f32 %v285, %v284
    %v287 = vmul.f32 %v258, 0.0
    %v288 = vadd.f32 %v286, %v287
    %v290 = vsel %vm51, %v288, 0
    %292 = vmatpush.msra.mxu0 0.0
    %293 = vmatpush.msra.mxu0 0.0
    %294 = vmatpush.msra.mxu0 0.0
    %295 = vmatpush.msra.mxu0 0.0
    %296 = vmatpush.msra.mxu0 0.0
    %297 = vmatpush.msra.mxu0 0.0
    %298 = vmatpush.msra.mxu0 0.0
    %299 = vmatpush.msra.mxu0 0.0
    %300 = vmatpush.msra.mxu0 %v156
    %301 = vmatpush.msra.mxu0 %v155
    %302 = vmatpush.msra.mxu0 %v154
    %303 = vmatpush.msra.mxu0 %v153
    %304 = vmatpush.msra.mxu0 %v152
    %305 = vmatpush.msra.mxu0 %v151
    %306 = vmatpush.msra.mxu0 %v150
    %307 = vmatpush.msra.mxu0 %v149
    %308 = vmatmul.f32.gmra.mxu0 %v290
    %v309 = vpop.f32.mrf.mxu0
    %v310 = vadd.f32 0.0, %v309
    %311 = vdwg.mxu0
    %v313 = vrot.slane %v310, 6
    %v315 = vadd.f32 %v76, %v313
    %v316 = vxor.u32 %v315, 2147483648
    %v317 = vmul.f32 %v316, 1.442695
    %v318 = vpow.pop %v317
    %v319 = vadd.f32 %v318, 1.0
    %v320 = vrcp.pop %v319
    %v321 = vmul.f32 %v319, %v320
    %v322 = vsub.f32 1.0, %v321
    %v323 = vmul.f32 %v320, %v322
    %v324 = vadd.f32 %v320, %v323
    %vm325 = vweird.f32 %v319
    %vm326 = vweird.f32 %v320
    %vm327 = vmor %vm325, %vm326
    %v328 = vsel %vm327, %v320, %v324
    %v329 = vand.u32 2147483647, %v319
    %vm330 = vcmp.eq.f32.partialorder %v329, 8.507059e+37
    %v331 = vand.u32 %v319, 2147483648
    %v332 = vor.u32 1.1754944e-38, %v331
    %v333 = vsel %vm330, %v332, %v328
    %v334 = vmul.f32 1.0, %v333
    %335 = vmatpush.msra.mxu0 0.0
    %336 = vmatpush.msra.mxu0 0.0
    %337 = vmatpush.msra.mxu0 0.0
    %338 = vmatpush.msra.mxu0 0.0
    %339 = vmatpush.msra.mxu0 0.0
    %340 = vmatpush.msra.mxu0 0.0
    %341 = vmatpush.msra.mxu0 0.0
    %342 = vmatpush.msra.mxu0 0.0
    %343 = vmatpush.msra.mxu0 %v165
    %344 = vmatpush.msra.mxu0 %v164
    %345 = vmatpush.msra.mxu0 %v163
    %346 = vmatpush.msra.mxu0 %v162
    %347 = vmatpush.msra.mxu0 %v161
    %348 = vmatpush.msra.mxu0 %v160
    %349 = vmatpush.msra.mxu0 %v159
    %350 = vmatpush.msra.mxu0 %v158
    %351 = vmatmul.f32.gmra.mxu0 %v290
    %v352 = vpop.f32.mrf.mxu0
    %v353 = vadd.f32 0.0, %v352
    %354 = vdwg.mxu0
    %v356 = vrot.slane %v353, 6
    %v358 = vadd.f32 %v110, %v356
    %v359 = vxor.u32 %v358, 2147483648
    %v360 = vmul.f32 %v359, 1.442695
    %v361 = vpow.pop %v360
    %v362 = vadd.f32 %v361, 1.0
    %v363 = vrcp.pop %v362
    %v364 = vmul.f32 %v362, %v363
    %v365 = vsub.f32 1.0, %v364
    %v366 = vmul.f32 %v363, %v365
    %v367 = vadd.f32 %v363, %v366
    %vm368 = vweird.f32 %v362
    %vm369 = vweird.f32 %v363
    %vm370 = vmor %vm368, %vm369
    %v371 = vsel %vm370, %v363, %v367
    %v372 = vand.u32 2147483647, %v362
    %vm373 = vcmp.eq.f32.partialorder %v372, 8.507059e+37
    %v374 = vand.u32 %v362, 2147483648
    %v375 = vor.u32 1.1754944e-38, %v374
    %v376 = vsel %vm373, %v375, %v371
    %v377 = vmul.f32 1.0, %v376
    %378 = vmatpush.msra.mxu0 0.0
    %379 = vmatpush.msra.mxu0 0.0
    %380 = vmatpush.msra.mxu0 0.0
    %381 = vmatpush.msra.mxu0 0.0
    %382 = vmatpush.msra.mxu0 0.0
    %383 = vmatpush.msra.mxu0 0.0
    %384 = vmatpush.msra.mxu0 0.0
    %385 = vmatpush.msra.mxu0 0.0
    %386 = vmatpush.msra.mxu0 %v174
    %387 = vmatpush.msra.mxu0 %v173
    %388 = vmatpush.msra.mxu0 %v172
    %389 = vmatpush.msra.mxu0 %v171
    %390 = vmatpush.msra.mxu0 %v170
    %391 = vmatpush.msra.mxu0 %v169
    %392 = vmatpush.msra.mxu0 %v168
    %393 = vmatpush.msra.mxu0 %v167
    %394 = vmatmul.f32.gmra.mxu0 %v290
    %v395 = vpop.f32.mrf.mxu0
    %v396 = vadd.f32 %v260, %v395
    %397 = vdwg.mxu0
    %v399 = vrot.slane %v396, 6
    %v401 = vmul.f32 %v334, %v399
    %v402 = vadd.f32 %v144, %v401
    %v403 = vtanh.pop %v402
    %v404 = vsub.f32 1.0, %v377
    %v405 = vmul.f32 %v404, %v403
    %v406 = vrot.slane %v288, 6
    %v408 = vmul.f32 %v377, %v406
    %v409 = vadd.f32 %v405, %v408
    %v411 = vrot.slane %v409, 2
    %v412 = vsel %vm51, %v411, 0
    %414 = vmatpush.msra.mxu0 0.0
    %415 = vmatpush.msra.mxu0 0.0
    %416 = vmatpush.msra.mxu0 0.0
    %417 = vmatpush.msra.mxu0 0.0
    %418 = vmatpush.msra.mxu0 0.0
    %419 = vmatpush.msra.mxu0 0.0
    %420 = vmatpush.msra.mxu0 0.0
    %421 = vmatpush.msra.mxu0 0.0
    %422 = vmatpush.msra.mxu0 %v156
    %423 = vmatpush.msra.mxu0 %v155
    %424 = vmatpush.msra.mxu0 %v154
    %425 = vmatpush.msra.mxu0 %v153
    %426 = vmatpush.msra.mxu0 %v152
    %427 = vmatpush.msra.mxu0 %v151
    %428 = vmatpush.msra.mxu0 %v150
    %429 = vmatpush.msra.mxu0 %v149
    %430 = vmatmul.f32.gmra.mxu0 %v412
    %v431 = vpop.f32.mrf.mxu0
    %v432 = vadd.f32 0.0, %v431
    %433 = vdwg.mxu0
    %v435 = vrot.slane %v432, 4
    %v437 = vadd.f32 %v76, %v435
    %v438 = vxor.u32 %v437, 2147483648
    %v439 = vmul.f32 %v438, 1.442695
    %v440 = vpow.pop %v439
    %v441 = vadd.f32 %v440, 1.0
    %v442 = vrcp.pop %v441
    %v443 = vmul.f32 %v441, %v442
    %v444 = vsub.f32 1.0, %v443
    %v445 = vmul.f32 %v442, %v444
    %v446 = vadd.f32 %v442, %v445
    %vm447 = vweird.f32 %v441
    %vm448 = vweird.f32 %v442
    %vm449 = vmor %vm447, %vm448
    %v450 = vsel %vm449, %v442, %v446
    %v451 = vand.u32 2147483647, %v441
    %vm452 = vcmp.eq.f32.partialorder %v451, 8.507059e+37
    %v453 = vand.u32 %v441, 2147483648
    %v454 = vor.u32 1.1754944e-38, %v453
    %v455 = vsel %vm452, %v454, %v450
    %v456 = vmul.f32 1.0, %v455
    %457 = vmatpush.msra.mxu0 0.0
    %458 = vmatpush.msra.mxu0 0.0
    %459 = vmatpush.msra.mxu0 0.0
    %460 = vmatpush.msra.mxu0 0.0
    %461 = vmatpush.msra.mxu0 0.0
    %462 = vmatpush.msra.mxu0 0.0
    %463 = vmatpush.msra.mxu0 0.0
    %464 = vmatpush.msra.mxu0 0.0
    %465 = vmatpush.msra.mxu0 %v165
    %466 = vmatpush.msra.mxu0 %v164
    %467 = vmatpush.msra.mxu0 %v163
    %468 = vmatpush.msra.mxu0 %v162
    %469 = vmatpush.msra.mxu0 %v161
    %470 = vmatpush.msra.mxu0 %v160
    %471 = vmatpush.msra.mxu0 %v159
    %472 = vmatpush.msra.mxu0 %v158
    %473 = vmatmul.f32.gmra.mxu0 %v412
    %v474 = vpop.f32.mrf.mxu0
    %v475 = vadd.f32 0.0, %v474
    %476 = vdwg.mxu0
    %v478 = vrot.slane %v475, 4
    %v480 = vadd.f32 %v110, %v478
    %v481 = vxor.u32 %v480, 2147483648
    %v482 = vmul.f32 %v481, 1.442695
    %v483 = vpow.pop %v482
    %v484 = vadd.f32 %v483, 1.0
    %v485 = vrcp.pop %v484
    %v486 = vmul.f32 %v484, %v485
    %v487 = vsub.f32 1.0, %v486
    %v488 = vmul.f32 %v485, %v487
    %v489 = vadd.f32 %v485, %v488
    %vm490 = vweird.f32 %v484
    %vm491 = vweird.f32 %v485
    %vm492 = vmor %vm490, %vm491
    %v493 = vsel %vm492, %v485, %v489
    %v494 = vand.u32 2147483647, %v484
    %vm495 = vcmp.eq.f32.partialorder %v494, 8.507059e+37
    %v496 = vand.u32 %v484, 2147483648
    %v497 = vor.u32 1.1754944e-38, %v496
    %v498 = vsel %vm495, %v497, %v493
    %v499 = vmul.f32 1.0, %v498
    %500 = vmatpush.msra.mxu0 0.0
    %501 = vmatpush.msra.mxu0 0.0
    %502 = vmatpush.msra.mxu0 0.0
    %503 = vmatpush.msra.mxu0 0.0
    %504 = vmatpush.msra.mxu0 0.0
    %505 = vmatpush.msra.mxu0 0.0
    %506 = vmatpush.msra.mxu0 0.0
    %507 = vmatpush.msra.mxu0 0.0
    %508 = vmatpush.msra.mxu0 %v174
    %509 = vmatpush.msra.mxu0 %v173
    %510 = vmatpush.msra.mxu0 %v172
    %511 = vmatpush.msra.mxu0 %v171
    %512 = vmatpush.msra.mxu0 %v170
    %513 = vmatpush.msra.mxu0 %v169
    %514 = vmatpush.msra.mxu0 %v168
    %515 = vmatpush.msra.mxu0 %v167
    %516 = vmatmul.f32.gmra.mxu0 %v412
    %v517 = vpop.f32.mrf.mxu0
    %v518 = vadd.f32 %v260, %v517
    %519 = vdwg.mxu0
    %v521 = vrot.slane %v518, 4
    %v523 = vmul.f32 %v456, %v521
    %v524 = vadd.f32 %v144, %v523
    %v525 = vtanh.pop %v524
    %v526 = vsub.f32 1.0, %v499
    %v527 = vmul.f32 %v526, %v525
    %v528 = vrot.slane %v409, 6
    %v530 = vmul.f32 %v499, %v528
    %v531 = vadd.f32 %v527, %v530
    %v533 = vrot.slane %v531, 4
    %v534 = vsel %vm51, %v533, 0
    %536 = vmatpush.msra.mxu0 0.0
    %537 = vmatpush.msra.mxu0 0.0
    %538 = vmatpush.msra.mxu0 0.0
    %539 = vmatpush.msra.mxu0 0.0
    %540 = vmatpush.msra.mxu0 0.0
    %541 = vmatpush.msra.mxu0 0.0
    %542 = vmatpush.msra.mxu0 0.0
    %543 = vmatpush.msra.mxu0 0.0
    %544 = vmatpush.msra.mxu0 %v156
    %545 = vmatpush.msra.mxu0 %v155
    %546 = vmatpush.msra.mxu0 %v154
    %547 = vmatpush.msra.mxu0 %v153
    %548 = vmatpush.msra.mxu0 %v152
    %549 = vmatpush.msra.mxu0 %v151
    %550 = vmatpush.msra.mxu0 %v150
    %551 = vmatpush.msra.mxu0 %v149
    %552 = vmatmul.f32.gmra.mxu0 %v534
    %v553 = vpop.f32.mrf.mxu0
    %v554 = vadd.f32 0.0, %v553
    %555 = vdwg.mxu0
    %v557 = vrot.slane %v554, 2
    %v559 = vadd.f32 %v76, %v557
    %v560 = vxor.u32 %v559, 2147483648
    %v561 = vmul.f32 %v560, 1.442695
    %v562 = vpow.pop %v561
    %v563 = vadd.f32 %v562, 1.0
    %v564 = vrcp.pop %v563
    %v565 = vmul.f32 %v563, %v564
    %v566 = vsub.f32 1.0, %v565
    %v567 = vmul.f32 %v564, %v566
    %v568 = vadd.f32 %v564, %v567
    %vm569 = vweird.f32 %v563
    %vm570 = vweird.f32 %v564
    %vm571 = vmor %vm569, %vm570
    %v572 = vsel %vm571, %v564, %v568
    %v573 = vand.u32 2147483647, %v563
    %vm574 = vcmp.eq.f32.partialorder %v573, 8.507059e+37
    %v575 = vand.u32 %v563, 2147483648
    %v576 = vor.u32 1.1754944e-38, %v575
    %v577 = vsel %vm574, %v576, %v572
    %v578 = vmul.f32 1.0, %v577
    %579 = vmatpush.msra.mxu0 0.0
    %580 = vmatpush.msra.mxu0 0.0
    %581 = vmatpush.msra.mxu0 0.0
    %582 = vmatpush.msra.mxu0 0.0
    %583 = vmatpush.msra.mxu0 0.0
    %584 = vmatpush.msra.mxu0 0.0
    %585 = vmatpush.msra.mxu0 0.0
    %586 = vmatpush.msra.mxu0 0.0
    %587 = vmatpush.msra.mxu0 %v165
    %588 = vmatpush.msra.mxu0 %v164
    %589 = vmatpush.msra.mxu0 %v163
    %590 = vmatpush.msra.mxu0 %v162
    %591 = vmatpush.msra.mxu0 %v161
    %592 = vmatpush.msra.mxu0 %v160
    %593 = vmatpush.msra.mxu0 %v159
    %594 = vmatpush.msra.mxu0 %v158
    %595 = vmatmul.f32.gmra.mxu0 %v534
    %v596 = vpop.f32.mrf.mxu0
    %v597 = vadd.f32 0.0, %v596
    %598 = vdwg.mxu0
    %v600 = vrot.slane %v597, 2
    %v602 = vadd.f32 %v110, %v600
    %v603 = vxor.u32 %v602, 2147483648
    %v604 = vmul.f32 %v603, 1.442695
    %v605 = vpow.pop %v604
    %v606 = vadd.f32 %v605, 1.0
    %v607 = vrcp.pop %v606
    %v608 = vmul.f32 %v606, %v607
    %v609 = vsub.f32 1.0, %v608
    %v610 = vmul.f32 %v607, %v609
    %v611 = vadd.f32 %v607, %v610
    %vm612 = vweird.f32 %v606
    %vm613 = vweird.f32 %v607
    %vm614 = vmor %vm612, %vm613
    %v615 = vsel %vm614, %v607, %v611
    %v616 = vand.u32 2147483647, %v606
    %vm617 = vcmp.eq.f32.partialorder %v616, 8.507059e+37
    %v618 = vand.u32 %v606, 2147483648
    %v619 = vor.u32 1.1754944e-38, %v618
    %v620 = vsel %vm617, %v619, %v615
    %v621 = vmul.f32 1.0, %v620
    %622 = vmatpush.msra.mxu0 0.0
    %623 = vmatpush.msra.mxu0 0.0
    %624 = vmatpush.msra.mxu0 0.0
    %625 = vmatpush.msra.mxu0 0.0
    %626 = vmatpush.msra.mxu0 0.0
    %627 = vmatpush.msra.mxu0 0.0
    %628 = vmatpush.msra.mxu0 0.0
    %629 = vmatpush.msra.mxu0 0.0
    %630 = vmatpush.msra.mxu0 %v174
    %631 = vmatpush.msra.mxu0 %v173
    %632 = vmatpush.msra.mxu0 %v172
    %633 = vmatpush.msra.mxu0 %v171
    %634 = vmatpush.msra.mxu0 %v170
    %635 = vmatpush.msra.mxu0 %v169
    %636 = vmatpush.msra.mxu0 %v168
    %637 = vmatpush.msra.mxu0 %v167
    %638 = vmatmul.f32.gmra.mxu0 %v534
    %v639 = vpop.f32.mrf.mxu0
    %v640 = vadd.f32 %v260, %v639
    %641 = vdwg.mxu0
    %v643 = vrot.slane %v640, 2
    %v645 = vmul.f32 %v578, %v643
    %v646 = vadd.f32 %v144, %v645
    %v647 = vtanh.pop %v646
    %v648 = vsub.f32 1.0, %v621
    %v649 = vmul.f32 %v648, %v647
    %v650 = vrot.slane %v531, 6
    %v652 = vmul.f32 %v621, %v650
    %v653 = vadd.f32 %v649, %v652
    %v655 = vrot.slane %v653, 6
    %v656 = vsel %vm51, %v655, 0
    %658 = vmatpush.msra.mxu0 0.0
    %659 = vmatpush.msra.mxu0 0.0
    %660 = vmatpush.msra.mxu0 0.0
    %661 = vmatpush.msra.mxu0 0.0
    %662 = vmatpush.msra.mxu0 0.0
    %663 = vmatpush.msra.mxu0 0.0
    %664 = vmatpush.msra.mxu0 0.0
    %665 = vmatpush.msra.mxu0 0.0
    %666 = vmatpush.msra.mxu0 %v156
    %667 = vmatpush.msra.mxu0 %v155
    %668 = vmatpush.msra.mxu0 %v154
    %669 = vmatpush.msra.mxu0 %v153
    %670 = vmatpush.msra.mxu0 %v152
    %671 = vmatpush.msra.mxu0 %v151
    %672 = vmatpush.msra.mxu0 %v150
    %673 = vmatpush.msra.mxu0 %v149
    %674 = vmatmul.f32.gmra.mxu0 %v656
    %v675 = vpop.f32.mrf.mxu0
    %v676 = vadd.f32 0.0, %v675
    %677 = vdwg.mxu0
    %v678 = vadd.f32 %v79, %v676
    %v679 = vxor.u32 %v678, 2147483648
    %v680 = vmul.f32 %v679, 1.442695
    %v681 = vpow.pop %v680
    %v682 = vadd.f32 %v681, 1.0
    %v683 = vrcp.pop %v682
    %v684 = vmul.f32 %v682, %v683
    %v685 = vsub.f32 1.0, %v684
    %v686 = vmul.f32 %v683, %v685
    %v687 = vadd.f32 %v683, %v686
    %vm688 = vweird.f32 %v682
    %vm689 = vweird.f32 %v683
    %vm690 = vmor %vm688, %vm689
    %v691 = vsel %vm690, %v683, %v687
    %v692 = vand.u32 2147483647, %v682
    %vm693 = vcmp.eq.f32.partialorder %v692, 8.507059e+37
    %v694 = vand.u32 %v682, 2147483648
    %v695 = vor.u32 1.1754944e-38, %v694
    %v696 = vsel %vm693, %v695, %v691
    %v697 = vmul.f32 1.0, %v696
    %698 = vmatpush.msra.mxu0 0.0
    %699 = vmatpush.msra.mxu0 0.0
    %700 = vmatpush.msra.mxu0 0.0
    %701 = vmatpush.msra.mxu0 0.0
    %702 = vmatpush.msra.mxu0 0.0
    %703 = vmatpush.msra.mxu0 0.0
    %704 = vmatpush.msra.mxu0 0.0
    %705 = vmatpush.msra.mxu0 0.0
    %706 = vmatpush.msra.mxu0 %v165
    %707 = vmatpush.msra.mxu0 %v164
    %708 = vmatpush.msra.mxu0 %v163
    %709 = vmatpush.msra.mxu0 %v162
    %710 = vmatpush.msra.mxu0 %v161
    %711 = vmatpush.msra.mxu0 %v160
    %712 = vmatpush.msra.mxu0 %v159
    %713 = vmatpush.msra.mxu0 %v158
    %714 = vmatmul.f32.gmra.mxu0 %v656
    %v715 = vpop.f32.mrf.mxu0
    %v716 = vadd.f32 0.0, %v715
    %717 = vdwg.mxu0
    %v718 = vadd.f32 %v113, %v716
    %v719 = vxor.u32 %v718, 2147483648
    %v720 = vmul.f32 %v719, 1.442695
    %v721 = vpow.pop %v720
    %v722 = vadd.f32 %v721, 1.0
    %v723 = vrcp.pop %v722
    %v724 = vmul.f32 %v722, %v723
    %v725 = vsub.f32 1.0, %v724
    %v726 = vmul.f32 %v723, %v725
    %v727 = vadd.f32 %v723, %v726
    %vm728 = vweird.f32 %v722
    %vm729 = vweird.f32 %v723
    %vm730 = vmor %vm728, %vm729
    %v731 = vsel %vm730, %v723, %v727
    %v732 = vand.u32 2147483647, %v722
    %vm733 = vcmp.eq.f32.partialorder %v732, 8.507059e+37
    %v734 = vand.u32 %v722, 2147483648
    %v735 = vor.u32 1.1754944e-38, %v734
    %v736 = vsel %vm733, %v735, %v731
    %v737 = vmul.f32 1.0, %v736
    %738 = vmatpush.msra.mxu0 0.0
    %739 = vmatpush.msra.mxu0 0.0
    %740 = vmatpush.msra.mxu0 0.0
    %741 = vmatpush.msra.mxu0 0.0
    %742 = vmatpush.msra.mxu0 0.0
    %743 = vmatpush.msra.mxu0 0.0
    %744 = vmatpush.msra.mxu0 0.0
    %745 = vmatpush.msra.mxu0 0.0
    %746 = vmatpush.msra.mxu0 %v174
    %747 = vmatpush.msra.mxu0 %v173
    %748 = vmatpush.msra.mxu0 %v172
    %749 = vmatpush.msra.mxu0 %v171
    %750 = vmatpush.msra.mxu0 %v170
    %751 = vmatpush.msra.mxu0 %v169
    %752 = vmatpush.msra.mxu0 %v168
    %753 = vmatpush.msra.mxu0 %v167
    %754 = vmatmul.f32.gmra.mxu0 %v656
    %v755 = vpop.f32.mrf.mxu0
    %v756 = vadd.f32 %v260, %v755
    %757 = vdwg.mxu0
    %v758 = vmul.f32 %v697, %v756
    %v759 = vadd.f32 %v147, %v758
    %v760 = vtanh.pop %v759
    %v761 = vsub.f32 1.0, %v737
    %v762 = vmul.f32 %v761, %v760
    %v764 = vmul.f32 %v737, %v655
    %v765 = vadd.f32 %v762, %v764
    %v767 = vsel %vm51, %v765, 0
    %769 = vmatpush.msra.mxu0 0.0
    %770 = vmatpush.msra.mxu0 0.0
    %771 = vmatpush.msra.mxu0 0.0
    %772 = vmatpush.msra.mxu0 0.0
    %773 = vmatpush.msra.mxu0 0.0
    %774 = vmatpush.msra.mxu0 0.0
    %775 = vmatpush.msra.mxu0 0.0
    %776 = vmatpush.msra.mxu0 0.0
    %777 = vmatpush.msra.mxu0 %v156
    %778 = vmatpush.msra.mxu0 %v155
    %779 = vmatpush.msra.mxu0 %v154
    %780 = vmatpush.msra.mxu0 %v153
    %781 = vmatpush.msra.mxu0 %v152
    %782 = vmatpush.msra.mxu0 %v151
    %783 = vmatpush.msra.mxu0 %v150
    %784 = vmatpush.msra.mxu0 %v149
    %785 = vmatmul.f32.gmra.mxu0 %v767
    %v786 = vpop.f32.mrf.mxu0
    %v787 = vadd.f32 0.0, %v786
    %788 = vdwg.mxu0
    %v790 = vrot.slane %v787, 6
    %v792 = vadd.f32 %v79, %v790
    %v793 = vxor.u32 %v792, 2147483648
    %v794 = vmul.f32 %v793, 1.442695
    %v795 = vpow.pop %v794
    %v796 = vadd.f32 %v795, 1.0
    %v797 = vrcp.pop %v796
    %v798 = vmul.f32 %v796, %v797
    %v799 = vsub.f32 1.0, %v798
    %v800 = vmul.f32 %v797, %v799
    %v801 = vadd.f32 %v797, %v800
    %vm802 = vweird.f32 %v796
    %vm803 = vweird.f32 %v797
    %vm804 = vmor %vm802, %vm803
    %v805 = vsel %vm804, %v797, %v801
    %v806 = vand.u32 2147483647, %v796
    %vm807 = vcmp.eq.f32.partialorder %v806, 8.507059e+37
    %v808 = vand.u32 %v796, 2147483648
    %v809 = vor.u32 1.1754944e-38, %v808
    %v810 = vsel %vm807, %v809, %v805
    %v811 = vmul.f32 1.0, %v810
    %812 = vmatpush.msra.mxu0 0.0
    %813 = vmatpush.msra.mxu0 0.0
    %814 = vmatpush.msra.mxu0 0.0
    %815 = vmatpush.msra.mxu0 0.0
    %816 = vmatpush.msra.mxu0 0.0
    %817 = vmatpush.msra.mxu0 0.0
    %818 = vmatpush.msra.mxu0 0.0
    %819 = vmatpush.msra.mxu0 0.0
    %820 = vmatpush.msra.mxu0 %v165
    %821 = vmatpush.msra.mxu0 %v164
    %822 = vmatpush.msra.mxu0 %v163
    %823 = vmatpush.msra.mxu0 %v162
    %824 = vmatpush.msra.mxu0 %v161
    %825 = vmatpush.msra.mxu0 %v160
    %826 = vmatpush.msra.mxu0 %v159
    %827 = vmatpush.msra.mxu0 %v158
    %828 = vmatmul.f32.gmra.mxu0 %v767
    %v829 = vpop.f32.mrf.mxu0
    %v830 = vadd.f32 0.0, %v829
    %831 = vdwg.mxu0
    %v833 = vrot.slane %v830, 6
    %v835 = vadd.f32 %v113, %v833
    %v836 = vxor.u32 %v835, 2147483648
    %v837 = vmul.f32 %v836, 1.442695
    %v838 = vpow.pop %v837
    %v839 = vadd.f32 %v838, 1.0
    %v840 = vrcp.pop %v839
    %v841 = vmul.f32 %v839, %v840
    %v842 = vsub.f32 1.0, %v841
    %v843 = vmul.f32 %v840, %v842
    %v844 = vadd.f32 %v840, %v843
    %vm845 = vweird.f32 %v839
    %vm846 = vweird.f32 %v840
    %vm847 = vmor %vm845, %vm846
    %v848 = vsel %vm847, %v840, %v844
    %v849 = vand.u32 2147483647, %v839
    %vm850 = vcmp.eq.f32.partialorder %v849, 8.507059e+37
    %v851 = vand.u32 %v839, 2147483648
    %v852 = vor.u32 1.1754944e-38, %v851
    %v853 = vsel %vm850, %v852, %v848
    %v854 = vmul.f32 1.0, %v853
    %855 = vmatpush.msra.mxu0 0.0
    %856 = vmatpush.msra.mxu0 0.0
    %857 = vmatpush.msra.mxu0 0.0
    %858 = vmatpush.msra.mxu0 0.0
    %859 = vmatpush.msra.mxu0 0.0
    %860 = vmatpush.msra.mxu0 0.0
    %861 = vmatpush.msra.mxu0 0.0
    %862 = vmatpush.msra.mxu0 0.0
    %863 = vmatpush.msra.mxu0 %v174
    %864 = vmatpush.msra.mxu0 %v173
    %865 = vmatpush.msra.mxu0 %v172
    %866 = vmatpush.msra.mxu0 %v171
    %867 = vmatpush.msra.mxu0 %v170
    %868 = vmatpush.msra.mxu0 %v169
    %869 = vmatpush.msra.mxu0 %v168
    %870 = vmatpush.msra.mxu0 %v167
    %871 = vmatmul.f32.gmra.mxu0 %v767
    %v872 = vpop.f32.mrf.mxu0
    %v873 = vadd.f32 %v260, %v872
    %874 = vdwg.mxu0
    %v876 = vrot.slane %v873, 6
    %v878 = vmul.f32 %v811, %v876
    %v879 = vadd.f32 %v147, %v878
    %v880 = vtanh.pop %v879
    %v881 = vsub.f32 1.0, %v854
    %v882 = vmul.f32 %v881, %v880
    %v883 = vrot.slane %v765, 6
    %v885 = vmul.f32 %v854, %v883
    %v886 = vadd.f32 %v882, %v885
    %v888 = vrot.slane %v886, 2
    %v889 = vsel %vm51, %v888, 0
    %891 = vmatpush.msra.mxu0 0.0
    %892 = vmatpush.msra.mxu0 0.0
    %893 = vmatpush.msra.mxu0 0.0
    %894 = vmatpush.msra.mxu0 0.0
    %895 = vmatpush.msra.mxu0 0.0
    %896 = vmatpush.msra.mxu0 0.0
    %897 = vmatpush.msra.mxu0 0.0
    %898 = vmatpush.msra.mxu0 0.0
    %899 = vmatpush.msra.mxu0 %v156
    %900 = vmatpush.msra.mxu0 %v155
    %901 = vmatpush.msra.mxu0 %v154
    %902 = vmatpush.msra.mxu0 %v153
    %903 = vmatpush.msra.mxu0 %v152
    %904 = vmatpush.msra.mxu0 %v151
    %905 = vmatpush.msra.mxu0 %v150
    %906 = vmatpush.msra.mxu0 %v149
    %907 = vmatmul.f32.gmra.mxu0 %v889
    %v908 = vpop.f32.mrf.mxu0
    %v909 = vadd.f32 0.0, %v908
    %910 = vdwg.mxu0
    %v912 = vrot.slane %v909, 4
    %v914 = vadd.f32 %v79, %v912
    %v915 = vxor.u32 %v914, 2147483648
    %v916 = vmul.f32 %v915, 1.442695
    %v917 = vpow.pop %v916
    %v918 = vadd.f32 %v917, 1.0
    %v919 = vrcp.pop %v918
    %v920 = vmul.f32 %v918, %v919
    %v921 = vsub.f32 1.0, %v920
    %v922 = vmul.f32 %v919, %v921
    %v923 = vadd.f32 %v919, %v922
    %vm924 = vweird.f32 %v918
    %vm925 = vweird.f32 %v919
    %vm926 = vmor %vm924, %vm925
    %v927 = vsel %vm926, %v919, %v923
    %v928 = vand.u32 2147483647, %v918
    %vm929 = vcmp.eq.f32.partialorder %v928, 8.507059e+37
    %v930 = vand.u32 %v918, 2147483648
    %v931 = vor.u32 1.1754944e-38, %v930
    %v932 = vsel %vm929, %v931, %v927
    %v933 = vmul.f32 1.0, %v932
    %934 = vmatpush.msra.mxu0 0.0
    %935 = vmatpush.msra.mxu0 0.0
    %936 = vmatpush.msra.mxu0 0.0
    %937 = vmatpush.msra.mxu0 0.0
    %938 = vmatpush.msra.mxu0 0.0
    %939 = vmatpush.msra.mxu0 0.0
    %940 = vmatpush.msra.mxu0 0.0
    %941 = vmatpush.msra.mxu0 0.0
    %942 = vmatpush.msra.mxu0 %v165
    %943 = vmatpush.msra.mxu0 %v164
    %944 = vmatpush.msra.mxu0 %v163
    %945 = vmatpush.msra.mxu0 %v162
    %946 = vmatpush.msra.mxu0 %v161
    %947 = vmatpush.msra.mxu0 %v160
    %948 = vmatpush.msra.mxu0 %v159
    %949 = vmatpush.msra.mxu0 %v158
    %950 = vmatmul.f32.gmra.mxu0 %v889
    %v951 = vpop.f32.mrf.mxu0
    %v952 = vadd.f32 0.0, %v951
    %953 = vdwg.mxu0
    %v955 = vrot.slane %v952, 4
    %v957 = vadd.f32 %v113, %v955
    %v958 = vxor.u32 %v957, 2147483648
    %v959 = vmul.f32 %v958, 1.442695
    %v960 = vpow.pop %v959
    %v961 = vadd.f32 %v960, 1.0
    %v962 = vrcp.pop %v961
    %v963 = vmul.f32 %v961, %v962
    %v964 = vsub.f32 1.0, %v963
    %v965 = vmul.f32 %v962, %v964
    %v966 = vadd.f32 %v962, %v965
    %vm967 = vweird.f32 %v961
    %vm968 = vweird.f32 %v962
    %vm969 = vmor %vm967, %vm968
    %v970 = vsel %vm969, %v962, %v966
    %v971 = vand.u32 2147483647, %v961
    %vm972 = vcmp.eq.f32.partialorder %v971, 8.507059e+37
    %v973 = vand.u32 %v961, 2147483648
    %v974 = vor.u32 1.1754944e-38, %v973
    %v975 = vsel %vm972, %v974, %v970
    %v976 = vmul.f32 1.0, %v975
    %977 = vmatpush.msra.mxu0 0.0
    %978 = vmatpush.msra.mxu0 0.0
    %979 = vmatpush.msra.mxu0 0.0
    %980 = vmatpush.msra.mxu0 0.0
    %981 = vmatpush.msra.mxu0 0.0
    %982 = vmatpush.msra.mxu0 0.0
    %983 = vmatpush.msra.mxu0 0.0
    %984 = vmatpush.msra.mxu0 0.0
    %985 = vmatpush.msra.mxu0 %v174
    %986 = vmatpush.msra.mxu0 %v173
    %987 = vmatpush.msra.mxu0 %v172
    %988 = vmatpush.msra.mxu0 %v171
    %989 = vmatpush.msra.mxu0 %v170
    %990 = vmatpush.msra.mxu0 %v169
    %991 = vmatpush.msra.mxu0 %v168
    %992 = vmatpush.msra.mxu0 %v167
    %993 = vmatmul.f32.gmra.mxu0 %v889
    %v994 = vpop.f32.mrf.mxu0
    %v995 = vadd.f32 %v260, %v994
    %996 = vdwg.mxu0
    %v998 = vrot.slane %v995, 4
    %v1000 = vmul.f32 %v933, %v998
    %v1001 = vadd.f32 %v147, %v1000
    %v1002 = vtanh.pop %v1001
    %v1003 = vsub.f32 1.0, %v976
    %v1004 = vmul.f32 %v1003, %v1002
    %v1005 = vrot.slane %v886, 6
    %v1007 = vmul.f32 %v976, %v1005
    %v1008 = vadd.f32 %v1004, %v1007
    %v1010 = vrot.slane %v1008, 4
    %v1011 = vsel %vm51, %v1010, 0
    %1013 = vmatpush.msra.mxu0 0.0
    %1014 = vmatpush.msra.mxu0 0.0
    %1015 = vmatpush.msra.mxu0 0.0
    %1016 = vmatpush.msra.mxu0 0.0
    %1017 = vmatpush.msra.mxu0 0.0
    %1018 = vmatpush.msra.mxu0 0.0
    %1019 = vmatpush.msra.mxu0 0.0
    %1020 = vmatpush.msra.mxu0 0.0
    %1021 = vmatpush.msra.mxu0 %v156
    %1022 = vmatpush.msra.mxu0 %v155
    %1023 = vmatpush.msra.mxu0 %v154
    %1024 = vmatpush.msra.mxu0 %v153
    %1025 = vmatpush.msra.mxu0 %v152
    %1026 = vmatpush.msra.mxu0 %v151
    %1027 = vmatpush.msra.mxu0 %v150
    %1028 = vmatpush.msra.mxu0 %v149
    %1029 = vmatmul.f32.gmra.mxu0 %v1011
    %v1030 = vpop.f32.mrf.mxu0
    %v1031 = vadd.f32 0.0, %v1030
    %1032 = vdwg.mxu0
    %v1034 = vrot.slane %v1031, 2
    %v1036 = vadd.f32 %v79, %v1034
    %v1037 = vxor.u32 %v1036, 2147483648
    %v1038 = vmul.f32 %v1037, 1.442695
    %v1039 = vpow.pop %v1038
    %v1040 = vadd.f32 %v1039, 1.0
    %v1041 = vrcp.pop %v1040
    %v1042 = vmul.f32 %v1040, %v1041
    %v1043 = vsub.f32 1.0, %v1042
    %v1044 = vmul.f32 %v1041, %v1043
    %v1045 = vadd.f32 %v1041, %v1044
    %vm1046 = vweird.f32 %v1040
    %vm1047 = vweird.f32 %v1041
    %vm1048 = vmor %vm1046, %vm1047
    %v1049 = vsel %vm1048, %v1041, %v1045
    %v1050 = vand.u32 2147483647, %v1040
    %vm1051 = vcmp.eq.f32.partialorder %v1050, 8.507059e+37
    %v1052 = vand.u32 %v1040, 2147483648
    %v1053 = vor.u32 1.1754944e-38, %v1052
    %v1054 = vsel %vm1051, %v1053, %v1049
    %v1055 = vmul.f32 1.0, %v1054
    %1056 = vmatpush.msra.mxu0 0.0
    %1057 = vmatpush.msra.mxu0 0.0
    %1058 = vmatpush.msra.mxu0 0.0
    %1059 = vmatpush.msra.mxu0 0.0
    %1060 = vmatpush.msra.mxu0 0.0
    %1061 = vmatpush.msra.mxu0 0.0
    %1062 = vmatpush.msra.mxu0 0.0
    %1063 = vmatpush.msra.mxu0 0.0
    %1064 = vmatpush.msra.mxu0 %v165
    %1065 = vmatpush.msra.mxu0 %v164
    %1066 = vmatpush.msra.mxu0 %v163
    %1067 = vmatpush.msra.mxu0 %v162
    %1068 = vmatpush.msra.mxu0 %v161
    %1069 = vmatpush.msra.mxu0 %v160
    %1070 = vmatpush.msra.mxu0 %v159
    %1071 = vmatpush.msra.mxu0 %v158
    %1072 = vmatmul.f32.gmra.mxu0 %v1011
    %v1073 = vpop.f32.mrf.mxu0
    %v1074 = vadd.f32 0.0, %v1073
    %1075 = vdwg.mxu0
    %v1077 = vrot.slane %v1074, 2
    %v1079 = vadd.f32 %v113, %v1077
    %v1080 = vxor.u32 %v1079, 2147483648
    %v1081 = vmul.f32 %v1080, 1.442695
    %v1082 = vpow.pop %v1081
    %v1083 = vadd.f32 %v1082, 1.0
    %v1084 = vrcp.pop %v1083
    %v1085 = vmul.f32 %v1083, %v1084
    %v1086 = vsub.f32 1.0, %v1085
    %v1087 = vmul.f32 %v1084, %v1086
    %v1088 = vadd.f32 %v1084, %v1087
    %vm1089 = vweird.f32 %v1083
    %vm1090 = vweird.f32 %v1084
    %vm1091 = vmor %vm1089, %vm1090
    %v1092 = vsel %vm1091, %v1084, %v1088
    %v1093 = vand.u32 2147483647, %v1083
    %vm1094 = vcmp.eq.f32.partialorder %v1093, 8.507059e+37
    %v1095 = vand.u32 %v1083, 2147483648
    %v1096 = vor.u32 1.1754944e-38, %v1095
    %v1097 = vsel %vm1094, %v1096, %v1092
    %v1098 = vmul.f32 1.0, %v1097
    %1099 = vmatpush.msra.mxu0 0.0
    %1100 = vmatpush.msra.mxu0 0.0
    %1101 = vmatpush.msra.mxu0 0.0
    %1102 = vmatpush.msra.mxu0 0.0
    %1103 = vmatpush.msra.mxu0 0.0
    %1104 = vmatpush.msra.mxu0 0.0
    %1105 = vmatpush.msra.mxu0 0.0
    %1106 = vmatpush.msra.mxu0 0.0
    %1107 = vmatpush.msra.mxu0 %v174
    %1108 = vmatpush.msra.mxu0 %v173
    %1109 = vmatpush.msra.mxu0 %v172
    %1110 = vmatpush.msra.mxu0 %v171
    %1111 = vmatpush.msra.mxu0 %v170
    %1112 = vmatpush.msra.mxu0 %v169
    %1113 = vmatpush.msra.mxu0 %v168
    %1114 = vmatpush.msra.mxu0 %v167
    %1115 = vmatmul.f32.gmra.mxu0 %v1011
    %v1116 = vpop.f32.mrf.mxu0
    %v1117 = vadd.f32 %v260, %v1116
    %1118 = vdwg.mxu0
    %v1120 = vrot.slane %v1117, 2
    %v1122 = vmul.f32 %v1055, %v1120
    %v1123 = vadd.f32 %v147, %v1122
    %v1124 = vtanh.pop %v1123
    %v1125 = vsub.f32 1.0, %v1098
    %v1126 = vmul.f32 %v1125, %v1124
    %v1127 = vrot.slane %v1008, 6
    %v1129 = vmul.f32 %v1098, %v1127
    %v1130 = vadd.f32 %v1126, %v1129
    %v1132 = vrot.slane %v1130, 6
    %1134 = vrot.lane.b32.xlu0 %v1132, 64
    %v1135 = vpop.permute.xlu0 %1134
    %1137 = vrot.lane.b32.xlu0 %v288, 64
    %v1138 = vpop.permute.xlu0 %1137
    %vm1140 = vcmask 261120
    %v1141 = vsel %vm1140, %v288, %v1132
    %v1142 = vsel %vm51, %v1141, %v1135
    %vm1143 = vcmask 785408
    %v1144 = vsel %vm1143, %v1142, %v1138
    %v1145 = vrot.slane %v1008, 2
    %1147 = vrot.lane.b32.xlu0 %v1145, 64
    %v1148 = vpop.permute.xlu0 %1147
    %1150 = vrot.lane.b32.xlu0 %v409, 64
    %v1151 = vpop.permute.xlu0 %1150
    %v1153 = vsel %vm1140, %v409, %v1145
    %v1154 = vsel %vm51, %v1153, %v1148
    %v1155 = vsel %vm1143, %v1154, %v1151
    %1156 = vrot.lane.b32.xlu0 %v1005, 64
    %v1157 = vpop.permute.xlu0 %1156
    %1159 = vrot.lane.b32.xlu0 %v531, 64
    %v1160 = vpop.permute.xlu0 %1159
    %v1162 = vsel %vm1140, %v531, %v1005
    %v1163 = vsel %vm51, %v1162, %v1157
    %v1164 = vsel %vm1143, %v1163, %v1160
    %v1165 = vrot.slane %v765, 2
    %1167 = vrot.lane.b32.xlu0 %v1165, 64
    %v1168 = vpop.permute.xlu0 %1167
    %1170 = vrot.lane.b32.xlu0 %v653, 64
    %v1171 = vpop.permute.xlu0 %1170
    %v1173 = vsel %vm1140, %v653, %v1165
    %v1174 = vsel %vm51, %v1173, %v1168
    %v1175 = vsel %vm1143, %v1174, %v1171
    %1176 = vrot.lane.b32.xlu0 %v655, 64
    %v1177 = vpop.permute.xlu0 %1176
    %1179 = vrot.lane.b32.xlu0 %v765, 64
    %v1180 = vpop.permute.xlu0 %1179
    %v1182 = vsel %vm1140, %v765, %v655
    %v1183 = vsel %vm51, %v1182, %v1177
    %v1184 = vsel %vm1143, %v1183, %v1180
    %v1185 = vrot.slane %v531, 2
    %1187 = vrot.lane.b32.xlu0 %v1185, 64
    %v1188 = vpop.permute.xlu0 %1187
    %1190 = vrot.lane.b32.xlu0 %v886, 64
    %v1191 = vpop.permute.xlu0 %1190
    %v1193 = vsel %vm1140, %v886, %v1185
    %v1194 = vsel %vm51, %v1193, %v1188
    %v1195 = vsel %vm1143, %v1194, %v1191
    %1196 = vrot.lane.b32.xlu0 %v528, 64
    %v1197 = vpop.permute.xlu0 %1196
    %1199 = vrot.lane.b32.xlu0 %v1008, 64
    %v1200 = vpop.permute.xlu0 %1199
    %v1202 = vsel %vm1140, %v1008, %v528
    %v1203 = vsel %vm51, %v1202, %v1197
    %v1204 = vsel %vm1143, %v1203, %v1200
    %v1205 = vrot.slane %v288, 2
    %1207 = vrot.lane.b32.xlu0 %v1205, 64
    %v1208 = vpop.permute.xlu0 %1207
    %1210 = vrot.lane.b32.xlu0 %v1130, 64
    %v1211 = vpop.permute.xlu0 %1210
    %v1213 = vsel %vm1140, %v1130, %v1205
    %v1214 = vsel %vm51, %v1213, %v1208
    %v1215 = vsel %vm1143, %v1214, %v1211
    %vm1216 = vcmask 1041408
    %v1217 = vsel %vm1216, %v1144, %v1155
    %vm1218 = vcmask 1043456
    %v1219 = vsel %vm1218, %v1217, %v1164
    %vm1220 = vcmask 1045504
    %v1221 = vsel %vm1220, %v1219, %v1175
    %v1222 = vsel %vm1216, %v1184, %v1195
    %v1223 = vsel %vm1218, %v1222, %v1204
    %v1224 = vsel %vm1220, %v1223, %v1215
    %v1225 = vld [vmem:[%s5] sm:$0xff]
    %v1226 = vld [vmem:[%s5 + $0x8] sm:$0xff]
    %v1227 = vld [vmem:[%s5 + $0x10] sm:$0xff]
    %v1228 = vld [vmem:[%s5 + $0x18] sm:$0xff]
    %v1229 = vld [vmem:[%s5 + $0x20] sm:$0xff]
    %v1230 = vld [vmem:[%s5 + $0x28] sm:$0xff]
    %v1231 = vld [vmem:[%s5 + $0x30] sm:$0xff]
    %v1232 = vld [vmem:[%s5 + $0x38] sm:$0xff]
    %v1233 = vld [vmem:[%s5 + $0x40] sm:$0xff]
    %v1234 = vld [vmem:[%s5 + $0x48] sm:$0xff]
    %v1235 = vld [vmem:[%s5 + $0x50] sm:$0xff]
    %v1236 = vld [vmem:[%s5 + $0x58] sm:$0xff]
    %v1237 = vld [vmem:[%s5 + $0x60] sm:$0xff]
    %v1238 = vld [vmem:[%s5 + $0x68] sm:$0xff]
    %v1239 = vld [vmem:[%s5 + $0x70] sm:$0xff]
    %v1240 = vld [vmem:[%s5 + $0x78] sm:$0xff]
    %v1241 = vld [vmem:[%s7] sm:$0x1]
    %v1242 = vperm.slane %v1241, 0
    %1243 = vmatpush.msra.mxu0 %v1240
    %1244 = vmatpush.msra.mxu0 %v1239
    %1245 = vmatpush.msra.mxu0 %v1238
    %1246 = vmatpush.msra.mxu0 %v1237
    %1247 = vmatpush.msra.mxu0 %v1236
    %1248 = vmatpush.msra.mxu0 %v1235
    %1249 = vmatpush.msra.mxu0 %v1234
    %1250 = vmatpush.msra.mxu0 %v1233
    %1251 = vmatpush.msra.mxu0 %v1232
    %1252 = vmatpush.msra.mxu0 %v1231
    %1253 = vmatpush.msra.mxu0 %v1230
    %1254 = vmatpush.msra.mxu0 %v1229
    %1255 = vmatpush.msra.mxu0 %v1228
    %1256 = vmatpush.msra.mxu0 %v1227
    %1257 = vmatpush.msra.mxu0 %v1226
    %1258 = vmatpush.msra.mxu0 %v1225
    %1259 = vmatmul.f32.gmra.mxu0 %v1221
    %v1260 = vpop.f32.mrf.mxu0
    %v1261 = vadd.f32 %v1242, %v1260
    %1262 = vmatmul.f32.gmra.mxu0 %v1224
    %v1263 = vpop.f32.mrf.mxu0
    %v1264 = vadd.f32 %v1242, %v1263
    %1265 = vdwg.mxu0
    %s1266 = scalar_lea.vmem %s5, 128
    %v1267 = vld [vmem:[%s1266] sm:$0xff]
    %v1268 = vld [vmem:[%s1266 + $0x8] sm:$0xff]
    %v1269 = vld [vmem:[%s1266 + $0x10] sm:$0xff]
    %v1270 = vld [vmem:[%s1266 + $0x18] sm:$0xff]
    %v1271 = vld [vmem:[%s1266 + $0x20] sm:$0xff]
    %v1272 = vld [vmem:[%s1266 + $0x28] sm:$0xff]
    %v1273 = vld [vmem:[%s1266 + $0x30] sm:$0xff]
    %v1274 = vld [vmem:[%s1266 + $0x38] sm:$0xff]
    %v1275 = vld [vmem:[%s1266 + $0x40] sm:$0xff]
    %v1276 = vld [vmem:[%s1266 + $0x48] sm:$0xff]
    %v1277 = vld [vmem:[%s1266 + $0x50] sm:$0xff]
    %v1278 = vld [vmem:[%s1266 + $0x58] sm:$0xff]
    %v1279 = vld [vmem:[%s1266 + $0x60] sm:$0xff]
    %v1280 = vld [vmem:[%s1266 + $0x68] sm:$0xff]
    %v1281 = vld [vmem:[%s1266 + $0x70] sm:$0xff]
    %v1282 = vld [vmem:[%s1266 + $0x78] sm:$0xff]
    %v1283 = vld [vmem:[%s7 + $0x1] sm:$0x1]
    %v1284 = vperm.slane %v1283, 0
    %1285 = vmatpush.msra.mxu0 %v1282
    %1286 = vmatpush.msra.mxu0 %v1281
    %1287 = vmatpush.msra.mxu0 %v1280
    %1288 = vmatpush.msra.mxu0 %v1279
    %1289 = vmatpush.msra.mxu0 %v1278
    %1290 = vmatpush.msra.mxu0 %v1277
    %1291 = vmatpush.msra.mxu0 %v1276
    %1292 = vmatpush.msra.mxu0 %v1275
    %1293 = vmatpush.msra.mxu0 %v1274
    %1294 = vmatpush.msra.mxu0 %v1273
    %1295 = vmatpush.msra.mxu0 %v1272
    %1296 = vmatpush.msra.mxu0 %v1271
    %1297 = vmatpush.msra.mxu0 %v1270
    %1298 = vmatpush.msra.mxu0 %v1269
    %1299 = vmatpush.msra.mxu0 %v1268
    %1300 = vmatpush.msra.mxu0 %v1267
    %1301 = vmatmul.f32.gmra.mxu0 %v1221
    %v1302 = vpop.f32.mrf.mxu0
    %v1303 = vadd.f32 %v1284, %v1302
    %1304 = vmatmul.f32.gmra.mxu0 %v1224
    %v1305 = vpop.f32.mrf.mxu0
    %v1306 = vadd.f32 %v1284, %v1305
    %1307 = vdwg.mxu0
    %s1308 = scalar_lea.vmem %s5, 256
    %v1309 = vld [vmem:[%s1308] sm:$0xff]
    %v1310 = vld [vmem:[%s1308 + $0x8] sm:$0xff]
    %v1311 = vld [vmem:[%s1308 + $0x10] sm:$0xff]
    %v1312 = vld [vmem:[%s1308 + $0x18] sm:$0xff]
    %v1313 = vld [vmem:[%s1308 + $0x20] sm:$0xff]
    %v1314 = vld [vmem:[%s1308 + $0x28] sm:$0xff]
    %v1315 = vld [vmem:[%s1308 + $0x30] sm:$0xff]
    %v1316 = vld [vmem:[%s1308 + $0x38] sm:$0xff]
    %v1317 = vld [vmem:[%s1308 + $0x40] sm:$0xff]
    %v1318 = vld [vmem:[%s1308 + $0x48] sm:$0xff]
    %v1319 = vld [vmem:[%s1308 + $0x50] sm:$0xff]
    %v1320 = vld [vmem:[%s1308 + $0x58] sm:$0xff]
    %v1321 = vld [vmem:[%s1308 + $0x60] sm:$0xff]
    %v1322 = vld [vmem:[%s1308 + $0x68] sm:$0xff]
    %v1323 = vld [vmem:[%s1308 + $0x70] sm:$0xff]
    %v1324 = vld [vmem:[%s1308 + $0x78] sm:$0xff]
    %v1325 = vld [vmem:[%s7 + $0x2] sm:$0x1]
    %v1326 = vperm.slane %v1325, 0
    %1327 = vmatpush.msra.mxu0 %v1324
    %1328 = vmatpush.msra.mxu0 %v1323
    %1329 = vmatpush.msra.mxu0 %v1322
    %1330 = vmatpush.msra.mxu0 %v1321
    %1331 = vmatpush.msra.mxu0 %v1320
    %1332 = vmatpush.msra.mxu0 %v1319
    %1333 = vmatpush.msra.mxu0 %v1318
    %1334 = vmatpush.msra.mxu0 %v1317
    %1335 = vmatpush.msra.mxu0 %v1316
    %1336 = vmatpush.msra.mxu0 %v1315
    %1337 = vmatpush.msra.mxu0 %v1314
    %1338 = vmatpush.msra.mxu0 %v1313
    %1339 = vmatpush.msra.mxu0 %v1312
    %1340 = vmatpush.msra.mxu0 %v1311
    %1341 = vmatpush.msra.mxu0 %v1310
    %1342 = vmatpush.msra.mxu0 %v1309
    %1343 = vmatmul.f32.gmra.mxu0 %v1221
    %v1344 = vpop.f32.mrf.mxu0
    %v1345 = vadd.f32 %v1326, %v1344
    %1346 = vmatmul.f32.gmra.mxu0 %v1224
    %v1347 = vpop.f32.mrf.mxu0
    %v1348 = vadd.f32 %v1326, %v1347
    %1349 = vdwg.mxu0
    %v1350 = vld [vmem:[%s6] sm:$0xff]
    %v1351 = vld [vmem:[%s6 + $0x8] sm:$0xff]
    %v1352 = vld [vmem:[%s6 + $0x10] sm:$0xff]
    %v1353 = vld [vmem:[%s6 + $0x18] sm:$0xff]
    %v1354 = vld [vmem:[%s6 + $0x20] sm:$0xff]
    %v1355 = vld [vmem:[%s6 + $0x28] sm:$0xff]
    %v1356 = vld [vmem:[%s6 + $0x30] sm:$0xff]
    %v1357 = vld [vmem:[%s6 + $0x38] sm:$0xff]
    %s1358 = scalar_lea.vmem %s6, 64
    %v1359 = vld [vmem:[%s1358] sm:$0xff]
    %v1360 = vld [vmem:[%s1358 + $0x8] sm:$0xff]
    %v1361 = vld [vmem:[%s1358 + $0x10] sm:$0xff]
    %v1362 = vld [vmem:[%s1358 + $0x18] sm:$0xff]
    %v1363 = vld [vmem:[%s1358 + $0x20] sm:$0xff]
    %v1364 = vld [vmem:[%s1358 + $0x28] sm:$0xff]
    %v1365 = vld [vmem:[%s1358 + $0x30] sm:$0xff]
    %v1366 = vld [vmem:[%s1358 + $0x38] sm:$0xff]
    %s1367 = scalar_lea.vmem %s6, 128
    %v1368 = vld [vmem:[%s1367] sm:$0xff]
    %v1369 = vld [vmem:[%s1367 + $0x8] sm:$0xff]
    %v1370 = vld [vmem:[%s1367 + $0x10] sm:$0xff]
    %v1371 = vld [vmem:[%s1367 + $0x18] sm:$0xff]
    %v1372 = vld [vmem:[%s1367 + $0x20] sm:$0xff]
    %v1373 = vld [vmem:[%s1367 + $0x28] sm:$0xff]
    %v1374 = vld [vmem:[%s1367 + $0x30] sm:$0xff]
    %v1375 = vld [vmem:[%s1367 + $0x38] sm:$0xff]
    %v1376 = vld [vmem:[%s8] sm:$0x1]
    %1377 = vmatpush.msra.mxu0 0.0
    %1378 = vmatpush.msra.mxu0 0.0
    %1379 = vmatpush.msra.mxu0 0.0
    %1380 = vmatpush.msra.mxu0 0.0
    %1381 = vmatpush.msra.mxu0 0.0
    %1382 = vmatpush.msra.mxu0 0.0
    %1383 = vmatpush.msra.mxu0 0.0
    %1384 = vmatpush.msra.mxu0 0.0
    %1385 = vmatpush.msra.mxu0 %v1357
    %1386 = vmatpush.msra.mxu0 %v1356
    %1387 = vmatpush.msra.mxu0 %v1355
    %1388 = vmatpush.msra.mxu0 %v1354
    %1389 = vmatpush.msra.mxu0 %v1353
    %1390 = vmatpush.msra.mxu0 %v1352
    %1391 = vmatpush.msra.mxu0 %v1351
    %1392 = vmatpush.msra.mxu0 %v1350
    %1393 = vmatmul.f32.gmra.mxu0 %v177
    %v1394 = vpop.f32.mrf.mxu0
    %v1395 = vadd.f32 0.0, %v1394
    %1396 = vdwg.mxu0
    %v1397 = vadd.f32 %v1261, %v1395
    %v1398 = vxor.u32 %v1397, 2147483648
    %v1399 = vmul.f32 %v1398, 1.442695
    %v1400 = vpow.pop %v1399
    %v1401 = vadd.f32 %v1400, 1.0
    %v1402 = vrcp.pop %v1401
    %v1403 = vmul.f32 %v1401, %v1402
    %v1404 = vsub.f32 1.0, %v1403
    %v1405 = vmul.f32 %v1402, %v1404
    %v1406 = vadd.f32 %v1402, %v1405
    %vm1407 = vweird.f32 %v1401
    %vm1408 = vweird.f32 %v1402
    %vm1409 = vmor %vm1407, %vm1408
    %v1410 = vsel %vm1409, %v1402, %v1406
    %v1411 = vand.u32 2147483647, %v1401
    %vm1412 = vcmp.eq.f32.partialorder %v1411, 8.507059e+37
    %v1413 = vand.u32 %v1401, 2147483648
    %v1414 = vor.u32 1.1754944e-38, %v1413
    %v1415 = vsel %vm1412, %v1414, %v1410
    %v1416 = vmul.f32 1.0, %v1415
    %1417 = vmatpush.msra.mxu0 0.0
    %1418 = vmatpush.msra.mxu0 0.0
    %1419 = vmatpush.msra.mxu0 0.0
    %1420 = vmatpush.msra.mxu0 0.0
    %1421 = vmatpush.msra.mxu0 0.0
    %1422 = vmatpush.msra.mxu0 0.0
    %1423 = vmatpush.msra.mxu0 0.0
    %1424 = vmatpush.msra.mxu0 0.0
    %1425 = vmatpush.msra.mxu0 %v1366
    %1426 = vmatpush.msra.mxu0 %v1365
    %1427 = vmatpush.msra.mxu0 %v1364
    %1428 = vmatpush.msra.mxu0 %v1363
    %1429 = vmatpush.msra.mxu0 %v1362
    %1430 = vmatpush.msra.mxu0 %v1361
    %1431 = vmatpush.msra.mxu0 %v1360
    %1432 = vmatpush.msra.mxu0 %v1359
    %1433 = vmatmul.f32.gmra.mxu0 %v177
    %v1434 = vpop.f32.mrf.mxu0
    %v1435 = vadd.f32 0.0, %v1434
    %1436 = vdwg.mxu0
    %v1437 = vadd.f32 %v1303, %v1435
    %v1438 = vxor.u32 %v1437, 2147483648
    %v1439 = vmul.f32 %v1438, 1.442695
    %v1440 = vpow.pop %v1439
    %v1441 = vadd.f32 %v1440, 1.0
    %v1442 = vrcp.pop %v1441
    %v1443 = vmul.f32 %v1441, %v1442
    %v1444 = vsub.f32 1.0, %v1443
    %v1445 = vmul.f32 %v1442, %v1444
    %v1446 = vadd.f32 %v1442, %v1445
    %vm1447 = vweird.f32 %v1441
    %vm1448 = vweird.f32 %v1442
    %vm1449 = vmor %vm1447, %vm1448
    %v1450 = vsel %vm1449, %v1442, %v1446
    %v1451 = vand.u32 2147483647, %v1441
    %vm1452 = vcmp.eq.f32.partialorder %v1451, 8.507059e+37
    %v1453 = vand.u32 %v1441, 2147483648
    %v1454 = vor.u32 1.1754944e-38, %v1453
    %v1455 = vsel %vm1452, %v1454, %v1450
    %v1456 = vmul.f32 1.0, %v1455
    %v1458 = vperm.slane %v1376, 0
    %1460 = vmatpush.msra.mxu0 0.0
    %1461 = vmatpush.msra.mxu0 0.0
    %1462 = vmatpush.msra.mxu0 0.0
    %1463 = vmatpush.msra.mxu0 0.0
    %1464 = vmatpush.msra.mxu0 0.0
    %1465 = vmatpush.msra.mxu0 0.0
    %1466 = vmatpush.msra.mxu0 0.0
    %1467 = vmatpush.msra.mxu0 0.0
    %1468 = vmatpush.msra.mxu0 %v1375
    %1469 = vmatpush.msra.mxu0 %v1374
    %1470 = vmatpush.msra.mxu0 %v1373
    %1471 = vmatpush.msra.mxu0 %v1372
    %1472 = vmatpush.msra.mxu0 %v1371
    %1473 = vmatpush.msra.mxu0 %v1370
    %1474 = vmatpush.msra.mxu0 %v1369
    %1475 = vmatpush.msra.mxu0 %v1368
    %1476 = vmatmul.f32.gmra.mxu0 %v177
    %v1477 = vpop.f32.mrf.mxu0
    %v1478 = vadd.f32 %v1458, %v1477
    %1479 = vdwg.mxu0
    %v1480 = vmul.f32 %v1416, %v1478
    %v1481 = vadd.f32 %v1345, %v1480
    %v1482 = vtanh.pop %v1481
    %v1483 = vsub.f32 1.0, %v1456
    %v1484 = vmul.f32 %v1483, %v1482
    %v1485 = vmul.f32 %v1456, 0.0
    %v1486 = vadd.f32 %v1484, %v1485
    %v1488 = vsel %vm51, %v1486, 0
    %1490 = vmatpush.msra.mxu0 0.0
    %1491 = vmatpush.msra.mxu0 0.0
    %1492 = vmatpush.msra.mxu0 0.0
    %1493 = vmatpush.msra.mxu0 0.0
    %1494 = vmatpush.msra.mxu0 0.0
    %1495 = vmatpush.msra.mxu0 0.0
    %1496 = vmatpush.msra.mxu0 0.0
    %1497 = vmatpush.msra.mxu0 0.0
    %1498 = vmatpush.msra.mxu0 %v1357
    %1499 = vmatpush.msra.mxu0 %v1356
    %1500 = vmatpush.msra.mxu0 %v1355
    %1501 = vmatpush.msra.mxu0 %v1354
    %1502 = vmatpush.msra.mxu0 %v1353
    %1503 = vmatpush.msra.mxu0 %v1352
    %1504 = vmatpush.msra.mxu0 %v1351
    %1505 = vmatpush.msra.mxu0 %v1350
    %1506 = vmatmul.f32.gmra.mxu0 %v1488
    %v1507 = vpop.f32.mrf.mxu0
    %v1508 = vadd.f32 0.0, %v1507
    %1509 = vdwg.mxu0
    %v1511 = vrot.slane %v1508, 6
    %v1513 = vadd.f32 %v1261, %v1511
    %v1514 = vxor.u32 %v1513, 2147483648
    %v1515 = vmul.f32 %v1514, 1.442695
    %v1516 = vpow.pop %v1515
    %v1517 = vadd.f32 %v1516, 1.0
    %v1518 = vrcp.pop %v1517
    %v1519 = vmul.f32 %v1517, %v1518
    %v1520 = vsub.f32 1.0, %v1519
    %v1521 = vmul.f32 %v1518, %v1520
    %v1522 = vadd.f32 %v1518, %v1521
    %vm1523 = vweird.f32 %v1517
    %vm1524 = vweird.f32 %v1518
    %vm1525 = vmor %vm1523, %vm1524
    %v1526 = vsel %vm1525, %v1518, %v1522
    %v1527 = vand.u32 2147483647, %v1517
    %vm1528 = vcmp.eq.f32.partialorder %v1527, 8.507059e+37
    %v1529 = vand.u32 %v1517, 2147483648
    %v1530 = vor.u32 1.1754944e-38, %v1529
    %v1531 = vsel %vm1528, %v1530, %v1526
    %v1532 = vmul.f32 1.0, %v1531
    %1533 = vmatpush.msra.mxu0 0.0
    %1534 = vmatpush.msra.mxu0 0.0
    %1535 = vmatpush.msra.mxu0 0.0
    %1536 = vmatpush.msra.mxu0 0.0
    %1537 = vmatpush.msra.mxu0 0.0
    %1538 = vmatpush.msra.mxu0 0.0
    %1539 = vmatpush.msra.mxu0 0.0
    %1540 = vmatpush.msra.mxu0 0.0
    %1541 = vmatpush.msra.mxu0 %v1366
    %1542 = vmatpush.msra.mxu0 %v1365
    %1543 = vmatpush.msra.mxu0 %v1364
    %1544 = vmatpush.msra.mxu0 %v1363
    %1545 = vmatpush.msra.mxu0 %v1362
    %1546 = vmatpush.msra.mxu0 %v1361
    %1547 = vmatpush.msra.mxu0 %v1360
    %1548 = vmatpush.msra.mxu0 %v1359
    %1549 = vmatmul.f32.gmra.mxu0 %v1488
    %v1550 = vpop.f32.mrf.mxu0
    %v1551 = vadd.f32 0.0, %v1550
    %1552 = vdwg.mxu0
    %v1554 = vrot.slane %v1551, 6
    %v1556 = vadd.f32 %v1303, %v1554
    %v1557 = vxor.u32 %v1556, 2147483648
    %v1558 = vmul.f32 %v1557, 1.442695
    %v1559 = vpow.pop %v1558
    %v1560 = vadd.f32 %v1559, 1.0
    %v1561 = vrcp.pop %v1560
    %v1562 = vmul.f32 %v1560, %v1561
    %v1563 = vsub.f32 1.0, %v1562
    %v1564 = vmul.f32 %v1561, %v1563
    %v1565 = vadd.f32 %v1561, %v1564
    %vm1566 = vweird.f32 %v1560
    %vm1567 = vweird.f32 %v1561
    %vm1568 = vmor %vm1566, %vm1567
    %v1569 = vsel %vm1568, %v1561, %v1565
    %v1570 = vand.u32 2147483647, %v1560
    %vm1571 = vcmp.eq.f32.partialorder %v1570, 8.507059e+37
    %v1572 = vand.u32 %v1560, 2147483648
    %v1573 = vor.u32 1.1754944e-38, %v1572
    %v1574 = vsel %vm1571, %v1573, %v1569
    %v1575 = vmul.f32 1.0, %v1574
    %1576 = vmatpush.msra.mxu0 0.0
    %1577 = vmatpush.msra.mxu0 0.0
    %1578 = vmatpush.msra.mxu0 0.0
    %1579 = vmatpush.msra.mxu0 0.0
    %1580 = vmatpush.msra.mxu0 0.0
    %1581 = vmatpush.msra.mxu0 0.0
    %1582 = vmatpush.msra.mxu0 0.0
    %1583 = vmatpush.msra.mxu0 0.0
    %1584 = vmatpush.msra.mxu0 %v1375
    %1585 = vmatpush.msra.mxu0 %v1374
    %1586 = vmatpush.msra.mxu0 %v1373
    %1587 = vmatpush.msra.mxu0 %v1372
    %1588 = vmatpush.msra.mxu0 %v1371
    %1589 = vmatpush.msra.mxu0 %v1370
    %1590 = vmatpush.msra.mxu0 %v1369
    %1591 = vmatpush.msra.mxu0 %v1368
    %1592 = vmatmul.f32.gmra.mxu0 %v1488
    %v1593 = vpop.f32.mrf.mxu0
    %v1594 = vadd.f32 %v1458, %v1593
    %1595 = vdwg.mxu0
    %v1597 = vrot.slane %v1594, 6
    %v1599 = vmul.f32 %v1532, %v1597
    %v1600 = vadd.f32 %v1345, %v1599
    %v1601 = vtanh.pop %v1600
    %v1602 = vsub.f32 1.0, %v1575
    %v1603 = vmul.f32 %v1602, %v1601
    %v1604 = vrot.slane %v1486, 6
    %v1606 = vmul.f32 %v1575, %v1604
    %v1607 = vadd.f32 %v1603, %v1606
    %v1609 = vrot.slane %v1607, 2
    %v1610 = vsel %vm51, %v1609, 0
    %1612 = vmatpush.msra.mxu0 0.0
    %1613 = vmatpush.msra.mxu0 0.0
    %1614 = vmatpush.msra.mxu0 0.0
    %1615 = vmatpush.msra.mxu0 0.0
    %1616 = vmatpush.msra.mxu0 0.0
    %1617 = vmatpush.msra.mxu0 0.0
    %1618 = vmatpush.msra.mxu0 0.0
    %1619 = vmatpush.msra.mxu0 0.0
    %1620 = vmatpush.msra.mxu0 %v1357
    %1621 = vmatpush.msra.mxu0 %v1356
    %1622 = vmatpush.msra.mxu0 %v1355
    %1623 = vmatpush.msra.mxu0 %v1354
    %1624 = vmatpush.msra.mxu0 %v1353
    %1625 = vmatpush.msra.mxu0 %v1352
    %1626 = vmatpush.msra.mxu0 %v1351
    %1627 = vmatpush.msra.mxu0 %v1350
    %1628 = vmatmul.f32.gmra.mxu0 %v1610
    %v1629 = vpop.f32.mrf.mxu0
    %v1630 = vadd.f32 0.0, %v1629
    %1631 = vdwg.mxu0
    %v1633 = vrot.slane %v1630, 4
    %v1635 = vadd.f32 %v1261, %v1633
    %v1636 = vxor.u32 %v1635, 2147483648
    %v1637 = vmul.f32 %v1636, 1.442695
    %v1638 = vpow.pop %v1637
    %v1639 = vadd.f32 %v1638, 1.0
    %v1640 = vrcp.pop %v1639
    %v1641 = vmul.f32 %v1639, %v1640
    %v1642 = vsub.f32 1.0, %v1641
    %v1643 = vmul.f32 %v1640, %v1642
    %v1644 = vadd.f32 %v1640, %v1643
    %vm1645 = vweird.f32 %v1639
    %vm1646 = vweird.f32 %v1640
    %vm1647 = vmor %vm1645, %vm1646
    %v1648 = vsel %vm1647, %v1640, %v1644
    %v1649 = vand.u32 2147483647, %v1639
    %vm1650 = vcmp.eq.f32.partialorder %v1649, 8.507059e+37
    %v1651 = vand.u32 %v1639, 2147483648
    %v1652 = vor.u32 1.1754944e-38, %v1651
    %v1653 = vsel %vm1650, %v1652, %v1648
    %v1654 = vmul.f32 1.0, %v1653
    %1655 = vmatpush.msra.mxu0 0.0
    %1656 = vmatpush.msra.mxu0 0.0
    %1657 = vmatpush.msra.mxu0 0.0
    %1658 = vmatpush.msra.mxu0 0.0
    %1659 = vmatpush.msra.mxu0 0.0
    %1660 = vmatpush.msra.mxu0 0.0
    %1661 = vmatpush.msra.mxu0 0.0
    %1662 = vmatpush.msra.mxu0 0.0
    %1663 = vmatpush.msra.mxu0 %v1366
    %1664 = vmatpush.msra.mxu0 %v1365
    %1665 = vmatpush.msra.mxu0 %v1364
    %1666 = vmatpush.msra.mxu0 %v1363
    %1667 = vmatpush.msra.mxu0 %v1362
    %1668 = vmatpush.msra.mxu0 %v1361
    %1669 = vmatpush.msra.mxu0 %v1360
    %1670 = vmatpush.msra.mxu0 %v1359
    %1671 = vmatmul.f32.gmra.mxu0 %v1610
    %v1672 = vpop.f32.mrf.mxu0
    %v1673 = vadd.f32 0.0, %v1672
    %1674 = vdwg.mxu0
    %v1676 = vrot.slane %v1673, 4
    %v1678 = vadd.f32 %v1303, %v1676
    %v1679 = vxor.u32 %v1678, 2147483648
    %v1680 = vmul.f32 %v1679, 1.442695
    %v1681 = vpow.pop %v1680
    %v1682 = vadd.f32 %v1681, 1.0
    %v1683 = vrcp.pop %v1682
    %v1684 = vmul.f32 %v1682, %v1683
    %v1685 = vsub.f32 1.0, %v1684
    %v1686 = vmul.f32 %v1683, %v1685
    %v1687 = vadd.f32 %v1683, %v1686
    %vm1688 = vweird.f32 %v1682
    %vm1689 = vweird.f32 %v1683
    %vm1690 = vmor %vm1688, %vm1689
    %v1691 = vsel %vm1690, %v1683, %v1687
    %v1692 = vand.u32 2147483647, %v1682
    %vm1693 = vcmp.eq.f32.partialorder %v1692, 8.507059e+37
    %v1694 = vand.u32 %v1682, 2147483648
    %v1695 = vor.u32 1.1754944e-38, %v1694
    %v1696 = vsel %vm1693, %v1695, %v1691
    %v1697 = vmul.f32 1.0, %v1696
    %1698 = vmatpush.msra.mxu0 0.0
    %1699 = vmatpush.msra.mxu0 0.0
    %1700 = vmatpush.msra.mxu0 0.0
    %1701 = vmatpush.msra.mxu0 0.0
    %1702 = vmatpush.msra.mxu0 0.0
    %1703 = vmatpush.msra.mxu0 0.0
    %1704 = vmatpush.msra.mxu0 0.0
    %1705 = vmatpush.msra.mxu0 0.0
    %1706 = vmatpush.msra.mxu0 %v1375
    %1707 = vmatpush.msra.mxu0 %v1374
    %1708 = vmatpush.msra.mxu0 %v1373
    %1709 = vmatpush.msra.mxu0 %v1372
    %1710 = vmatpush.msra.mxu0 %v1371
    %1711 = vmatpush.msra.mxu0 %v1370
    %1712 = vmatpush.msra.mxu0 %v1369
    %1713 = vmatpush.msra.mxu0 %v1368
    %1714 = vmatmul.f32.gmra.mxu0 %v1610
    %v1715 = vpop.f32.mrf.mxu0
    %v1716 = vadd.f32 %v1458, %v1715
    %1717 = vdwg.mxu0
    %v1719 = vrot.slane %v1716, 4
    %v1721 = vmul.f32 %v1654, %v1719
    %v1722 = vadd.f32 %v1345, %v1721
    %v1723 = vtanh.pop %v1722
    %v1724 = vsub.f32 1.0, %v1697
    %v1725 = vmul.f32 %v1724, %v1723
    %v1726 = vrot.slane %v1607, 6
    %v1728 = vmul.f32 %v1697, %v1726
    %v1729 = vadd.f32 %v1725, %v1728
    %v1731 = vrot.slane %v1729, 4
    %v1732 = vsel %vm51, %v1731, 0
    %1734 = vmatpush.msra.mxu0 0.0
    %1735 = vmatpush.msra.mxu0 0.0
    %1736 = vmatpush.msra.mxu0 0.0
    %1737 = vmatpush.msra.mxu0 0.0
    %1738 = vmatpush.msra.mxu0 0.0
    %1739 = vmatpush.msra.mxu0 0.0
    %1740 = vmatpush.msra.mxu0 0.0
    %1741 = vmatpush.msra.mxu0 0.0
    %1742 = vmatpush.msra.mxu0 %v1357
    %1743 = vmatpush.msra.mxu0 %v1356
    %1744 = vmatpush.msra.mxu0 %v1355
    %1745 = vmatpush.msra.mxu0 %v1354
    %1746 = vmatpush.msra.mxu0 %v1353
    %1747 = vmatpush.msra.mxu0 %v1352
    %1748 = vmatpush.msra.mxu0 %v1351
    %1749 = vmatpush.msra.mxu0 %v1350
    %1750 = vmatmul.f32.gmra.mxu0 %v1732
    %v1751 = vpop.f32.mrf.mxu0
    %v1752 = vadd.f32 0.0, %v1751
    %1753 = vdwg.mxu0
    %v1755 = vrot.slane %v1752, 2
    %v1757 = vadd.f32 %v1261, %v1755
    %v1758 = vxor.u32 %v1757, 2147483648
    %v1759 = vmul.f32 %v1758, 1.442695
    %v1760 = vpow.pop %v1759
    %v1761 = vadd.f32 %v1760, 1.0
    %v1762 = vrcp.pop %v1761
    %v1763 = vmul.f32 %v1761, %v1762
    %v1764 = vsub.f32 1.0, %v1763
    %v1765 = vmul.f32 %v1762, %v1764
    %v1766 = vadd.f32 %v1762, %v1765
    %vm1767 = vweird.f32 %v1761
    %vm1768 = vweird.f32 %v1762
    %vm1769 = vmor %vm1767, %vm1768
    %v1770 = vsel %vm1769, %v1762, %v1766
    %v1771 = vand.u32 2147483647, %v1761
    %vm1772 = vcmp.eq.f32.partialorder %v1771, 8.507059e+37
    %v1773 = vand.u32 %v1761, 2147483648
    %v1774 = vor.u32 1.1754944e-38, %v1773
    %v1775 = vsel %vm1772, %v1774, %v1770
    %v1776 = vmul.f32 1.0, %v1775
    %1777 = vmatpush.msra.mxu0 0.0
    %1778 = vmatpush.msra.mxu0 0.0
    %1779 = vmatpush.msra.mxu0 0.0
    %1780 = vmatpush.msra.mxu0 0.0
    %1781 = vmatpush.msra.mxu0 0.0
    %1782 = vmatpush.msra.mxu0 0.0
    %1783 = vmatpush.msra.mxu0 0.0
    %1784 = vmatpush.msra.mxu0 0.0
    %1785 = vmatpush.msra.mxu0 %v1366
    %1786 = vmatpush.msra.mxu0 %v1365
    %1787 = vmatpush.msra.mxu0 %v1364
    %1788 = vmatpush.msra.mxu0 %v1363
    %1789 = vmatpush.msra.mxu0 %v1362
    %1790 = vmatpush.msra.mxu0 %v1361
    %1791 = vmatpush.msra.mxu0 %v1360
    %1792 = vmatpush.msra.mxu0 %v1359
    %1793 = vmatmul.f32.gmra.mxu0 %v1732
    %v1794 = vpop.f32.mrf.mxu0
    %v1795 = vadd.f32 0.0, %v1794
    %1796 = vdwg.mxu0
    %v1798 = vrot.slane %v1795, 2
    %v1800 = vadd.f32 %v1303, %v1798
    %v1801 = vxor.u32 %v1800, 2147483648
    %v1802 = vmul.f32 %v1801, 1.442695
    %v1803 = vpow.pop %v1802
    %v1804 = vadd.f32 %v1803, 1.0
    %v1805 = vrcp.pop %v1804
    %v1806 = vmul.f32 %v1804, %v1805
    %v1807 = vsub.f32 1.0, %v1806
    %v1808 = vmul.f32 %v1805, %v1807
    %v1809 = vadd.f32 %v1805, %v1808
    %vm1810 = vweird.f32 %v1804
    %vm1811 = vweird.f32 %v1805
    %vm1812 = vmor %vm1810, %vm1811
    %v1813 = vsel %vm1812, %v1805, %v1809
    %v1814 = vand.u32 2147483647, %v1804
    %vm1815 = vcmp.eq.f32.partialorder %v1814, 8.507059e+37
    %v1816 = vand.u32 %v1804, 2147483648
    %v1817 = vor.u32 1.1754944e-38, %v1816
    %v1818 = vsel %vm1815, %v1817, %v1813
    %v1819 = vmul.f32 1.0, %v1818
    %1820 = vmatpush.msra.mxu0 0.0
    %1821 = vmatpush.msra.mxu0 0.0
    %1822 = vmatpush.msra.mxu0 0.0
    %1823 = vmatpush.msra.mxu0 0.0
    %1824 = vmatpush.msra.mxu0 0.0
    %1825 = vmatpush.msra.mxu0 0.0
    %1826 = vmatpush.msra.mxu0 0.0
    %1827 = vmatpush.msra.mxu0 0.0
    %1828 = vmatpush.msra.mxu0 %v1375
    %1829 = vmatpush.msra.mxu0 %v1374
    %1830 = vmatpush.msra.mxu0 %v1373
    %1831 = vmatpush.msra.mxu0 %v1372
    %1832 = vmatpush.msra.mxu0 %v1371
    %1833 = vmatpush.msra.mxu0 %v1370
    %1834 = vmatpush.msra.mxu0 %v1369
    %1835 = vmatpush.msra.mxu0 %v1368
    %1836 = vmatmul.f32.gmra.mxu0 %v1732
    %v1837 = vpop.f32.mrf.mxu0
    %v1838 = vadd.f32 %v1458, %v1837
    %1839 = vdwg.mxu0
    %v1841 = vrot.slane %v1838, 2
    %v1843 = vmul.f32 %v1776, %v1841
    %v1844 = vadd.f32 %v1345, %v1843
    %v1845 = vtanh.pop %v1844
    %v1846 = vsub.f32 1.0, %v1819
    %v1847 = vmul.f32 %v1846, %v1845
    %v1848 = vrot.slane %v1729, 6
    %v1850 = vmul.f32 %v1819, %v1848
    %v1851 = vadd.f32 %v1847, %v1850
    %v1853 = vrot.slane %v1851, 6
    %v1854 = vsel %vm51, %v1853, 0
    %1856 = vmatpush.msra.mxu0 0.0
    %1857 = vmatpush.msra.mxu0 0.0
    %1858 = vmatpush.msra.mxu0 0.0
    %1859 = vmatpush.msra.mxu0 0.0
    %1860 = vmatpush.msra.mxu0 0.0
    %1861 = vmatpush.msra.mxu0 0.0
    %1862 = vmatpush.msra.mxu0 0.0
    %1863 = vmatpush.msra.mxu0 0.0
    %1864 = vmatpush.msra.mxu0 %v1357
    %1865 = vmatpush.msra.mxu0 %v1356
    %1866 = vmatpush.msra.mxu0 %v1355
    %1867 = vmatpush.msra.mxu0 %v1354
    %1868 = vmatpush.msra.mxu0 %v1353
    %1869 = vmatpush.msra.mxu0 %v1352
    %1870 = vmatpush.msra.mxu0 %v1351
    %1871 = vmatpush.msra.mxu0 %v1350
    %1872 = vmatmul.f32.gmra.mxu0 %v1854
    %v1873 = vpop.f32.mrf.mxu0
    %v1874 = vadd.f32 0.0, %v1873
    %1875 = vdwg.mxu0
    %v1876 = vadd.f32 %v1264, %v1874
    %v1877 = vxor.u32 %v1876, 2147483648
    %v1878 = vmul.f32 %v1877, 1.442695
    %v1879 = vpow.pop %v1878
    %v1880 = vadd.f32 %v1879, 1.0
    %v1881 = vrcp.pop %v1880
    %v1882 = vmul.f32 %v1880, %v1881
    %v1883 = vsub.f32 1.0, %v1882
    %v1884 = vmul.f32 %v1881, %v1883
    %v1885 = vadd.f32 %v1881, %v1884
    %vm1886 = vweird.f32 %v1880
    %vm1887 = vweird.f32 %v1881
    %vm1888 = vmor %vm1886, %vm1887
    %v1889 = vsel %vm1888, %v1881, %v1885
    %v1890 = vand.u32 2147483647, %v1880
    %vm1891 = vcmp.eq.f32.partialorder %v1890, 8.507059e+37
    %v1892 = vand.u32 %v1880, 2147483648
    %v1893 = vor.u32 1.1754944e-38, %v1892
    %v1894 = vsel %vm1891, %v1893, %v1889
    %v1895 = vmul.f32 1.0, %v1894
    %1896 = vmatpush.msra.mxu0 0.0
    %1897 = vmatpush.msra.mxu0 0.0
    %1898 = vmatpush.msra.mxu0 0.0
    %1899 = vmatpush.msra.mxu0 0.0
    %1900 = vmatpush.msra.mxu0 0.0
    %1901 = vmatpush.msra.mxu0 0.0
    %1902 = vmatpush.msra.mxu0 0.0
    %1903 = vmatpush.msra.mxu0 0.0
    %1904 = vmatpush.msra.mxu0 %v1366
    %1905 = vmatpush.msra.mxu0 %v1365
    %1906 = vmatpush.msra.mxu0 %v1364
    %1907 = vmatpush.msra.mxu0 %v1363
    %1908 = vmatpush.msra.mxu0 %v1362
    %1909 = vmatpush.msra.mxu0 %v1361
    %1910 = vmatpush.msra.mxu0 %v1360
    %1911 = vmatpush.msra.mxu0 %v1359
    %1912 = vmatmul.f32.gmra.mxu0 %v1854
    %v1913 = vpop.f32.mrf.mxu0
    %v1914 = vadd.f32 0.0, %v1913
    %1915 = vdwg.mxu0
    %v1916 = vadd.f32 %v1306, %v1914
    %v1917 = vxor.u32 %v1916, 2147483648
    %v1918 = vmul.f32 %v1917, 1.442695
    %v1919 = vpow.pop %v1918
    %v1920 = vadd.f32 %v1919, 1.0
    %v1921 = vrcp.pop %v1920
    %v1922 = vmul.f32 %v1920, %v1921
    %v1923 = vsub.f32 1.0, %v1922
    %v1924 = vmul.f32 %v1921, %v1923
    %v1925 = vadd.f32 %v1921, %v1924
    %vm1926 = vweird.f32 %v1920
    %vm1927 = vweird.f32 %v1921
    %vm1928 = vmor %vm1926, %vm1927
    %v1929 = vsel %vm1928, %v1921, %v1925
    %v1930 = vand.u32 2147483647, %v1920
    %vm1931 = vcmp.eq.f32.partialorder %v1930, 8.507059e+37
    %v1932 = vand.u32 %v1920, 2147483648
    %v1933 = vor.u32 1.1754944e-38, %v1932
    %v1934 = vsel %vm1931, %v1933, %v1929
    %v1935 = vmul.f32 1.0, %v1934
    %1936 = vmatpush.msra.mxu0 0.0
    %1937 = vmatpush.msra.mxu0 0.0
    %1938 = vmatpush.msra.mxu0 0.0
    %1939 = vmatpush.msra.mxu0 0.0
    %1940 = vmatpush.msra.mxu0 0.0
    %1941 = vmatpush.msra.mxu0 0.0
    %1942 = vmatpush.msra.mxu0 0.0
    %1943 = vmatpush.msra.mxu0 0.0
    %1944 = vmatpush.msra.mxu0 %v1375
    %1945 = vmatpush.msra.mxu0 %v1374
    %1946 = vmatpush.msra.mxu0 %v1373
    %1947 = vmatpush.msra.mxu0 %v1372
    %1948 = vmatpush.msra.mxu0 %v1371
    %1949 = vmatpush.msra.mxu0 %v1370
    %1950 = vmatpush.msra.mxu0 %v1369
    %1951 = vmatpush.msra.mxu0 %v1368
    %1952 = vmatmul.f32.gmra.mxu0 %v1854
    %v1953 = vpop.f32.mrf.mxu0
    %v1954 = vadd.f32 %v1458, %v1953
    %1955 = vdwg.mxu0
    %v1956 = vmul.f32 %v1895, %v1954
    %v1957 = vadd.f32 %v1348, %v1956
    %v1958 = vtanh.pop %v1957
    %v1959 = vsub.f32 1.0, %v1935
    %v1960 = vmul.f32 %v1959, %v1958
    %v1962 = vmul.f32 %v1935, %v1853
    %v1963 = vadd.f32 %v1960, %v1962
    %v1965 = vsel %vm51, %v1963, 0
    %1967 = vmatpush.msra.mxu0 0.0
    %1968 = vmatpush.msra.mxu0 0.0
    %1969 = vmatpush.msra.mxu0 0.0
    %1970 = vmatpush.msra.mxu0 0.0
    %1971 = vmatpush.msra.mxu0 0.0
    %1972 = vmatpush.msra.mxu0 0.0
    %1973 = vmatpush.msra.mxu0 0.0
    %1974 = vmatpush.msra.mxu0 0.0
    %1975 = vmatpush.msra.mxu0 %v1357
    %1976 = vmatpush.msra.mxu0 %v1356
    %1977 = vmatpush.msra.mxu0 %v1355
    %1978 = vmatpush.msra.mxu0 %v1354
    %1979 = vmatpush.msra.mxu0 %v1353
    %1980 = vmatpush.msra.mxu0 %v1352
    %1981 = vmatpush.msra.mxu0 %v1351
    %1982 = vmatpush.msra.mxu0 %v1350
    %1983 = vmatmul.f32.gmra.mxu0 %v1965
    %v1984 = vpop.f32.mrf.mxu0
    %v1985 = vadd.f32 0.0, %v1984
    %1986 = vdwg.mxu0
    %v1988 = vrot.slane %v1985, 6
    %v1990 = vadd.f32 %v1264, %v1988
    %v1991 = vxor.u32 %v1990, 2147483648
    %v1992 = vmul.f32 %v1991, 1.442695
    %v1993 = vpow.pop %v1992
    %v1994 = vadd.f32 %v1993, 1.0
    %v1995 = vrcp.pop %v1994
    %v1996 = vmul.f32 %v1994, %v1995
    %v1997 = vsub.f32 1.0, %v1996
    %v1998 = vmul.f32 %v1995, %v1997
    %v1999 = vadd.f32 %v1995, %v1998
    %vm2000 = vweird.f32 %v1994
    %vm2001 = vweird.f32 %v1995
    %vm2002 = vmor %vm2000, %vm2001
    %v2003 = vsel %vm2002, %v1995, %v1999
    %v2004 = vand.u32 2147483647, %v1994
    %vm2005 = vcmp.eq.f32.partialorder %v2004, 8.507059e+37
    %v2006 = vand.u32 %v1994, 2147483648
    %v2007 = vor.u32 1.1754944e-38, %v2006
    %v2008 = vsel %vm2005, %v2007, %v2003
    %v2009 = vmul.f32 1.0, %v2008
    %2010 = vmatpush.msra.mxu0 0.0
    %2011 = vmatpush.msra.mxu0 0.0
    %2012 = vmatpush.msra.mxu0 0.0
    %2013 = vmatpush.msra.mxu0 0.0
    %2014 = vmatpush.msra.mxu0 0.0
    %2015 = vmatpush.msra.mxu0 0.0
    %2016 = vmatpush.msra.mxu0 0.0
    %2017 = vmatpush.msra.mxu0 0.0
    %2018 = vmatpush.msra.mxu0 %v1366
    %2019 = vmatpush.msra.mxu0 %v1365
    %2020 = vmatpush.msra.mxu0 %v1364
    %2021 = vmatpush.msra.mxu0 %v1363
    %2022 = vmatpush.msra.mxu0 %v1362
    %2023 = vmatpush.msra.mxu0 %v1361
    %2024 = vmatpush.msra.mxu0 %v1360
    %2025 = vmatpush.msra.mxu0 %v1359
    %2026 = vmatmul.f32.gmra.mxu0 %v1965
    %v2027 = vpop.f32.mrf.mxu0
    %v2028 = vadd.f32 0.0, %v2027
    %2029 = vdwg.mxu0
    %v2031 = vrot.slane %v2028, 6
    %v2033 = vadd.f32 %v1306, %v2031
    %v2034 = vxor.u32 %v2033, 2147483648
    %v2035 = vmul.f32 %v2034, 1.442695
    %v2036 = vpow.pop %v2035
    %v2037 = vadd.f32 %v2036, 1.0
    %v2038 = vrcp.pop %v2037
    %v2039 = vmul.f32 %v2037, %v2038
    %v2040 = vsub.f32 1.0, %v2039
    %v2041 = vmul.f32 %v2038, %v2040
    %v2042 = vadd.f32 %v2038, %v2041
    %vm2043 = vweird.f32 %v2037
    %vm2044 = vweird.f32 %v2038
    %vm2045 = vmor %vm2043, %vm2044
    %v2046 = vsel %vm2045, %v2038, %v2042
    %v2047 = vand.u32 2147483647, %v2037
    %vm2048 = vcmp.eq.f32.partialorder %v2047, 8.507059e+37
    %v2049 = vand.u32 %v2037, 2147483648
    %v2050 = vor.u32 1.1754944e-38, %v2049
    %v2051 = vsel %vm2048, %v2050, %v2046
    %v2052 = vmul.f32 1.0, %v2051
    %2053 = vmatpush.msra.mxu0 0.0
    %2054 = vmatpush.msra.mxu0 0.0
    %2055 = vmatpush.msra.mxu0 0.0
    %2056 = vmatpush.msra.mxu0 0.0
    %2057 = vmatpush.msra.mxu0 0.0
    %2058 = vmatpush.msra.mxu0 0.0
    %2059 = vmatpush.msra.mxu0 0.0
    %2060 = vmatpush.msra.mxu0 0.0
    %2061 = vmatpush.msra.mxu0 %v1375
    %2062 = vmatpush.msra.mxu0 %v1374
    %2063 = vmatpush.msra.mxu0 %v1373
    %2064 = vmatpush.msra.mxu0 %v1372
    %2065 = vmatpush.msra.mxu0 %v1371
    %2066 = vmatpush.msra.mxu0 %v1370
    %2067 = vmatpush.msra.mxu0 %v1369
    %2068 = vmatpush.msra.mxu0 %v1368
    %2069 = vmatmul.f32.gmra.mxu0 %v1965
    %v2070 = vpop.f32.mrf.mxu0
    %v2071 = vadd.f32 %v1458, %v2070
    %2072 = vdwg.mxu0
    %v2074 = vrot.slane %v2071, 6
    %v2076 = vmul.f32 %v2009, %v2074
    %v2077 = vadd.f32 %v1348, %v2076
    %v2078 = vtanh.pop %v2077
    %v2079 = vsub.f32 1.0, %v2052
    %v2080 = vmul.f32 %v2079, %v2078
    %v2081 = vrot.slane %v1963, 6
    %v2083 = vmul.f32 %v2052, %v2081
    %v2084 = vadd.f32 %v2080, %v2083
    %v2086 = vrot.slane %v2084, 2
    %v2087 = vsel %vm51, %v2086, 0
    %2089 = vmatpush.msra.mxu0 0.0
    %2090 = vmatpush.msra.mxu0 0.0
    %2091 = vmatpush.msra.mxu0 0.0
    %2092 = vmatpush.msra.mxu0 0.0
    %2093 = vmatpush.msra.mxu0 0.0
    %2094 = vmatpush.msra.mxu0 0.0
    %2095 = vmatpush.msra.mxu0 0.0
    %2096 = vmatpush.msra.mxu0 0.0
    %2097 = vmatpush.msra.mxu0 %v1357
    %2098 = vmatpush.msra.mxu0 %v1356
    %2099 = vmatpush.msra.mxu0 %v1355
    %2100 = vmatpush.msra.mxu0 %v1354
    %2101 = vmatpush.msra.mxu0 %v1353
    %2102 = vmatpush.msra.mxu0 %v1352
    %2103 = vmatpush.msra.mxu0 %v1351
    %2104 = vmatpush.msra.mxu0 %v1350
    %2105 = vmatmul.f32.gmra.mxu0 %v2087
    %v2106 = vpop.f32.mrf.mxu0
    %v2107 = vadd.f32 0.0, %v2106
    %2108 = vdwg.mxu0
    %v2110 = vrot.slane %v2107, 4
    %v2112 = vadd.f32 %v1264, %v2110
    %v2113 = vxor.u32 %v2112, 2147483648
    %v2114 = vmul.f32 %v2113, 1.442695
    %v2115 = vpow.pop %v2114
    %v2116 = vadd.f32 %v2115, 1.0
    %v2117 = vrcp.pop %v2116
    %v2118 = vmul.f32 %v2116, %v2117
    %v2119 = vsub.f32 1.0, %v2118
    %v2120 = vmul.f32 %v2117, %v2119
    %v2121 = vadd.f32 %v2117, %v2120
    %vm2122 = vweird.f32 %v2116
    %vm2123 = vweird.f32 %v2117
    %vm2124 = vmor %vm2122, %vm2123
    %v2125 = vsel %vm2124, %v2117, %v2121
    %v2126 = vand.u32 2147483647, %v2116
    %vm2127 = vcmp.eq.f32.partialorder %v2126, 8.507059e+37
    %v2128 = vand.u32 %v2116, 2147483648
    %v2129 = vor.u32 1.1754944e-38, %v2128
    %v2130 = vsel %vm2127, %v2129, %v2125
    %v2131 = vmul.f32 1.0, %v2130
    %2132 = vmatpush.msra.mxu0 0.0
    %2133 = vmatpush.msra.mxu0 0.0
    %2134 = vmatpush.msra.mxu0 0.0
    %2135 = vmatpush.msra.mxu0 0.0
    %2136 = vmatpush.msra.mxu0 0.0
    %2137 = vmatpush.msra.mxu0 0.0
    %2138 = vmatpush.msra.mxu0 0.0
    %2139 = vmatpush.msra.mxu0 0.0
    %2140 = vmatpush.msra.mxu0 %v1366
    %2141 = vmatpush.msra.mxu0 %v1365
    %2142 = vmatpush.msra.mxu0 %v1364
    %2143 = vmatpush.msra.mxu0 %v1363
    %2144 = vmatpush.msra.mxu0 %v1362
    %2145 = vmatpush.msra.mxu0 %v1361
    %2146 = vmatpush.msra.mxu0 %v1360
    %2147 = vmatpush.msra.mxu0 %v1359
    %2148 = vmatmul.f32.gmra.mxu0 %v2087
    %v2149 = vpop.f32.mrf.mxu0
    %v2150 = vadd.f32 0.0, %v2149
    %2151 = vdwg.mxu0
    %v2153 = vrot.slane %v2150, 4
    %v2155 = vadd.f32 %v1306, %v2153
    %v2156 = vxor.u32 %v2155, 2147483648
    %v2157 = vmul.f32 %v2156, 1.442695
    %v2158 = vpow.pop %v2157
    %v2159 = vadd.f32 %v2158, 1.0
    %v2160 = vrcp.pop %v2159
    %v2161 = vmul.f32 %v2159, %v2160
    %v2162 = vsub.f32 1.0, %v2161
    %v2163 = vmul.f32 %v2160, %v2162
    %v2164 = vadd.f32 %v2160, %v2163
    %vm2165 = vweird.f32 %v2159
    %vm2166 = vweird.f32 %v2160
    %vm2167 = vmor %vm2165, %vm2166
    %v2168 = vsel %vm2167, %v2160, %v2164
    %v2169 = vand.u32 2147483647, %v2159
    %vm2170 = vcmp.eq.f32.partialorder %v2169, 8.507059e+37
    %v2171 = vand.u32 %v2159, 2147483648
    %v2172 = vor.u32 1.1754944e-38, %v2171
    %v2173 = vsel %vm2170, %v2172, %v2168
    %v2174 = vmul.f32 1.0, %v2173
    %2175 = vmatpush.msra.mxu0 0.0
    %2176 = vmatpush.msra.mxu0 0.0
    %2177 = vmatpush.msra.mxu0 0.0
    %2178 = vmatpush.msra.mxu0 0.0
    %2179 = vmatpush.msra.mxu0 0.0
    %2180 = vmatpush.msra.mxu0 0.0
    %2181 = vmatpush.msra.mxu0 0.0
    %2182 = vmatpush.msra.mxu0 0.0
    %2183 = vmatpush.msra.mxu0 %v1375
    %2184 = vmatpush.msra.mxu0 %v1374
    %2185 = vmatpush.msra.mxu0 %v1373
    %2186 = vmatpush.msra.mxu0 %v1372
    %2187 = vmatpush.msra.mxu0 %v1371
    %2188 = vmatpush.msra.mxu0 %v1370
    %2189 = vmatpush.msra.mxu0 %v1369
    %2190 = vmatpush.msra.mxu0 %v1368
    %2191 = vmatmul.f32.gmra.mxu0 %v2087
    %v2192 = vpop.f32.mrf.mxu0
    %v2193 = vadd.f32 %v1458, %v2192
    %2194 = vdwg.mxu0
    %v2196 = vrot.slane %v2193, 4
    %v2198 = vmul.f32 %v2131, %v2196
    %v2199 = vadd.f32 %v1348, %v2198
    %v2200 = vtanh.pop %v2199
    %v2201 = vsub.f32 1.0, %v2174
    %v2202 = vmul.f32 %v2201, %v2200
    %v2203 = vrot.slane %v2084, 6
    %v2205 = vmul.f32 %v2174, %v2203
    %v2206 = vadd.f32 %v2202, %v2205
    %v2208 = vrot.slane %v2206, 4
    %v2209 = vsel %vm51, %v2208, 0
    %2211 = vmatpush.msra.mxu0 0.0
    %2212 = vmatpush.msra.mxu0 0.0
    %2213 = vmatpush.msra.mxu0 0.0
    %2214 = vmatpush.msra.mxu0 0.0
    %2215 = vmatpush.msra.mxu0 0.0
    %2216 = vmatpush.msra.mxu0 0.0
    %2217 = vmatpush.msra.mxu0 0.0
    %2218 = vmatpush.msra.mxu0 0.0
    %2219 = vmatpush.msra.mxu0 %v1357
    %2220 = vmatpush.msra.mxu0 %v1356
    %2221 = vmatpush.msra.mxu0 %v1355
    %2222 = vmatpush.msra.mxu0 %v1354
    %2223 = vmatpush.msra.mxu0 %v1353
    %2224 = vmatpush.msra.mxu0 %v1352
    %2225 = vmatpush.msra.mxu0 %v1351
    %2226 = vmatpush.msra.mxu0 %v1350
    %2227 = vmatmul.f32.gmra.mxu0 %v2209
    %v2228 = vpop.f32.mrf.mxu0
    %v2229 = vadd.f32 0.0, %v2228
    %2230 = vdwg.mxu0
    %v2232 = vrot.slane %v2229, 2
    %v2234 = vadd.f32 %v1264, %v2232
    %v2235 = vxor.u32 %v2234, 2147483648
    %v2236 = vmul.f32 %v2235, 1.442695
    %v2237 = vpow.pop %v2236
    %v2238 = vadd.f32 %v2237, 1.0
    %v2239 = vrcp.pop %v2238
    %v2240 = vmul.f32 %v2238, %v2239
    %v2241 = vsub.f32 1.0, %v2240
    %v2242 = vmul.f32 %v2239, %v2241
    %v2243 = vadd.f32 %v2239, %v2242
    %vm2244 = vweird.f32 %v2238
    %vm2245 = vweird.f32 %v2239
    %vm2246 = vmor %vm2244, %vm2245
    %v2247 = vsel %vm2246, %v2239, %v2243
    %v2248 = vand.u32 2147483647, %v2238
    %vm2249 = vcmp.eq.f32.partialorder %v2248, 8.507059e+37
    %v2250 = vand.u32 %v2238, 2147483648
    %v2251 = vor.u32 1.1754944e-38, %v2250
    %v2252 = vsel %vm2249, %v2251, %v2247
    %v2253 = vmul.f32 1.0, %v2252
    %2254 = vmatpush.msra.mxu0 0.0
    %2255 = vmatpush.msra.mxu0 0.0
    %2256 = vmatpush.msra.mxu0 0.0
    %2257 = vmatpush.msra.mxu0 0.0
    %2258 = vmatpush.msra.mxu0 0.0
    %2259 = vmatpush.msra.mxu0 0.0
    %2260 = vmatpush.msra.mxu0 0.0
    %2261 = vmatpush.msra.mxu0 0.0
    %2262 = vmatpush.msra.mxu0 %v1366
    %2263 = vmatpush.msra.mxu0 %v1365
    %2264 = vmatpush.msra.mxu0 %v1364
    %2265 = vmatpush.msra.mxu0 %v1363
    %2266 = vmatpush.msra.mxu0 %v1362
    %2267 = vmatpush.msra.mxu0 %v1361
    %2268 = vmatpush.msra.mxu0 %v1360
    %2269 = vmatpush.msra.mxu0 %v1359
    %2270 = vmatmul.f32.gmra.mxu0 %v2209
    %v2271 = vpop.f32.mrf.mxu0
    %v2272 = vadd.f32 0.0, %v2271
    %2273 = vdwg.mxu0
    %v2275 = vrot.slane %v2272, 2
    %v2277 = vadd.f32 %v1306, %v2275
    %v2278 = vxor.u32 %v2277, 2147483648
    %v2279 = vmul.f32 %v2278, 1.442695
    %v2280 = vpow.pop %v2279
    %v2281 = vadd.f32 %v2280, 1.0
    %v2282 = vrcp.pop %v2281
    %v2283 = vmul.f32 %v2281, %v2282
    %v2284 = vsub.f32 1.0, %v2283
    %v2285 = vmul.f32 %v2282, %v2284
    %v2286 = vadd.f32 %v2282, %v2285
    %vm2287 = vweird.f32 %v2281
    %vm2288 = vweird.f32 %v2282
    %vm2289 = vmor %vm2287, %vm2288
    %v2290 = vsel %vm2289, %v2282, %v2286
    %v2291 = vand.u32 2147483647, %v2281
    %vm2292 = vcmp.eq.f32.partialorder %v2291, 8.507059e+37
    %v2293 = vand.u32 %v2281, 2147483648
    %v2294 = vor.u32 1.1754944e-38, %v2293
    %v2295 = vsel %vm2292, %v2294, %v2290
    %v2296 = vmul.f32 1.0, %v2295
    %2297 = vmatpush.msra.mxu0 0.0
    %2298 = vmatpush.msra.mxu0 0.0
    %2299 = vmatpush.msra.mxu0 0.0
    %2300 = vmatpush.msra.mxu0 0.0
    %2301 = vmatpush.msra.mxu0 0.0
    %2302 = vmatpush.msra.mxu0 0.0
    %2303 = vmatpush.msra.mxu0 0.0
    %2304 = vmatpush.msra.mxu0 0.0
    %2305 = vmatpush.msra.mxu0 %v1375
    %2306 = vmatpush.msra.mxu0 %v1374
    %2307 = vmatpush.msra.mxu0 %v1373
    %2308 = vmatpush.msra.mxu0 %v1372
    %2309 = vmatpush.msra.mxu0 %v1371
    %2310 = vmatpush.msra.mxu0 %v1370
    %2311 = vmatpush.msra.mxu0 %v1369
    %2312 = vmatpush.msra.mxu0 %v1368
    %2313 = vmatmul.f32.gmra.mxu0 %v2209
    %v2314 = vpop.f32.mrf.mxu0
    %v2315 = vadd.f32 %v1458, %v2314
    %2316 = vdwg.mxu0
    %v2318 = vrot.slane %v2315, 2
    %v2320 = vmul.f32 %v2253, %v2318
    %v2321 = vadd.f32 %v1348, %v2320
    %v2322 = vtanh.pop %v2321
    %v2323 = vsub.f32 1.0, %v2296
    %v2324 = vmul.f32 %v2323, %v2322
    %v2325 = vrot.slane %v2206, 6
    %v2327 = vmul.f32 %v2296, %v2325
    %v2328 = vadd.f32 %v2324, %v2327
    %v2329 = vld [vmem:[%s9] sm:$0xff]
    %v2330 = vld [vmem:[%s9 + $0x8] sm:$0xff]
    %v2331 = vld [vmem:[%s9 + $0x10] sm:$0xff]
    %v2332 = vld [vmem:[%s9 + $0x18] sm:$0xff]
    %v2333 = vld [vmem:[%s9 + $0x20] sm:$0xff]
    %v2334 = vld [vmem:[%s9 + $0x28] sm:$0xff]
    %v2335 = vld [vmem:[%s9 + $0x30] sm:$0xff]
    %v2336 = vld [vmem:[%s9 + $0x38] sm:$0xff]
    %v2337 = vld [vmem:[%s10] sm:$0x1]
    %v2339 = vperm.slane %v2337, 0
    %v2342 = vrot.slane %v2328, 6
    %v2343 = vsel %vm51, %v2342, 0
    %2345 = vmatpush.msra.mxu0 0.0
    %2346 = vmatpush.msra.mxu0 0.0
    %2347 = vmatpush.msra.mxu0 0.0
    %2348 = vmatpush.msra.mxu0 0.0
    %2349 = vmatpush.msra.mxu0 0.0
    %2350 = vmatpush.msra.mxu0 0.0
    %2351 = vmatpush.msra.mxu0 0.0
    %2352 = vmatpush.msra.mxu0 0.0
    %2353 = vmatpush.msra.mxu0 %v2336
    %2354 = vmatpush.msra.mxu0 %v2335
    %2355 = vmatpush.msra.mxu0 %v2334
    %2356 = vmatpush.msra.mxu0 %v2333
    %2357 = vmatpush.msra.mxu0 %v2332
    %2358 = vmatpush.msra.mxu0 %v2331
    %2359 = vmatpush.msra.mxu0 %v2330
    %2360 = vmatpush.msra.mxu0 %v2329
    %2361 = vmatmul.f32.gmra.mxu0 %v2343
    %v2362 = vpop.f32.mrf.mxu0
    %v2363 = vadd.f32 %v2339, %v2362
    %2364 = vdwg.mxu0
    %vm2365 = vcmask 9216
    %2366 = vst.msk [vmem:[#allocation2] sm:$0x3] %vm2365, %v2363
    // Predicated region
    $region46: #{sentiment_forward.1} parent=1 // pred_check
      _
    $region47: #{sentiment_forward.1} parent=1 // pred_check_branch
      %2368 = sbr.rel (0) target = $region49
    $region48: #{sentiment_forward.1} parent=1 // pred_region
      %2370 = vsyncadd [#allocation3], 0
      %s2372 = sshll.u32 [#allocation2], 4
      %s2373 = int_to_ptr.vmem [resolvable:$true] %s2372
      %s2374 = sshll.u32 %s11, 4
      %s2375 = int_to_ptr.hbm [resolvable:$true] %s2374
      %2377 = dma.vmem_to_hbm [thread:$0]  %s2373, 32, %s2375, [#allocation3]
    $region49: #{sentiment_forward.1} parent=1 // pred_fallthru
      _
    // Predicated region
    $region50: #{sentiment_forward.1} parent=1 // pred_check
      _
    $region51: #{sentiment_forward.1} parent=1 // pred_check_branch
      %2379 = sbr.rel (0) target = $region53
    $region52: #{sentiment_forward.1} parent=1 // pred_region
      %2381 = dma.done [#allocation3], 32
    $region53: #{sentiment_forward.1} parent=1 // pred_fallthru
      _
    %2382 = vsyncpa [#allocation3], 1

</llo_original>
